<compile_context>
chip_gen: v5e
topology: v5e:2x2
jax: 0.10.0
libtpu: 0.0.40
codegen_flags: <defaults>
</compile_context>

<pallas_src>
import numpy as np
import jax
import jax.numpy as jnp
from jax.experimental import pallas as pl
from jax.experimental.pallas import tpu as pltpu


def _pos_enc_kernel(p_ref, a_ref, b_ref, out_ref):
    # p_ref:   (TMf, 3k)  folded points  (k consecutive original points per row)
    # a_ref:   (3k, kW)   block-diagonal affine coefficients (k copies of (3, W))
    # b_ref:   (1,  kW)   fused bias: normalization offset + pi/2 phase on cos lanes
    # out_ref: (TMf, kW)  sin(p @ A + bias), lane-dense (~128 lanes wide)
    args = jax.lax.dot_general(
        p_ref[...], a_ref[...],
        dimension_numbers=(((1,), (0,)), ((), ())),
        preferred_element_type=jnp.float32,
        precision=jax.lax.Precision.HIGHEST,   # f32-accurate MXU passes (bf16x1 would blow 2e-5)
    )
    out_ref[...] = jnp.sin(args + b_ref[...]).astype(out_ref.dtype)
    # TODO(synk): confirm via bundle dump that jnp.sin lowers to a single EUP push
    # (not a VPU polynomial) -- it changes which unit is the roofline.


def _round_up(x, m):
    return ((x + m - 1) // m) * m


def position_encoding_3d(pos, bounds, enc_dim, scale=np.pi, temperature=10000,
                         block_rows_folded=None, out_tile_bytes=4 << 20):
    """Pallas equivalent of PositionEncoding3D.forward(pos, bounds).

    pos:    (B, N, 3) points.
    bounds: (2, 3) [min; max] workspace bounds.
    Returns (B, N, enc_dim) float32 (matches torch's f32 promotion).
    """
    B, N, C = pos.shape
    assert C == 3, "PositionEncoding3D expects 3D points"
    M = B * N
    W = int(enc_dim)
    freq = int(np.ceil(enc_dim / 6))

    # ---- static (numpy) per-column metadata: coord id, frequency, sin/cos phase ----
    dim_t = temperature ** (np.arange(freq, dtype=np.float32) / np.float32(freq))
    inv_freq = (np.float32(scale) / dim_t).astype(np.float32)                     # (F,)
    invf_full = np.tile(np.repeat(inv_freq, 2), 3)[:W].astype(np.float32)         # (W,)
    phase_full = np.tile(np.tile(np.array([0.0, np.pi / 2.0], np.float32), freq),
                         3)[:W].astype(np.float32)                                # cos(x)=sin(x+pi/2)
    col_coord = np.repeat(np.arange(3), 2 * freq)[:W]                             # (W,)
    sel = (col_coord[None, :] == np.arange(3)[:, None]).astype(np.float32)        # (3, W)

    # ---- runtime bounds -> fused affine coefficients (tiny XLA glue, O(3*W)) ----
    pos_min = bounds[0].astype(jnp.float32)
    pos_max = bounds[1].astype(jnp.float32)
    pos_range = pos_max - pos_min
    # torch: clamp whole vector to min=1e-8 only if ANY component is exactly 0
    pos_range = jnp.where(jnp.any(pos_range == 0),
                          jnp.maximum(pos_range, 1e-8), pos_range)

    two_pi = np.float32(2.0 * np.pi)
    coef = jnp.asarray(sel) * jnp.asarray(two_pi * invf_full)[None, :]            # (3, W)
    A = coef / pos_range[:, None]                                                 # (3, W)
    Bias = ((-(pos_min / pos_range + 0.5))[:, None] * coef).sum(0, keepdims=True) \
        + jnp.asarray(phase_full)[None, :]                                        # (1, W)

    # ---- fold k consecutive points into one row so the stored dim is ~128 lanes ----
    k = max(1, int(np.ceil(128.0 / W)))
    kW = k * W
    threeK = 3 * k
    M_pad = _round_up(M, k)
    Mf = M_pad // k

    pos_flat = pos.reshape(M, 3).astype(jnp.float32)
    if M_pad != M:
        pos_flat = jnp.pad(pos_flat, ((0, M_pad - M), (0, 0)))
    p_folded = pos_flat.reshape(Mf, threeK)              # free row-major reshape

    A_bd = jnp.kron(jnp.eye(k, dtype=jnp.float32), A)    # (3k, kW) block-diagonal
    Bias_t = jnp.tile(Bias, (1, k))                      # (1, kW)

    # ---- tile selection: ~4 MiB output block per grid step, masked tail OK ----
    if block_rows_folded is None:
        tm = max(8, (int(out_tile_bytes) // (kW * 4)) // 8 * 8)
    else:
        tm = max(8, (int(block_rows_folded) // 8) * 8)
    if Mf <= tm:
        tm = Mf                                          # full-extent block: always legal
    grid = (pl.cdiv(Mf, tm),)

    cost = pl.CostEstimate(
        flops=int(2 * Mf * threeK * kW + 2 * Mf * kW),
        transcendentals=int(Mf * kW),
        bytes_accessed=int(Mf * threeK * 4 + Mf * kW * 4 + threeK * kW * 4 + kW * 4),
    )

    out_folded = pl.pallas_call(
        _pos_enc_kernel,
        out_shape=jax.ShapeDtypeStruct((Mf, kW), jnp.float32),
        grid=grid,
        in_specs=[
            pl.BlockSpec((tm, threeK), lambda i: (i, 0)),
            pl.BlockSpec((threeK, kW), lambda i: (0, 0)),
            pl.BlockSpec((1, kW), lambda i: (0, 0)),
        ],
        out_specs=pl.BlockSpec((tm, kW), lambda i: (i, 0)),
        compiler_params=pltpu.CompilerParams(
            dimension_semantics=("parallel",),          # shards grid across v7x's 2 TCs
            vmem_limit_bytes=32 * 1024 * 1024,          # explicit; ~9 MiB/step actually used
        ),
        cost_estimate=cost,
    )(p_folded, A_bd, Bias_t)

    # glue: un-fold lanes back to rows (free reshape), drop row padding, restore (B, N, W)
    out = out_folded.reshape(M_pad, W)
    if M_pad != M:
        out = out[:M]
    return out.reshape(B, N, W)


def _reference(pos, bounds, enc_dim, scale=np.pi, temperature=10000):
    """Pure-JAX transcription of the PyTorch forward, for verification."""
    pos_min = bounds[0]
    pos_max = bounds[1]
    pos_range = pos_max - pos_min
    pos_range = jnp.where(jnp.any(pos_range == 0),
                          jnp.maximum(pos_range, 1e-8), pos_range)
    p = ((pos - pos_min) / pos_range - 0.5) * 2.0 * np.pi
    freq = int(np.ceil(enc_dim / 6))
    dim_t = temperature ** (jnp.arange(freq, dtype=jnp.float32) / freq)
    p = p[..., None] * scale / dim_t                        # (B, N, 3, F)
    enc = jnp.stack([jnp.sin(p), jnp.cos(p)], axis=-1)      # (B, N, 3, F, 2)
    enc = enc.reshape(p.shape[0], p.shape[1], -1)           # (B, N, 6F)
    return enc[..., :enc_dim]


if __name__ == "__main__":
    key = jax.random.PRNGKey(0)
    k1, k2, k3 = jax.random.split(key, 3)

    bounds = jnp.array([[-1.0, -1.0, -1.0],
                        [1.0, 1.0, 1.0]], dtype=jnp.float32)

    # Case 1: enc_dim=32 -> fold k=4, lane width exactly 128; M divisible by k.
    B, N, enc_dim = 2, 512, 32
    pos = jax.random.uniform(k1, (B, N, 3), dtype=jnp.float32,
                             minval=-0.8, maxval=0.9)
    out = jax.block_until_ready(position_encoding_3d(pos, bounds, enc_dim))
    ref = _reference(pos, bounds, enc_dim)
    assert out.shape == (B, N, enc_dim), out.shape
    assert np.allclose(np.asarray(out), np.asarray(ref), atol=2e-5, rtol=2e-5), \
        "mismatch vs reference (case 1)"

    # Case 2: odd enc_dim=26 -> fold k=5, lane width 130 (full-dim block, not 128-mult).
    B2, N2, enc_dim2 = 2, 300, 26
    pos2 = jax.random.uniform(k2, (B2, N2, 3), dtype=jnp.float32,
                              minval=-1.0, maxval=1.0)
    out2 = jax.block_until_ready(position_encoding_3d(pos2, bounds, enc_dim2))
    ref2 = _reference(pos2, bounds, enc_dim2)
    assert out2.shape == (B2, N2, enc_dim2), out2.shape
    assert np.allclose(np.asarray(out2), np.asarray(ref2), atol=2e-5, rtol=2e-5), \
        "mismatch vs reference (case 2)"

    # Case 3: M not divisible by k (row padding path) + forced multi-step grid with
    # a partial tail block (M=666 -> M_pad=668, Mf=167, tile=64 -> 3 grid steps).
    B3, N3, enc_dim3 = 2, 333, 32
    pos3 = jax.random.uniform(k3, (B3, N3, 3), dtype=jnp.float32,
                              minval=-1.0, maxval=1.0)
    out3 = jax.block_until_ready(
        position_encoding_3d(pos3, bounds, enc_dim3, block_rows_folded=64))
    ref3 = _reference(pos3, bounds, enc_dim3)
    assert out3.shape == (B3, N3, enc_dim3), out3.shape
    assert np.allclose(np.asarray(out3), np.asarray(ref3), atol=2e-5, rtol=2e-5), \
        "mismatch vs reference (case 3)"

    print("KERNEL_OK")
</pallas_src>

<mosaic_0001>
module attributes {stable_mosaic.version = 11 : i64} {
  func.func @_pos_enc_kernel(%arg0: i32, %arg1: memref<256x12xf32, #tpu.memory_space<vmem>>, %arg2: memref<12x128xf32, #tpu.memory_space<vmem>>, %arg3: memref<1x128xf32, #tpu.memory_space<vmem>>, %arg4: memref<256x128xf32, #tpu.memory_space<vmem>>) attributes {dimension_semantics = [#tpu.dimension_semantics<parallel>], iteration_bounds = array<i64: 1>, scalar_prefetch = 0 : i64, scratch_operands = 0 : i64, tpu.core_type = #tpu.core_type<tc>, window_params = [{transform_indices = @transform_0, window_bounds = array<i64: 256, 12>}, {pipeline_mode = #tpu.pipeline_mode<synchronous>, transform_indices = @transform_1, window_bounds = array<i64: 12, 128>}, {pipeline_mode = #tpu.pipeline_mode<synchronous>, transform_indices = @transform_2, window_bounds = array<i64: 1, 128>}, {transform_indices = @transform_3, window_bounds = array<i64: 256, 128>}]} {
    %c0 = arith.constant 0 : index
    %c0_0 = arith.constant 0 : index
    %0 = vector.load %arg1[%c0, %c0_0] : memref<256x12xf32, #tpu.memory_space<vmem>>, vector<256x12xf32>
    %c0_1 = arith.constant 0 : index
    %c0_2 = arith.constant 0 : index
    %1 = vector.load %arg2[%c0_1, %c0_2] : memref<12x128xf32, #tpu.memory_space<vmem>>, vector<12x128xf32>
    %cst = arith.constant dense<0.000000e+00> : vector<256x128xf32>
    %2 = tpu.matmul %0, %1, %cst {dimension_numbers = #tpu.dot_dimension_numbers<[1], [0], [0], [1], [0, 0, 1, 1], [], []>, precision = #tpu.contract_precision<fp32>} : vector<256x12xf32>, vector<12x128xf32>, vector<256x128xf32> -> vector<256x128xf32>
    %c0_3 = arith.constant 0 : index
    %c0_4 = arith.constant 0 : index
    %3 = vector.load %arg3[%c0_3, %c0_4] : memref<1x128xf32, #tpu.memory_space<vmem>>, vector<1x128xf32>
    %4 = vector.broadcast %3 : vector<1x128xf32> to vector<256x128xf32>
    %5 = arith.addf %2, %4 : vector<256x128xf32>
    %6 = math.sin %5 : vector<256x128xf32>
    %c0_5 = arith.constant 0 : index
    %c0_6 = arith.constant 0 : index
    %7 = vector.load %arg4[%c0_5, %c0_6] : memref<256x128xf32, #tpu.memory_space<vmem>>, vector<256x128xf32>
    tpu.vector_store %arg4[%c0_5, %c0_6], %6 {strides = array<i32>} : memref<256x128xf32, #tpu.memory_space<vmem>>, vector<256x128xf32>,
    return
  }
  func.func @transform_0(%arg0: i32) -> (i32, i32) {
    %c0_i32 = arith.constant 0 : i32
    %c0_i32_0 = arith.constant 0 : i32
    return %arg0, %c0_i32 : i32, i32
  }
  func.func @transform_1(%arg0: i32) -> (i32, i32) {
    %c0_i32 = arith.constant 0 : i32
    %c0_i32_0 = arith.constant 0 : i32
    %c0_i32_1 = arith.constant 0 : i32
    return %c0_i32, %c0_i32_0 : i32, i32
  }
  func.func @transform_2(%arg0: i32) -> (i32, i32) {
    %c0_i32 = arith.constant 0 : i32
    %c0_i32_0 = arith.constant 0 : i32
    %c0_i32_1 = arith.constant 0 : i32
    return %c0_i32, %c0_i32_0 : i32, i32
  }
  func.func @transform_3(%arg0: i32) -> (i32, i32) {
    %c0_i32 = arith.constant 0 : i32
    %c0_i32_0 = arith.constant 0 : i32
    return %arg0, %c0_i32 : i32, i32
  }
}

</mosaic_0001>

<llo_original>
// kernel: tpu_custom_call.1
$region0: #{tpu_custom_call.1}
  #allocation0 [shape = 'u32[]', space=smem, size = 0x4, offset = 0x4, fixed_abs, tag = 'smem constant byte address 0x4 - core index']
  #allocation1 [shape = 'u32[72,128]{1,0:T(1,128)}', space=vmem, size = 0x9000, scoped, tag = 'internal scratch']
  %s0 = inlined_call_operand.vmem [shape: f32[256,12], index: 0, kind: input, shape index: {}]
  %s1 = inlined_call_operand.vmem [shape: f32[12,128], index: 1, kind: input, shape index: {}]
  %s2 = inlined_call_operand.vmem [shape: f32[1,128], index: 2, kind: input, shape index: {}]
  %s3 = inlined_call_operand.hbm [shape: f32[256,128], index: 3, kind: output, shape index: {}]
  %s4 = sld [smem:[#allocation0]]
  $region22: #{tpu_custom_call.1} parent=0
    _
  %s6 = ssub.s32 1, %s4
  %s7 = scalar_select 0, %s6, %s4
  $region1: #{tpu_custom_call.1} parent=0
    #allocation2 [shape = 'u8[131072]{0}', space=vmem, size = 0x20000, scoped, tag = 'output window, operand 0, single buffered']
    #allocation3 [shape = 's32[1]{0}', space=sflag, size = 0x4, scoped, tag = 'scoped memory for tpu_custom_call.1']
    %8 = vsyncpa [#allocation3], 0
    // Predicated region
    $region2: #{tpu_custom_call.1} parent=1 // pred_check
      _
    $region3: #{tpu_custom_call.1} parent=1 // pred_check_branch
      %10 = sbr.rel (0) target = $region5
    $region4: #{tpu_custom_call.1} parent=1 // pred_region
      _
    $region5: #{tpu_custom_call.1} parent=1 // pred_fallthru
      _
    // Predicated region
    $region6: #{tpu_custom_call.1} parent=1 // pred_check
      _
    $region7: #{tpu_custom_call.1} parent=1 // pred_check_branch
      %12 = sbr.rel (0) target = $region9
    $region8: #{tpu_custom_call.1} parent=1 // pred_region
      _
    $region9: #{tpu_custom_call.1} parent=1 // pred_fallthru
      _
    // Predicated region
    $region10: #{tpu_custom_call.1} parent=1 // pred_check
      _
    $region11: #{tpu_custom_call.1} parent=1 // pred_check_branch
      %14 = sbr.rel (0) target = $region13
    $region12: #{tpu_custom_call.1} parent=1 // pred_region
      _
    $region13: #{tpu_custom_call.1} parent=1 // pred_fallthru
      _
    %v15 = vld [vmem:[%s0] sm:$0xff]
    %v16 = vld [vmem:[%s0 + $0x8] sm:$0xff]
    %v17 = vld [vmem:[%s0 + $0x10] sm:$0xff]
    %v18 = vld [vmem:[%s0 + $0x18] sm:$0xff]
    %v19 = vld [vmem:[%s0 + $0x20] sm:$0xff]
    %v20 = vld [vmem:[%s0 + $0x28] sm:$0xff]
    %v21 = vld [vmem:[%s0 + $0x30] sm:$0xff]
    %v22 = vld [vmem:[%s0 + $0x38] sm:$0xff]
    %v23 = vld [vmem:[%s0 + $0x40] sm:$0xff]
    %v24 = vld [vmem:[%s0 + $0x48] sm:$0xff]
    %v25 = vld [vmem:[%s0 + $0x50] sm:$0xff]
    %v26 = vld [vmem:[%s0 + $0x58] sm:$0xff]
    %v27 = vld [vmem:[%s0 + $0x60] sm:$0xff]
    %v28 = vld [vmem:[%s0 + $0x68] sm:$0xff]
    %v29 = vld [vmem:[%s0 + $0x70] sm:$0xff]
    %v30 = vld [vmem:[%s0 + $0x78] sm:$0xff]
    %v31 = vld [vmem:[%s0 + $0x80] sm:$0xff]
    %v32 = vld [vmem:[%s0 + $0x88] sm:$0xff]
    %v33 = vld [vmem:[%s0 + $0x90] sm:$0xff]
    %v34 = vld [vmem:[%s0 + $0x98] sm:$0xff]
    %v35 = vld [vmem:[%s0 + $0xa0] sm:$0xff]
    %v36 = vld [vmem:[%s0 + $0xa8] sm:$0xff]
    %v37 = vld [vmem:[%s0 + $0xb0] sm:$0xff]
    %v38 = vld [vmem:[%s0 + $0xb8] sm:$0xff]
    %v39 = vld [vmem:[%s0 + $0xc0] sm:$0xff]
    %v40 = vld [vmem:[%s0 + $0xc8] sm:$0xff]
    %v41 = vld [vmem:[%s0 + $0xd0] sm:$0xff]
    %v42 = vld [vmem:[%s0 + $0xd8] sm:$0xff]
    %v43 = vld [vmem:[%s0 + $0xe0] sm:$0xff]
    %v44 = vld [vmem:[%s0 + $0xe8] sm:$0xff]
    %v45 = vld [vmem:[%s0 + $0xf0] sm:$0xff]
    %v46 = vld [vmem:[%s0 + $0xf8] sm:$0xff]
    %v47 = vld [vmem:[%s1] sm:$0xff]
    %v48 = vld [vmem:[%s1 + $0x8] sm:$0xf]
    %v49 = vld [vmem:[%s2] sm:$0x1]
    %v51 = vperm.slane %v49, 0
    %vm53 = vcmask 97280
    %v55 = vsel %vm53, %v15, 0
    %v58 = vsel %vm53, %v16, 0
    %v61 = vsel %vm53, %v17, 0
    %v64 = vsel %vm53, %v18, 0
    %v67 = vsel %vm53, %v19, 0
    %v70 = vsel %vm53, %v20, 0
    %v73 = vsel %vm53, %v21, 0
    %v76 = vsel %vm53, %v22, 0
    %v79 = vsel %vm53, %v23, 0
    %v82 = vsel %vm53, %v24, 0
    %v85 = vsel %vm53, %v25, 0
    %v88 = vsel %vm53, %v26, 0
    %v91 = vsel %vm53, %v27, 0
    %v94 = vsel %vm53, %v28, 0
    %v97 = vsel %vm53, %v29, 0
    %v100 = vsel %vm53, %v30, 0
    %v103 = vsel %vm53, %v31, 0
    %v106 = vsel %vm53, %v32, 0
    %v109 = vsel %vm53, %v33, 0
    %v112 = vsel %vm53, %v34, 0
    %v115 = vsel %vm53, %v35, 0
    %v118 = vsel %vm53, %v36, 0
    %v121 = vsel %vm53, %v37, 0
    %v124 = vsel %vm53, %v38, 0
    %v127 = vsel %vm53, %v39, 0
    %v130 = vsel %vm53, %v40, 0
    %v133 = vsel %vm53, %v41, 0
    %v136 = vsel %vm53, %v42, 0
    %v139 = vsel %vm53, %v43, 0
    %v142 = vsel %vm53, %v44, 0
    %v145 = vsel %vm53, %v45, 0
    %v148 = vsel %vm53, %v46, 0
    %vm150 = vcmask 1043456
    %v152 = vsel %vm150, %v48, 0
    %154 = vmatpush.msra.mxu0 0.0
    %155 = vmatpush.msra.mxu0 0.0
    %156 = vmatpush.msra.mxu0 0.0
    %157 = vmatpush.msra.mxu0 0.0
    %158 = vmatpush.msra.mxu0 0.0
    %159 = vmatpush.msra.mxu0 0.0
    %160 = vmatpush.msra.mxu0 0.0
    %161 = vmatpush.msra.mxu0 0.0
    %162 = vmatpush.msra.mxu0 0.0
    %163 = vmatpush.msra.mxu0 0.0
    %164 = vmatpush.msra.mxu0 0.0
    %165 = vmatpush.msra.mxu0 0.0
    %166 = vmatpush.msra.mxu0 0.0
    %167 = vmatpush.msra.mxu0 0.0
    %v168 = vand.u32 %v152, 4294901760
    %169 = vmatpush.msra.mxu0 %v168
    %v170 = vand.u32 %v47, 4294901760
    %171 = vmatpush.msra.mxu0 %v170
    %v172 = vand.u32 %v55, 4294901760
    %v173 = vsub.f32 %v55, %v172
    %v174 = vand.u32 %v173, 4294901760
    %v175 = vsub.f32 %v173, %v174
    %v176 = vand.u32 %v175, 4294901760
    %177 = vmatmul.f32.gmra.mxu0 %v176
    %v178 = vpop.f32.mrf.mxu0
    %v179 = vadd.f32 %v51, %v178
    %v180 = vand.u32 %v58, 4294901760
    %v181 = vsub.f32 %v58, %v180
    %v182 = vand.u32 %v181, 4294901760
    %v183 = vsub.f32 %v181, %v182
    %v184 = vand.u32 %v183, 4294901760
    %185 = vmatmul.f32.gmra.mxu0 %v184
    %v186 = vpop.f32.mrf.mxu0
    %v187 = vadd.f32 %v51, %v186
    %v188 = vand.u32 %v61, 4294901760
    %v189 = vsub.f32 %v61, %v188
    %v190 = vand.u32 %v189, 4294901760
    %v191 = vsub.f32 %v189, %v190
    %v192 = vand.u32 %v191, 4294901760
    %193 = vmatmul.f32.gmra.mxu0 %v192
    %v194 = vpop.f32.mrf.mxu0
    %v195 = vadd.f32 %v51, %v194
    %v196 = vand.u32 %v64, 4294901760
    %v197 = vsub.f32 %v64, %v196
    %v198 = vand.u32 %v197, 4294901760
    %v199 = vsub.f32 %v197, %v198
    %v200 = vand.u32 %v199, 4294901760
    %201 = vmatmul.f32.gmra.mxu0 %v200
    %v202 = vpop.f32.mrf.mxu0
    %v203 = vadd.f32 %v51, %v202
    %v204 = vand.u32 %v67, 4294901760
    %v205 = vsub.f32 %v67, %v204
    %v206 = vand.u32 %v205, 4294901760
    %v207 = vsub.f32 %v205, %v206
    %v208 = vand.u32 %v207, 4294901760
    %209 = vmatmul.f32.gmra.mxu0 %v208
    %v210 = vpop.f32.mrf.mxu0
    %v211 = vadd.f32 %v51, %v210
    %v212 = vand.u32 %v70, 4294901760
    %v213 = vsub.f32 %v70, %v212
    %v214 = vand.u32 %v213, 4294901760
    %v215 = vsub.f32 %v213, %v214
    %v216 = vand.u32 %v215, 4294901760
    %217 = vmatmul.f32.gmra.mxu0 %v216
    %v218 = vpop.f32.mrf.mxu0
    %v219 = vadd.f32 %v51, %v218
    %v220 = vand.u32 %v73, 4294901760
    %v221 = vsub.f32 %v73, %v220
    %v222 = vand.u32 %v221, 4294901760
    %v223 = vsub.f32 %v221, %v222
    %v224 = vand.u32 %v223, 4294901760
    %225 = vmatmul.f32.gmra.mxu0 %v224
    %v226 = vpop.f32.mrf.mxu0
    %v227 = vadd.f32 %v51, %v226
    %v228 = vand.u32 %v76, 4294901760
    %v229 = vsub.f32 %v76, %v228
    %v230 = vand.u32 %v229, 4294901760
    %v231 = vsub.f32 %v229, %v230
    %v232 = vand.u32 %v231, 4294901760
    %233 = vmatmul.f32.gmra.mxu0 %v232
    %v234 = vpop.f32.mrf.mxu0
    %v235 = vadd.f32 %v51, %v234
    %v236 = vand.u32 %v79, 4294901760
    %v237 = vsub.f32 %v79, %v236
    %v238 = vand.u32 %v237, 4294901760
    %v239 = vsub.f32 %v237, %v238
    %v240 = vand.u32 %v239, 4294901760
    %241 = vmatmul.f32.gmra.mxu0 %v240
    %v242 = vpop.f32.mrf.mxu0
    %v243 = vadd.f32 %v51, %v242
    %v244 = vand.u32 %v82, 4294901760
    %v245 = vsub.f32 %v82, %v244
    %v246 = vand.u32 %v245, 4294901760
    %v247 = vsub.f32 %v245, %v246
    %v248 = vand.u32 %v247, 4294901760
    %249 = vmatmul.f32.gmra.mxu0 %v248
    %v250 = vpop.f32.mrf.mxu0
    %v251 = vadd.f32 %v51, %v250
    %v252 = vand.u32 %v85, 4294901760
    %v253 = vsub.f32 %v85, %v252
    %v254 = vand.u32 %v253, 4294901760
    %v255 = vsub.f32 %v253, %v254
    %v256 = vand.u32 %v255, 4294901760
    %257 = vmatmul.f32.gmra.mxu0 %v256
    %v258 = vpop.f32.mrf.mxu0
    %v259 = vadd.f32 %v51, %v258
    %v260 = vand.u32 %v88, 4294901760
    %v261 = vsub.f32 %v88, %v260
    %v262 = vand.u32 %v261, 4294901760
    %v263 = vsub.f32 %v261, %v262
    %v264 = vand.u32 %v263, 4294901760
    %265 = vmatmul.f32.gmra.mxu0 %v264
    %v266 = vpop.f32.mrf.mxu0
    %v267 = vadd.f32 %v51, %v266
    %v268 = vand.u32 %v91, 4294901760
    %v269 = vsub.f32 %v91, %v268
    %v270 = vand.u32 %v269, 4294901760
    %v271 = vsub.f32 %v269, %v270
    %v272 = vand.u32 %v271, 4294901760
    %273 = vmatmul.f32.gmra.mxu0 %v272
    %v274 = vpop.f32.mrf.mxu0
    %v275 = vadd.f32 %v51, %v274
    %v276 = vand.u32 %v94, 4294901760
    %v277 = vsub.f32 %v94, %v276
    %v278 = vand.u32 %v277, 4294901760
    %v279 = vsub.f32 %v277, %v278
    %v280 = vand.u32 %v279, 4294901760
    %281 = vmatmul.f32.gmra.mxu0 %v280
    %v282 = vpop.f32.mrf.mxu0
    %v283 = vadd.f32 %v51, %v282
    %v284 = vand.u32 %v97, 4294901760
    %v285 = vsub.f32 %v97, %v284
    %v286 = vand.u32 %v285, 4294901760
    %v287 = vsub.f32 %v285, %v286
    %v288 = vand.u32 %v287, 4294901760
    %289 = vmatmul.f32.gmra.mxu0 %v288
    %v290 = vpop.f32.mrf.mxu0
    %v291 = vadd.f32 %v51, %v290
    %v292 = vand.u32 %v100, 4294901760
    %v293 = vsub.f32 %v100, %v292
    %v294 = vand.u32 %v293, 4294901760
    %v295 = vsub.f32 %v293, %v294
    %v296 = vand.u32 %v295, 4294901760
    %297 = vmatmul.f32.gmra.mxu0 %v296
    %v298 = vpop.f32.mrf.mxu0
    %v299 = vadd.f32 %v51, %v298
    %v300 = vand.u32 %v103, 4294901760
    %v301 = vsub.f32 %v103, %v300
    %v302 = vand.u32 %v301, 4294901760
    %v303 = vsub.f32 %v301, %v302
    %v304 = vand.u32 %v303, 4294901760
    %305 = vmatmul.f32.gmra.mxu0 %v304
    %v306 = vpop.f32.mrf.mxu0
    %v307 = vadd.f32 %v51, %v306
    %v308 = vand.u32 %v106, 4294901760
    %v309 = vsub.f32 %v106, %v308
    %v310 = vand.u32 %v309, 4294901760
    %v311 = vsub.f32 %v309, %v310
    %v312 = vand.u32 %v311, 4294901760
    %313 = vmatmul.f32.gmra.mxu0 %v312
    %v314 = vpop.f32.mrf.mxu0
    %v315 = vadd.f32 %v51, %v314
    %v316 = vand.u32 %v109, 4294901760
    %v317 = vsub.f32 %v109, %v316
    %v318 = vand.u32 %v317, 4294901760
    %v319 = vsub.f32 %v317, %v318
    %v320 = vand.u32 %v319, 4294901760
    %321 = vmatmul.f32.gmra.mxu0 %v320
    %v322 = vpop.f32.mrf.mxu0
    %v323 = vadd.f32 %v51, %v322
    %v324 = vand.u32 %v112, 4294901760
    %v325 = vsub.f32 %v112, %v324
    %v326 = vand.u32 %v325, 4294901760
    %v327 = vsub.f32 %v325, %v326
    %v328 = vand.u32 %v327, 4294901760
    %329 = vmatmul.f32.gmra.mxu0 %v328
    %v330 = vpop.f32.mrf.mxu0
    %v331 = vadd.f32 %v51, %v330
    %v332 = vand.u32 %v115, 4294901760
    %v333 = vsub.f32 %v115, %v332
    %v334 = vand.u32 %v333, 4294901760
    %v335 = vsub.f32 %v333, %v334
    %v336 = vand.u32 %v335, 4294901760
    %337 = vmatmul.f32.gmra.mxu0 %v336
    %v338 = vpop.f32.mrf.mxu0
    %v339 = vadd.f32 %v51, %v338
    %v340 = vand.u32 %v118, 4294901760
    %v341 = vsub.f32 %v118, %v340
    %v342 = vand.u32 %v341, 4294901760
    %v343 = vsub.f32 %v341, %v342
    %v344 = vand.u32 %v343, 4294901760
    %345 = vmatmul.f32.gmra.mxu0 %v344
    %v346 = vpop.f32.mrf.mxu0
    %v347 = vadd.f32 %v51, %v346
    %v348 = vand.u32 %v121, 4294901760
    %v349 = vsub.f32 %v121, %v348
    %v350 = vand.u32 %v349, 4294901760
    %v351 = vsub.f32 %v349, %v350
    %v352 = vand.u32 %v351, 4294901760
    %353 = vmatmul.f32.gmra.mxu0 %v352
    %v354 = vpop.f32.mrf.mxu0
    %v355 = vadd.f32 %v51, %v354
    %v356 = vand.u32 %v124, 4294901760
    %v357 = vsub.f32 %v124, %v356
    %v358 = vand.u32 %v357, 4294901760
    %v359 = vsub.f32 %v357, %v358
    %v360 = vand.u32 %v359, 4294901760
    %361 = vmatmul.f32.gmra.mxu0 %v360
    %v362 = vpop.f32.mrf.mxu0
    %v363 = vadd.f32 %v51, %v362
    %v364 = vand.u32 %v127, 4294901760
    %v365 = vsub.f32 %v127, %v364
    %v366 = vand.u32 %v365, 4294901760
    %v367 = vsub.f32 %v365, %v366
    %v368 = vand.u32 %v367, 4294901760
    %369 = vmatmul.f32.gmra.mxu0 %v368
    %v370 = vpop.f32.mrf.mxu0
    %v371 = vadd.f32 %v51, %v370
    %v372 = vand.u32 %v130, 4294901760
    %v373 = vsub.f32 %v130, %v372
    %v374 = vand.u32 %v373, 4294901760
    %v375 = vsub.f32 %v373, %v374
    %v376 = vand.u32 %v375, 4294901760
    %377 = vmatmul.f32.gmra.mxu0 %v376
    %v378 = vpop.f32.mrf.mxu0
    %v379 = vadd.f32 %v51, %v378
    %v380 = vand.u32 %v133, 4294901760
    %v381 = vsub.f32 %v133, %v380
    %v382 = vand.u32 %v381, 4294901760
    %v383 = vsub.f32 %v381, %v382
    %v384 = vand.u32 %v383, 4294901760
    %385 = vmatmul.f32.gmra.mxu0 %v384
    %v386 = vpop.f32.mrf.mxu0
    %v387 = vadd.f32 %v51, %v386
    %v388 = vand.u32 %v136, 4294901760
    %v389 = vsub.f32 %v136, %v388
    %v390 = vand.u32 %v389, 4294901760
    %v391 = vsub.f32 %v389, %v390
    %v392 = vand.u32 %v391, 4294901760
    %393 = vmatmul.f32.gmra.mxu0 %v392
    %v394 = vpop.f32.mrf.mxu0
    %v395 = vadd.f32 %v51, %v394
    %v396 = vand.u32 %v139, 4294901760
    %v397 = vsub.f32 %v139, %v396
    %v398 = vand.u32 %v397, 4294901760
    %v399 = vsub.f32 %v397, %v398
    %v400 = vand.u32 %v399, 4294901760
    %401 = vmatmul.f32.gmra.mxu0 %v400
    %v402 = vpop.f32.mrf.mxu0
    %v403 = vadd.f32 %v51, %v402
    %v404 = vand.u32 %v142, 4294901760
    %v405 = vsub.f32 %v142, %v404
    %v406 = vand.u32 %v405, 4294901760
    %v407 = vsub.f32 %v405, %v406
    %v408 = vand.u32 %v407, 4294901760
    %409 = vmatmul.f32.gmra.mxu0 %v408
    %v410 = vpop.f32.mrf.mxu0
    %v411 = vadd.f32 %v51, %v410
    %v412 = vand.u32 %v145, 4294901760
    %v413 = vsub.f32 %v145, %v412
    %v414 = vand.u32 %v413, 4294901760
    %v415 = vsub.f32 %v413, %v414
    %v416 = vand.u32 %v415, 4294901760
    %417 = vmatmul.f32.gmra.mxu0 %v416
    %v418 = vpop.f32.mrf.mxu0
    %v419 = vadd.f32 %v51, %v418
    %v420 = vand.u32 %v148, 4294901760
    %v421 = vsub.f32 %v148, %v420
    %v422 = vand.u32 %v421, 4294901760
    %v423 = vsub.f32 %v421, %v422
    %v424 = vand.u32 %v423, 4294901760
    %425 = vmatmul.f32.gmra.mxu0 %v424
    %v426 = vpop.f32.mrf.mxu0
    %v427 = vadd.f32 %v51, %v426
    %428 = vdwg.mxu0
    %429 = vmatpush.msra.mxu0 0.0
    %430 = vmatpush.msra.mxu0 0.0
    %431 = vmatpush.msra.mxu0 0.0
    %432 = vmatpush.msra.mxu0 0.0
    %433 = vmatpush.msra.mxu0 0.0
    %434 = vmatpush.msra.mxu0 0.0
    %435 = vmatpush.msra.mxu0 0.0
    %436 = vmatpush.msra.mxu0 0.0
    %437 = vmatpush.msra.mxu0 0.0
    %438 = vmatpush.msra.mxu0 0.0
    %439 = vmatpush.msra.mxu0 0.0
    %440 = vmatpush.msra.mxu0 0.0
    %441 = vmatpush.msra.mxu0 0.0
    %442 = vmatpush.msra.mxu0 0.0
    %v443 = vand.u32 %v152, 4294901760
    %v444 = vsub.f32 %v152, %v443
    %v445 = vand.u32 %v444, 4294901760
    %v446 = vsub.f32 %v444, %v445
    %v447 = vand.u32 %v446, 4294901760
    %448 = vmatpush.msra.mxu0 %v447
    %v449 = vand.u32 %v47, 4294901760
    %v450 = vsub.f32 %v47, %v449
    %v451 = vand.u32 %v450, 4294901760
    %v452 = vsub.f32 %v450, %v451
    %v453 = vand.u32 %v452, 4294901760
    %454 = vmatpush.msra.mxu0 %v453
    %v455 = vand.u32 %v55, 4294901760
    %456 = vmatmul.f32.gmra.mxu0 %v455
    %v457 = vpop.f32.mrf.mxu0
    %v458 = vadd.f32 %v179, %v457
    %v459 = vand.u32 %v58, 4294901760
    %460 = vmatmul.f32.gmra.mxu0 %v459
    %v461 = vpop.f32.mrf.mxu0
    %v462 = vadd.f32 %v187, %v461
    %v463 = vand.u32 %v61, 4294901760
    %464 = vmatmul.f32.gmra.mxu0 %v463
    %v465 = vpop.f32.mrf.mxu0
    %v466 = vadd.f32 %v195, %v465
    %v467 = vand.u32 %v64, 4294901760
    %468 = vmatmul.f32.gmra.mxu0 %v467
    %v469 = vpop.f32.mrf.mxu0
    %v470 = vadd.f32 %v203, %v469
    %v471 = vand.u32 %v67, 4294901760
    %472 = vmatmul.f32.gmra.mxu0 %v471
    %v473 = vpop.f32.mrf.mxu0
    %v474 = vadd.f32 %v211, %v473
    %v475 = vand.u32 %v70, 4294901760
    %476 = vmatmul.f32.gmra.mxu0 %v475
    %v477 = vpop.f32.mrf.mxu0
    %v478 = vadd.f32 %v219, %v477
    %v479 = vand.u32 %v73, 4294901760
    %480 = vmatmul.f32.gmra.mxu0 %v479
    %v481 = vpop.f32.mrf.mxu0
    %v482 = vadd.f32 %v227, %v481
    %v483 = vand.u32 %v76, 4294901760
    %484 = vmatmul.f32.gmra.mxu0 %v483
    %v485 = vpop.f32.mrf.mxu0
    %v486 = vadd.f32 %v235, %v485
    %v487 = vand.u32 %v79, 4294901760
    %488 = vmatmul.f32.gmra.mxu0 %v487
    %v489 = vpop.f32.mrf.mxu0
    %v490 = vadd.f32 %v243, %v489
    %v491 = vand.u32 %v82, 4294901760
    %492 = vmatmul.f32.gmra.mxu0 %v491
    %v493 = vpop.f32.mrf.mxu0
    %v494 = vadd.f32 %v251, %v493
    %v495 = vand.u32 %v85, 4294901760
    %496 = vmatmul.f32.gmra.mxu0 %v495
    %v497 = vpop.f32.mrf.mxu0
    %v498 = vadd.f32 %v259, %v497
    %v499 = vand.u32 %v88, 4294901760
    %500 = vmatmul.f32.gmra.mxu0 %v499
    %v501 = vpop.f32.mrf.mxu0
    %v502 = vadd.f32 %v267, %v501
    %v503 = vand.u32 %v91, 4294901760
    %504 = vmatmul.f32.gmra.mxu0 %v503
    %v505 = vpop.f32.mrf.mxu0
    %v506 = vadd.f32 %v275, %v505
    %v507 = vand.u32 %v94, 4294901760
    %508 = vmatmul.f32.gmra.mxu0 %v507
    %v509 = vpop.f32.mrf.mxu0
    %v510 = vadd.f32 %v283, %v509
    %v511 = vand.u32 %v97, 4294901760
    %512 = vmatmul.f32.gmra.mxu0 %v511
    %v513 = vpop.f32.mrf.mxu0
    %v514 = vadd.f32 %v291, %v513
    %v515 = vand.u32 %v100, 4294901760
    %516 = vmatmul.f32.gmra.mxu0 %v515
    %v517 = vpop.f32.mrf.mxu0
    %v518 = vadd.f32 %v299, %v517
    %v519 = vand.u32 %v103, 4294901760
    %520 = vmatmul.f32.gmra.mxu0 %v519
    %v521 = vpop.f32.mrf.mxu0
    %v522 = vadd.f32 %v307, %v521
    %v523 = vand.u32 %v106, 4294901760
    %524 = vmatmul.f32.gmra.mxu0 %v523
    %v525 = vpop.f32.mrf.mxu0
    %v526 = vadd.f32 %v315, %v525
    %v527 = vand.u32 %v109, 4294901760
    %528 = vmatmul.f32.gmra.mxu0 %v527
    %v529 = vpop.f32.mrf.mxu0
    %v530 = vadd.f32 %v323, %v529
    %v531 = vand.u32 %v112, 4294901760
    %532 = vmatmul.f32.gmra.mxu0 %v531
    %v533 = vpop.f32.mrf.mxu0
    %v534 = vadd.f32 %v331, %v533
    %v535 = vand.u32 %v115, 4294901760
    %536 = vmatmul.f32.gmra.mxu0 %v535
    %v537 = vpop.f32.mrf.mxu0
    %v538 = vadd.f32 %v339, %v537
    %v539 = vand.u32 %v118, 4294901760
    %540 = vmatmul.f32.gmra.mxu0 %v539
    %v541 = vpop.f32.mrf.mxu0
    %v542 = vadd.f32 %v347, %v541
    %v543 = vand.u32 %v121, 4294901760
    %544 = vmatmul.f32.gmra.mxu0 %v543
    %v545 = vpop.f32.mrf.mxu0
    %v546 = vadd.f32 %v355, %v545
    %v547 = vand.u32 %v124, 4294901760
    %548 = vmatmul.f32.gmra.mxu0 %v547
    %v549 = vpop.f32.mrf.mxu0
    %v550 = vadd.f32 %v363, %v549
    %v551 = vand.u32 %v127, 4294901760
    %552 = vmatmul.f32.gmra.mxu0 %v551
    %v553 = vpop.f32.mrf.mxu0
    %v554 = vadd.f32 %v371, %v553
    %v555 = vand.u32 %v130, 4294901760
    %556 = vmatmul.f32.gmra.mxu0 %v555
    %v557 = vpop.f32.mrf.mxu0
    %v558 = vadd.f32 %v379, %v557
    %v559 = vand.u32 %v133, 4294901760
    %560 = vmatmul.f32.gmra.mxu0 %v559
    %v561 = vpop.f32.mrf.mxu0
    %v562 = vadd.f32 %v387, %v561
    %v563 = vand.u32 %v136, 4294901760
    %564 = vmatmul.f32.gmra.mxu0 %v563
    %v565 = vpop.f32.mrf.mxu0
    %v566 = vadd.f32 %v395, %v565
    %v567 = vand.u32 %v139, 4294901760
    %568 = vmatmul.f32.gmra.mxu0 %v567
    %v569 = vpop.f32.mrf.mxu0
    %v570 = vadd.f32 %v403, %v569
    %v571 = vand.u32 %v142, 4294901760
    %572 = vmatmul.f32.gmra.mxu0 %v571
    %v573 = vpop.f32.mrf.mxu0
    %v574 = vadd.f32 %v411, %v573
    %v575 = vand.u32 %v145, 4294901760
    %576 = vmatmul.f32.gmra.mxu0 %v575
    %v577 = vpop.f32.mrf.mxu0
    %v578 = vadd.f32 %v419, %v577
    %v579 = vand.u32 %v148, 4294901760
    %580 = vmatmul.f32.gmra.mxu0 %v579
    %v581 = vpop.f32.mrf.mxu0
    %v582 = vadd.f32 %v427, %v581
    %583 = vdwg.mxu0
    %584 = vmatpush.msra.mxu0 0.0
    %585 = vmatpush.msra.mxu0 0.0
    %586 = vmatpush.msra.mxu0 0.0
    %587 = vmatpush.msra.mxu0 0.0
    %588 = vmatpush.msra.mxu0 0.0
    %589 = vmatpush.msra.mxu0 0.0
    %590 = vmatpush.msra.mxu0 0.0
    %591 = vmatpush.msra.mxu0 0.0
    %592 = vmatpush.msra.mxu0 0.0
    %593 = vmatpush.msra.mxu0 0.0
    %594 = vmatpush.msra.mxu0 0.0
    %595 = vmatpush.msra.mxu0 0.0
    %596 = vmatpush.msra.mxu0 0.0
    %597 = vmatpush.msra.mxu0 0.0
    %v598 = vand.u32 %v152, 4294901760
    %v599 = vsub.f32 %v152, %v598
    %600 = vmatpush.msra.mxu0 %v599
    %v601 = vand.u32 %v47, 4294901760
    %v602 = vsub.f32 %v47, %v601
    %603 = vmatpush.msra.mxu0 %v602
    %v604 = vand.u32 %v55, 4294901760
    %v605 = vsub.f32 %v55, %v604
    %606 = vmatmul.f32.gmra.mxu0 %v605
    %v607 = vpop.f32.mrf.mxu0
    %v608 = vadd.f32 %v458, %v607
    %v609 = vand.u32 %v58, 4294901760
    %v610 = vsub.f32 %v58, %v609
    %611 = vmatmul.f32.gmra.mxu0 %v610
    %v612 = vpop.f32.mrf.mxu0
    %v613 = vadd.f32 %v462, %v612
    %v614 = vand.u32 %v61, 4294901760
    %v615 = vsub.f32 %v61, %v614
    %616 = vmatmul.f32.gmra.mxu0 %v615
    %v617 = vpop.f32.mrf.mxu0
    %v618 = vadd.f32 %v466, %v617
    %v619 = vand.u32 %v64, 4294901760
    %v620 = vsub.f32 %v64, %v619
    %621 = vmatmul.f32.gmra.mxu0 %v620
    %v622 = vpop.f32.mrf.mxu0
    %v623 = vadd.f32 %v470, %v622
    %v624 = vand.u32 %v67, 4294901760
    %v625 = vsub.f32 %v67, %v624
    %626 = vmatmul.f32.gmra.mxu0 %v625
    %v627 = vpop.f32.mrf.mxu0
    %v628 = vadd.f32 %v474, %v627
    %v629 = vand.u32 %v70, 4294901760
    %v630 = vsub.f32 %v70, %v629
    %631 = vmatmul.f32.gmra.mxu0 %v630
    %v632 = vpop.f32.mrf.mxu0
    %v633 = vadd.f32 %v478, %v632
    %v634 = vand.u32 %v73, 4294901760
    %v635 = vsub.f32 %v73, %v634
    %636 = vmatmul.f32.gmra.mxu0 %v635
    %v637 = vpop.f32.mrf.mxu0
    %v638 = vadd.f32 %v482, %v637
    %v639 = vand.u32 %v76, 4294901760
    %v640 = vsub.f32 %v76, %v639
    %641 = vmatmul.f32.gmra.mxu0 %v640
    %v642 = vpop.f32.mrf.mxu0
    %v643 = vadd.f32 %v486, %v642
    %v644 = vand.u32 %v79, 4294901760
    %v645 = vsub.f32 %v79, %v644
    %646 = vmatmul.f32.gmra.mxu0 %v645
    %v647 = vpop.f32.mrf.mxu0
    %v648 = vadd.f32 %v490, %v647
    %v649 = vand.u32 %v82, 4294901760
    %v650 = vsub.f32 %v82, %v649
    %651 = vmatmul.f32.gmra.mxu0 %v650
    %v652 = vpop.f32.mrf.mxu0
    %v653 = vadd.f32 %v494, %v652
    %v654 = vand.u32 %v85, 4294901760
    %v655 = vsub.f32 %v85, %v654
    %656 = vmatmul.f32.gmra.mxu0 %v655
    %v657 = vpop.f32.mrf.mxu0
    %v658 = vadd.f32 %v498, %v657
    %v659 = vand.u32 %v88, 4294901760
    %v660 = vsub.f32 %v88, %v659
    %661 = vmatmul.f32.gmra.mxu0 %v660
    %v662 = vpop.f32.mrf.mxu0
    %v663 = vadd.f32 %v502, %v662
    %v664 = vand.u32 %v91, 4294901760
    %v665 = vsub.f32 %v91, %v664
    %666 = vmatmul.f32.gmra.mxu0 %v665
    %v667 = vpop.f32.mrf.mxu0
    %v668 = vadd.f32 %v506, %v667
    %v669 = vand.u32 %v94, 4294901760
    %v670 = vsub.f32 %v94, %v669
    %671 = vmatmul.f32.gmra.mxu0 %v670
    %v672 = vpop.f32.mrf.mxu0
    %v673 = vadd.f32 %v510, %v672
    %v674 = vand.u32 %v97, 4294901760
    %v675 = vsub.f32 %v97, %v674
    %676 = vmatmul.f32.gmra.mxu0 %v675
    %v677 = vpop.f32.mrf.mxu0
    %v678 = vadd.f32 %v514, %v677
    %v679 = vand.u32 %v100, 4294901760
    %v680 = vsub.f32 %v100, %v679
    %681 = vmatmul.f32.gmra.mxu0 %v680
    %v682 = vpop.f32.mrf.mxu0
    %v683 = vadd.f32 %v518, %v682
    %v684 = vand.u32 %v103, 4294901760
    %v685 = vsub.f32 %v103, %v684
    %686 = vmatmul.f32.gmra.mxu0 %v685
    %v687 = vpop.f32.mrf.mxu0
    %v688 = vadd.f32 %v522, %v687
    %v689 = vand.u32 %v106, 4294901760
    %v690 = vsub.f32 %v106, %v689
    %691 = vmatmul.f32.gmra.mxu0 %v690
    %v692 = vpop.f32.mrf.mxu0
    %v693 = vadd.f32 %v526, %v692
    %v694 = vand.u32 %v109, 4294901760
    %v695 = vsub.f32 %v109, %v694
    %696 = vmatmul.f32.gmra.mxu0 %v695
    %v697 = vpop.f32.mrf.mxu0
    %v698 = vadd.f32 %v530, %v697
    %v699 = vand.u32 %v112, 4294901760
    %v700 = vsub.f32 %v112, %v699
    %701 = vmatmul.f32.gmra.mxu0 %v700
    %v702 = vpop.f32.mrf.mxu0
    %v703 = vadd.f32 %v534, %v702
    %v704 = vand.u32 %v115, 4294901760
    %v705 = vsub.f32 %v115, %v704
    %706 = vmatmul.f32.gmra.mxu0 %v705
    %v707 = vpop.f32.mrf.mxu0
    %v708 = vadd.f32 %v538, %v707
    %v709 = vand.u32 %v118, 4294901760
    %v710 = vsub.f32 %v118, %v709
    %711 = vmatmul.f32.gmra.mxu0 %v710
    %v712 = vpop.f32.mrf.mxu0
    %v713 = vadd.f32 %v542, %v712
    %v714 = vand.u32 %v121, 4294901760
    %v715 = vsub.f32 %v121, %v714
    %716 = vmatmul.f32.gmra.mxu0 %v715
    %v717 = vpop.f32.mrf.mxu0
    %v718 = vadd.f32 %v546, %v717
    %v719 = vand.u32 %v124, 4294901760
    %v720 = vsub.f32 %v124, %v719
    %721 = vmatmul.f32.gmra.mxu0 %v720
    %v722 = vpop.f32.mrf.mxu0
    %v723 = vadd.f32 %v550, %v722
    %v724 = vand.u32 %v127, 4294901760
    %v725 = vsub.f32 %v127, %v724
    %726 = vmatmul.f32.gmra.mxu0 %v725
    %v727 = vpop.f32.mrf.mxu0
    %v728 = vadd.f32 %v554, %v727
    %v729 = vand.u32 %v130, 4294901760
    %v730 = vsub.f32 %v130, %v729
    %731 = vmatmul.f32.gmra.mxu0 %v730
    %v732 = vpop.f32.mrf.mxu0
    %v733 = vadd.f32 %v558, %v732
    %v734 = vand.u32 %v133, 4294901760
    %v735 = vsub.f32 %v133, %v734
    %736 = vmatmul.f32.gmra.mxu0 %v735
    %v737 = vpop.f32.mrf.mxu0
    %v738 = vadd.f32 %v562, %v737
    %v739 = vand.u32 %v136, 4294901760
    %v740 = vsub.f32 %v136, %v739
    %741 = vmatmul.f32.gmra.mxu0 %v740
    %v742 = vpop.f32.mrf.mxu0
    %v743 = vadd.f32 %v566, %v742
    %v744 = vand.u32 %v139, 4294901760
    %v745 = vsub.f32 %v139, %v744
    %746 = vmatmul.f32.gmra.mxu0 %v745
    %v747 = vpop.f32.mrf.mxu0
    %v748 = vadd.f32 %v570, %v747
    %v749 = vand.u32 %v142, 4294901760
    %v750 = vsub.f32 %v142, %v749
    %751 = vmatmul.f32.gmra.mxu0 %v750
    %v752 = vpop.f32.mrf.mxu0
    %v753 = vadd.f32 %v574, %v752
    %v754 = vand.u32 %v145, 4294901760
    %v755 = vsub.f32 %v145, %v754
    %756 = vmatmul.f32.gmra.mxu0 %v755
    %v757 = vpop.f32.mrf.mxu0
    %v758 = vadd.f32 %v578, %v757
    %v759 = vand.u32 %v148, 4294901760
    %v760 = vsub.f32 %v148, %v759
    %761 = vmatmul.f32.gmra.mxu0 %v760
    %v762 = vpop.f32.mrf.mxu0
    %v763 = vadd.f32 %v582, %v762
    %764 = vdwg.mxu0
    %765 = vmatpush.msra.mxu0 0.0
    %766 = vmatpush.msra.mxu0 0.0
    %767 = vmatpush.msra.mxu0 0.0
    %768 = vmatpush.msra.mxu0 0.0
    %769 = vmatpush.msra.mxu0 0.0
    %770 = vmatpush.msra.mxu0 0.0
    %771 = vmatpush.msra.mxu0 0.0
    %772 = vmatpush.msra.mxu0 0.0
    %773 = vmatpush.msra.mxu0 0.0
    %774 = vmatpush.msra.mxu0 0.0
    %775 = vmatpush.msra.mxu0 0.0
    %776 = vmatpush.msra.mxu0 0.0
    %777 = vmatpush.msra.mxu0 0.0
    %778 = vmatpush.msra.mxu0 0.0
    %v779 = vand.u32 %v152, 4294901760
    %780 = vmatpush.msra.mxu0 %v779
    %v781 = vand.u32 %v47, 4294901760
    %782 = vmatpush.msra.mxu0 %v781
    %v783 = vand.u32 %v55, 4294901760
    %v784 = vsub.f32 %v55, %v783
    %v785 = vand.u32 %v784, 4294901760
    %786 = vmatmul.f32.gmra.mxu0 %v785
    %v787 = vpop.f32.mrf.mxu0
    %v788 = vadd.f32 %v608, %v787
    %v789 = vand.u32 %v58, 4294901760
    %v790 = vsub.f32 %v58, %v789
    %v791 = vand.u32 %v790, 4294901760
    %792 = vmatmul.f32.gmra.mxu0 %v791
    %v793 = vpop.f32.mrf.mxu0
    %v794 = vadd.f32 %v613, %v793
    %v795 = vand.u32 %v61, 4294901760
    %v796 = vsub.f32 %v61, %v795
    %v797 = vand.u32 %v796, 4294901760
    %798 = vmatmul.f32.gmra.mxu0 %v797
    %v799 = vpop.f32.mrf.mxu0
    %v800 = vadd.f32 %v618, %v799
    %v801 = vand.u32 %v64, 4294901760
    %v802 = vsub.f32 %v64, %v801
    %v803 = vand.u32 %v802, 4294901760
    %804 = vmatmul.f32.gmra.mxu0 %v803
    %v805 = vpop.f32.mrf.mxu0
    %v806 = vadd.f32 %v623, %v805
    %v807 = vand.u32 %v67, 4294901760
    %v808 = vsub.f32 %v67, %v807
    %v809 = vand.u32 %v808, 4294901760
    %810 = vmatmul.f32.gmra.mxu0 %v809
    %v811 = vpop.f32.mrf.mxu0
    %v812 = vadd.f32 %v628, %v811
    %v813 = vand.u32 %v70, 4294901760
    %v814 = vsub.f32 %v70, %v813
    %v815 = vand.u32 %v814, 4294901760
    %816 = vmatmul.f32.gmra.mxu0 %v815
    %v817 = vpop.f32.mrf.mxu0
    %v818 = vadd.f32 %v633, %v817
    %v819 = vand.u32 %v73, 4294901760
    %v820 = vsub.f32 %v73, %v819
    %v821 = vand.u32 %v820, 4294901760
    %822 = vmatmul.f32.gmra.mxu0 %v821
    %v823 = vpop.f32.mrf.mxu0
    %v824 = vadd.f32 %v638, %v823
    %v825 = vand.u32 %v76, 4294901760
    %v826 = vsub.f32 %v76, %v825
    %v827 = vand.u32 %v826, 4294901760
    %828 = vmatmul.f32.gmra.mxu0 %v827
    %v829 = vpop.f32.mrf.mxu0
    %v830 = vadd.f32 %v643, %v829
    %v831 = vand.u32 %v79, 4294901760
    %v832 = vsub.f32 %v79, %v831
    %v833 = vand.u32 %v832, 4294901760
    %834 = vmatmul.f32.gmra.mxu0 %v833
    %v835 = vpop.f32.mrf.mxu0
    %v836 = vadd.f32 %v648, %v835
    %v837 = vand.u32 %v82, 4294901760
    %v838 = vsub.f32 %v82, %v837
    %v839 = vand.u32 %v838, 4294901760
    %840 = vmatmul.f32.gmra.mxu0 %v839
    %v841 = vpop.f32.mrf.mxu0
    %v842 = vadd.f32 %v653, %v841
    %v843 = vand.u32 %v85, 4294901760
    %v844 = vsub.f32 %v85, %v843
    %v845 = vand.u32 %v844, 4294901760
    %846 = vmatmul.f32.gmra.mxu0 %v845
    %v847 = vpop.f32.mrf.mxu0
    %v848 = vadd.f32 %v658, %v847
    %v849 = vand.u32 %v88, 4294901760
    %v850 = vsub.f32 %v88, %v849
    %v851 = vand.u32 %v850, 4294901760
    %852 = vmatmul.f32.gmra.mxu0 %v851
    %v853 = vpop.f32.mrf.mxu0
    %v854 = vadd.f32 %v663, %v853
    %v855 = vand.u32 %v91, 4294901760
    %v856 = vsub.f32 %v91, %v855
    %v857 = vand.u32 %v856, 4294901760
    %858 = vmatmul.f32.gmra.mxu0 %v857
    %v859 = vpop.f32.mrf.mxu0
    %v860 = vadd.f32 %v668, %v859
    %v861 = vand.u32 %v94, 4294901760
    %v862 = vsub.f32 %v94, %v861
    %v863 = vand.u32 %v862, 4294901760
    %864 = vmatmul.f32.gmra.mxu0 %v863
    %v865 = vpop.f32.mrf.mxu0
    %v866 = vadd.f32 %v673, %v865
    %v867 = vand.u32 %v97, 4294901760
    %v868 = vsub.f32 %v97, %v867
    %v869 = vand.u32 %v868, 4294901760
    %870 = vmatmul.f32.gmra.mxu0 %v869
    %v871 = vpop.f32.mrf.mxu0
    %v872 = vadd.f32 %v678, %v871
    %v873 = vand.u32 %v100, 4294901760
    %v874 = vsub.f32 %v100, %v873
    %v875 = vand.u32 %v874, 4294901760
    %876 = vmatmul.f32.gmra.mxu0 %v875
    %v877 = vpop.f32.mrf.mxu0
    %v878 = vadd.f32 %v683, %v877
    %v879 = vand.u32 %v103, 4294901760
    %v880 = vsub.f32 %v103, %v879
    %v881 = vand.u32 %v880, 4294901760
    %882 = vmatmul.f32.gmra.mxu0 %v881
    %v883 = vpop.f32.mrf.mxu0
    %v884 = vadd.f32 %v688, %v883
    %v885 = vand.u32 %v106, 4294901760
    %v886 = vsub.f32 %v106, %v885
    %v887 = vand.u32 %v886, 4294901760
    %888 = vmatmul.f32.gmra.mxu0 %v887
    %v889 = vpop.f32.mrf.mxu0
    %v890 = vadd.f32 %v693, %v889
    %v891 = vand.u32 %v109, 4294901760
    %v892 = vsub.f32 %v109, %v891
    %v893 = vand.u32 %v892, 4294901760
    %894 = vmatmul.f32.gmra.mxu0 %v893
    %v895 = vpop.f32.mrf.mxu0
    %v896 = vadd.f32 %v698, %v895
    %v897 = vand.u32 %v112, 4294901760
    %v898 = vsub.f32 %v112, %v897
    %v899 = vand.u32 %v898, 4294901760
    %900 = vmatmul.f32.gmra.mxu0 %v899
    %v901 = vpop.f32.mrf.mxu0
    %v902 = vadd.f32 %v703, %v901
    %v903 = vand.u32 %v115, 4294901760
    %v904 = vsub.f32 %v115, %v903
    %v905 = vand.u32 %v904, 4294901760
    %906 = vmatmul.f32.gmra.mxu0 %v905
    %v907 = vpop.f32.mrf.mxu0
    %v908 = vadd.f32 %v708, %v907
    %v909 = vand.u32 %v118, 4294901760
    %v910 = vsub.f32 %v118, %v909
    %v911 = vand.u32 %v910, 4294901760
    %912 = vmatmul.f32.gmra.mxu0 %v911
    %v913 = vpop.f32.mrf.mxu0
    %v914 = vadd.f32 %v713, %v913
    %v915 = vand.u32 %v121, 4294901760
    %v916 = vsub.f32 %v121, %v915
    %v917 = vand.u32 %v916, 4294901760
    %918 = vmatmul.f32.gmra.mxu0 %v917
    %v919 = vpop.f32.mrf.mxu0
    %v920 = vadd.f32 %v718, %v919
    %v921 = vand.u32 %v124, 4294901760
    %v922 = vsub.f32 %v124, %v921
    %v923 = vand.u32 %v922, 4294901760
    %924 = vmatmul.f32.gmra.mxu0 %v923
    %v925 = vpop.f32.mrf.mxu0
    %v926 = vadd.f32 %v723, %v925
    %v927 = vand.u32 %v127, 4294901760
    %v928 = vsub.f32 %v127, %v927
    %v929 = vand.u32 %v928, 4294901760
    %930 = vmatmul.f32.gmra.mxu0 %v929
    %v931 = vpop.f32.mrf.mxu0
    %v932 = vadd.f32 %v728, %v931
    %v933 = vand.u32 %v130, 4294901760
    %v934 = vsub.f32 %v130, %v933
    %v935 = vand.u32 %v934, 4294901760
    %936 = vmatmul.f32.gmra.mxu0 %v935
    %v937 = vpop.f32.mrf.mxu0
    %v938 = vadd.f32 %v733, %v937
    %v939 = vand.u32 %v133, 4294901760
    %v940 = vsub.f32 %v133, %v939
    %v941 = vand.u32 %v940, 4294901760
    %942 = vmatmul.f32.gmra.mxu0 %v941
    %v943 = vpop.f32.mrf.mxu0
    %v944 = vadd.f32 %v738, %v943
    %v945 = vand.u32 %v136, 4294901760
    %v946 = vsub.f32 %v136, %v945
    %v947 = vand.u32 %v946, 4294901760
    %948 = vmatmul.f32.gmra.mxu0 %v947
    %v949 = vpop.f32.mrf.mxu0
    %v950 = vadd.f32 %v743, %v949
    %v951 = vand.u32 %v139, 4294901760
    %v952 = vsub.f32 %v139, %v951
    %v953 = vand.u32 %v952, 4294901760
    %954 = vmatmul.f32.gmra.mxu0 %v953
    %v955 = vpop.f32.mrf.mxu0
    %v956 = vadd.f32 %v748, %v955
    %v957 = vand.u32 %v142, 4294901760
    %v958 = vsub.f32 %v142, %v957
    %v959 = vand.u32 %v958, 4294901760
    %960 = vmatmul.f32.gmra.mxu0 %v959
    %v961 = vpop.f32.mrf.mxu0
    %v962 = vadd.f32 %v753, %v961
    %v963 = vand.u32 %v145, 4294901760
    %v964 = vsub.f32 %v145, %v963
    %v965 = vand.u32 %v964, 4294901760
    %966 = vmatmul.f32.gmra.mxu0 %v965
    %v967 = vpop.f32.mrf.mxu0
    %v968 = vadd.f32 %v758, %v967
    %v969 = vand.u32 %v148, 4294901760
    %v970 = vsub.f32 %v148, %v969
    %v971 = vand.u32 %v970, 4294901760
    %972 = vmatmul.f32.gmra.mxu0 %v971
    %v973 = vpop.f32.mrf.mxu0
    %v974 = vadd.f32 %v763, %v973
    %975 = vdwg.mxu0
    %976 = vmatpush.msra.mxu0 0.0
    %977 = vmatpush.msra.mxu0 0.0
    %978 = vmatpush.msra.mxu0 0.0
    %979 = vmatpush.msra.mxu0 0.0
    %980 = vmatpush.msra.mxu0 0.0
    %981 = vmatpush.msra.mxu0 0.0
    %982 = vmatpush.msra.mxu0 0.0
    %983 = vmatpush.msra.mxu0 0.0
    %984 = vmatpush.msra.mxu0 0.0
    %985 = vmatpush.msra.mxu0 0.0
    %986 = vmatpush.msra.mxu0 0.0
    %987 = vmatpush.msra.mxu0 0.0
    %988 = vmatpush.msra.mxu0 0.0
    %989 = vmatpush.msra.mxu0 0.0
    %v990 = vand.u32 %v152, 4294901760
    %v991 = vsub.f32 %v152, %v990
    %v992 = vand.u32 %v991, 4294901760
    %993 = vmatpush.msra.mxu0 %v992
    %v994 = vand.u32 %v47, 4294901760
    %v995 = vsub.f32 %v47, %v994
    %v996 = vand.u32 %v995, 4294901760
    %997 = vmatpush.msra.mxu0 %v996
    %v998 = vand.u32 %v55, 4294901760
    %999 = vmatmul.f32.gmra.mxu0 %v998
    %v1000 = vpop.f32.mrf.mxu0
    %v1001 = vadd.f32 %v788, %v1000
    %v1002 = vand.u32 %v58, 4294901760
    %1003 = vmatmul.f32.gmra.mxu0 %v1002
    %v1004 = vpop.f32.mrf.mxu0
    %v1005 = vadd.f32 %v794, %v1004
    %v1006 = vand.u32 %v61, 4294901760
    %1007 = vmatmul.f32.gmra.mxu0 %v1006
    %v1008 = vpop.f32.mrf.mxu0
    %v1009 = vadd.f32 %v800, %v1008
    %v1010 = vand.u32 %v64, 4294901760
    %1011 = vmatmul.f32.gmra.mxu0 %v1010
    %v1012 = vpop.f32.mrf.mxu0
    %v1013 = vadd.f32 %v806, %v1012
    %v1014 = vand.u32 %v67, 4294901760
    %1015 = vmatmul.f32.gmra.mxu0 %v1014
    %v1016 = vpop.f32.mrf.mxu0
    %v1017 = vadd.f32 %v812, %v1016
    %v1018 = vand.u32 %v70, 4294901760
    %1019 = vmatmul.f32.gmra.mxu0 %v1018
    %v1020 = vpop.f32.mrf.mxu0
    %v1021 = vadd.f32 %v818, %v1020
    %v1022 = vand.u32 %v73, 4294901760
    %1023 = vmatmul.f32.gmra.mxu0 %v1022
    %v1024 = vpop.f32.mrf.mxu0
    %v1025 = vadd.f32 %v824, %v1024
    %v1026 = vand.u32 %v76, 4294901760
    %1027 = vmatmul.f32.gmra.mxu0 %v1026
    %v1028 = vpop.f32.mrf.mxu0
    %v1029 = vadd.f32 %v830, %v1028
    %v1030 = vand.u32 %v79, 4294901760
    %1031 = vmatmul.f32.gmra.mxu0 %v1030
    %v1032 = vpop.f32.mrf.mxu0
    %v1033 = vadd.f32 %v836, %v1032
    %v1034 = vand.u32 %v82, 4294901760
    %1035 = vmatmul.f32.gmra.mxu0 %v1034
    %v1036 = vpop.f32.mrf.mxu0
    %v1037 = vadd.f32 %v842, %v1036
    %v1038 = vand.u32 %v85, 4294901760
    %1039 = vmatmul.f32.gmra.mxu0 %v1038
    %v1040 = vpop.f32.mrf.mxu0
    %v1041 = vadd.f32 %v848, %v1040
    %v1042 = vand.u32 %v88, 4294901760
    %1043 = vmatmul.f32.gmra.mxu0 %v1042
    %v1044 = vpop.f32.mrf.mxu0
    %v1045 = vadd.f32 %v854, %v1044
    %v1046 = vand.u32 %v91, 4294901760
    %1047 = vmatmul.f32.gmra.mxu0 %v1046
    %v1048 = vpop.f32.mrf.mxu0
    %v1049 = vadd.f32 %v860, %v1048
    %v1050 = vand.u32 %v94, 4294901760
    %1051 = vmatmul.f32.gmra.mxu0 %v1050
    %v1052 = vpop.f32.mrf.mxu0
    %v1053 = vadd.f32 %v866, %v1052
    %v1054 = vand.u32 %v97, 4294901760
    %1055 = vmatmul.f32.gmra.mxu0 %v1054
    %v1056 = vpop.f32.mrf.mxu0
    %v1057 = vadd.f32 %v872, %v1056
    %v1058 = vand.u32 %v100, 4294901760
    %1059 = vmatmul.f32.gmra.mxu0 %v1058
    %v1060 = vpop.f32.mrf.mxu0
    %v1061 = vadd.f32 %v878, %v1060
    %v1062 = vand.u32 %v103, 4294901760
    %1063 = vmatmul.f32.gmra.mxu0 %v1062
    %v1064 = vpop.f32.mrf.mxu0
    %v1065 = vadd.f32 %v884, %v1064
    %v1066 = vand.u32 %v106, 4294901760
    %1067 = vmatmul.f32.gmra.mxu0 %v1066
    %v1068 = vpop.f32.mrf.mxu0
    %v1069 = vadd.f32 %v890, %v1068
    %v1070 = vand.u32 %v109, 4294901760
    %1071 = vmatmul.f32.gmra.mxu0 %v1070
    %v1072 = vpop.f32.mrf.mxu0
    %v1073 = vadd.f32 %v896, %v1072
    %v1074 = vand.u32 %v112, 4294901760
    %1075 = vmatmul.f32.gmra.mxu0 %v1074
    %v1076 = vpop.f32.mrf.mxu0
    %v1077 = vadd.f32 %v902, %v1076
    %v1078 = vand.u32 %v115, 4294901760
    %1079 = vmatmul.f32.gmra.mxu0 %v1078
    %v1080 = vpop.f32.mrf.mxu0
    %v1081 = vadd.f32 %v908, %v1080
    %v1082 = vand.u32 %v118, 4294901760
    %1083 = vmatmul.f32.gmra.mxu0 %v1082
    %v1084 = vpop.f32.mrf.mxu0
    %v1085 = vadd.f32 %v914, %v1084
    %v1086 = vand.u32 %v121, 4294901760
    %1087 = vmatmul.f32.gmra.mxu0 %v1086
    %v1088 = vpop.f32.mrf.mxu0
    %v1089 = vadd.f32 %v920, %v1088
    %v1090 = vand.u32 %v124, 4294901760
    %1091 = vmatmul.f32.gmra.mxu0 %v1090
    %v1092 = vpop.f32.mrf.mxu0
    %v1093 = vadd.f32 %v926, %v1092
    %v1094 = vand.u32 %v127, 4294901760
    %1095 = vmatmul.f32.gmra.mxu0 %v1094
    %v1096 = vpop.f32.mrf.mxu0
    %v1097 = vadd.f32 %v932, %v1096
    %v1098 = vand.u32 %v130, 4294901760
    %1099 = vmatmul.f32.gmra.mxu0 %v1098
    %v1100 = vpop.f32.mrf.mxu0
    %v1101 = vadd.f32 %v938, %v1100
    %v1102 = vand.u32 %v133, 4294901760
    %1103 = vmatmul.f32.gmra.mxu0 %v1102
    %v1104 = vpop.f32.mrf.mxu0
    %v1105 = vadd.f32 %v944, %v1104
    %v1106 = vand.u32 %v136, 4294901760
    %1107 = vmatmul.f32.gmra.mxu0 %v1106
    %v1108 = vpop.f32.mrf.mxu0
    %v1109 = vadd.f32 %v950, %v1108
    %v1110 = vand.u32 %v139, 4294901760
    %1111 = vmatmul.f32.gmra.mxu0 %v1110
    %v1112 = vpop.f32.mrf.mxu0
    %v1113 = vadd.f32 %v956, %v1112
    %v1114 = vand.u32 %v142, 4294901760
    %1115 = vmatmul.f32.gmra.mxu0 %v1114
    %v1116 = vpop.f32.mrf.mxu0
    %v1117 = vadd.f32 %v962, %v1116
    %v1118 = vand.u32 %v145, 4294901760
    %1119 = vmatmul.f32.gmra.mxu0 %v1118
    %v1120 = vpop.f32.mrf.mxu0
    %v1121 = vadd.f32 %v968, %v1120
    %v1122 = vand.u32 %v148, 4294901760
    %1123 = vmatmul.f32.gmra.mxu0 %v1122
    %v1124 = vpop.f32.mrf.mxu0
    %v1125 = vadd.f32 %v974, %v1124
    %1126 = vdwg.mxu0
    %1127 = vmatpush.msra.mxu0 0.0
    %1128 = vmatpush.msra.mxu0 0.0
    %1129 = vmatpush.msra.mxu0 0.0
    %1130 = vmatpush.msra.mxu0 0.0
    %1131 = vmatpush.msra.mxu0 0.0
    %1132 = vmatpush.msra.mxu0 0.0
    %1133 = vmatpush.msra.mxu0 0.0
    %1134 = vmatpush.msra.mxu0 0.0
    %1135 = vmatpush.msra.mxu0 0.0
    %1136 = vmatpush.msra.mxu0 0.0
    %1137 = vmatpush.msra.mxu0 0.0
    %1138 = vmatpush.msra.mxu0 0.0
    %1139 = vmatpush.msra.mxu0 0.0
    %1140 = vmatpush.msra.mxu0 0.0
    %v1141 = vand.u32 %v152, 4294901760
    %1142 = vmatpush.msra.mxu0 %v1141
    %v1143 = vand.u32 %v47, 4294901760
    %1144 = vmatpush.msra.mxu0 %v1143
    %v1145 = vand.u32 %v55, 4294901760
    %1146 = vmatmul.f32.gmra.mxu0 %v1145
    %v1147 = vpop.f32.mrf.mxu0
    %v1148 = vadd.f32 %v1001, %v1147
    %v1149 = vand.u32 %v58, 4294901760
    %1150 = vmatmul.f32.gmra.mxu0 %v1149
    %v1151 = vpop.f32.mrf.mxu0
    %v1152 = vadd.f32 %v1005, %v1151
    %v1153 = vand.u32 %v61, 4294901760
    %1154 = vmatmul.f32.gmra.mxu0 %v1153
    %v1155 = vpop.f32.mrf.mxu0
    %v1156 = vadd.f32 %v1009, %v1155
    %v1157 = vand.u32 %v64, 4294901760
    %1158 = vmatmul.f32.gmra.mxu0 %v1157
    %v1159 = vpop.f32.mrf.mxu0
    %v1160 = vadd.f32 %v1013, %v1159
    %v1161 = vand.u32 %v67, 4294901760
    %1162 = vmatmul.f32.gmra.mxu0 %v1161
    %v1163 = vpop.f32.mrf.mxu0
    %v1164 = vadd.f32 %v1017, %v1163
    %v1165 = vand.u32 %v70, 4294901760
    %1166 = vmatmul.f32.gmra.mxu0 %v1165
    %v1167 = vpop.f32.mrf.mxu0
    %v1168 = vadd.f32 %v1021, %v1167
    %v1169 = vand.u32 %v73, 4294901760
    %1170 = vmatmul.f32.gmra.mxu0 %v1169
    %v1171 = vpop.f32.mrf.mxu0
    %v1172 = vadd.f32 %v1025, %v1171
    %v1173 = vand.u32 %v76, 4294901760
    %1174 = vmatmul.f32.gmra.mxu0 %v1173
    %v1175 = vpop.f32.mrf.mxu0
    %v1176 = vadd.f32 %v1029, %v1175
    %v1177 = vand.u32 %v79, 4294901760
    %1178 = vmatmul.f32.gmra.mxu0 %v1177
    %v1179 = vpop.f32.mrf.mxu0
    %v1180 = vadd.f32 %v1033, %v1179
    %v1181 = vand.u32 %v82, 4294901760
    %1182 = vmatmul.f32.gmra.mxu0 %v1181
    %v1183 = vpop.f32.mrf.mxu0
    %v1184 = vadd.f32 %v1037, %v1183
    %v1185 = vand.u32 %v85, 4294901760
    %1186 = vmatmul.f32.gmra.mxu0 %v1185
    %v1187 = vpop.f32.mrf.mxu0
    %v1188 = vadd.f32 %v1041, %v1187
    %v1189 = vand.u32 %v88, 4294901760
    %1190 = vmatmul.f32.gmra.mxu0 %v1189
    %v1191 = vpop.f32.mrf.mxu0
    %v1192 = vadd.f32 %v1045, %v1191
    %v1193 = vand.u32 %v91, 4294901760
    %1194 = vmatmul.f32.gmra.mxu0 %v1193
    %v1195 = vpop.f32.mrf.mxu0
    %v1196 = vadd.f32 %v1049, %v1195
    %v1197 = vand.u32 %v94, 4294901760
    %1198 = vmatmul.f32.gmra.mxu0 %v1197
    %v1199 = vpop.f32.mrf.mxu0
    %v1200 = vadd.f32 %v1053, %v1199
    %v1201 = vand.u32 %v97, 4294901760
    %1202 = vmatmul.f32.gmra.mxu0 %v1201
    %v1203 = vpop.f32.mrf.mxu0
    %v1204 = vadd.f32 %v1057, %v1203
    %v1205 = vand.u32 %v100, 4294901760
    %1206 = vmatmul.f32.gmra.mxu0 %v1205
    %v1207 = vpop.f32.mrf.mxu0
    %v1208 = vadd.f32 %v1061, %v1207
    %v1209 = vand.u32 %v103, 4294901760
    %1210 = vmatmul.f32.gmra.mxu0 %v1209
    %v1211 = vpop.f32.mrf.mxu0
    %v1212 = vadd.f32 %v1065, %v1211
    %v1213 = vand.u32 %v106, 4294901760
    %1214 = vmatmul.f32.gmra.mxu0 %v1213
    %v1215 = vpop.f32.mrf.mxu0
    %v1216 = vadd.f32 %v1069, %v1215
    %v1217 = vand.u32 %v109, 4294901760
    %1218 = vmatmul.f32.gmra.mxu0 %v1217
    %v1219 = vpop.f32.mrf.mxu0
    %v1220 = vadd.f32 %v1073, %v1219
    %v1221 = vand.u32 %v112, 4294901760
    %1222 = vmatmul.f32.gmra.mxu0 %v1221
    %v1223 = vpop.f32.mrf.mxu0
    %v1224 = vadd.f32 %v1077, %v1223
    %v1225 = vand.u32 %v115, 4294901760
    %1226 = vmatmul.f32.gmra.mxu0 %v1225
    %v1227 = vpop.f32.mrf.mxu0
    %v1228 = vadd.f32 %v1081, %v1227
    %v1229 = vand.u32 %v118, 4294901760
    %1230 = vmatmul.f32.gmra.mxu0 %v1229
    %v1231 = vpop.f32.mrf.mxu0
    %v1232 = vadd.f32 %v1085, %v1231
    %v1233 = vand.u32 %v121, 4294901760
    %1234 = vmatmul.f32.gmra.mxu0 %v1233
    %v1235 = vpop.f32.mrf.mxu0
    %v1236 = vadd.f32 %v1089, %v1235
    %v1237 = vand.u32 %v124, 4294901760
    %1238 = vmatmul.f32.gmra.mxu0 %v1237
    %v1239 = vpop.f32.mrf.mxu0
    %v1240 = vadd.f32 %v1093, %v1239
    %v1241 = vand.u32 %v127, 4294901760
    %1242 = vmatmul.f32.gmra.mxu0 %v1241
    %v1243 = vpop.f32.mrf.mxu0
    %v1244 = vadd.f32 %v1097, %v1243
    %v1245 = vand.u32 %v130, 4294901760
    %1246 = vmatmul.f32.gmra.mxu0 %v1245
    %v1247 = vpop.f32.mrf.mxu0
    %v1248 = vadd.f32 %v1101, %v1247
    %v1249 = vand.u32 %v133, 4294901760
    %1250 = vmatmul.f32.gmra.mxu0 %v1249
    %v1251 = vpop.f32.mrf.mxu0
    %v1252 = vadd.f32 %v1105, %v1251
    %v1253 = vand.u32 %v136, 4294901760
    %1254 = vmatmul.f32.gmra.mxu0 %v1253
    %v1255 = vpop.f32.mrf.mxu0
    %v1256 = vadd.f32 %v1109, %v1255
    %v1257 = vand.u32 %v139, 4294901760
    %1258 = vmatmul.f32.gmra.mxu0 %v1257
    %v1259 = vpop.f32.mrf.mxu0
    %v1260 = vadd.f32 %v1113, %v1259
    %v1261 = vand.u32 %v142, 4294901760
    %1262 = vmatmul.f32.gmra.mxu0 %v1261
    %v1263 = vpop.f32.mrf.mxu0
    %v1264 = vadd.f32 %v1117, %v1263
    %v1265 = vand.u32 %v145, 4294901760
    %1266 = vmatmul.f32.gmra.mxu0 %v1265
    %v1267 = vpop.f32.mrf.mxu0
    %v1268 = vadd.f32 %v1121, %v1267
    %v1269 = vand.u32 %v148, 4294901760
    %1270 = vmatmul.f32.gmra.mxu0 %v1269
    %v1271 = vpop.f32.mrf.mxu0
    %v1272 = vadd.f32 %v1125, %v1271
    %1273 = vdwg.mxu0
    %v1274 = vand.u32 2147483647, %v1148
    %vm1275 = vcmp.le.f32.partialorder %v1274, 0.7853982
    %vm1276 = vcmp.lt.s32.totalorder %v1148, 0
    %v1277 = vand.u32 %v1148, 2139095040
    %v1278 = vshrl.u32 %v1277, 23
    %v1279 = vsub.s32 %v1278, 127
    %v1280 = vand.u32 2147483647, %v1148
    %v1281 = vand.u32 %v1280, 8388607
    %v1282 = vor.u32 %v1281, 8388608
    %v1283 = vsub.s32 0, %v1282
    %v1284 = vadd.s32 %v1279, 1
    %vm1285 = vcmp.gt.s32.totalorder %v1284, 0
    %v1286 = vsel %vm1285, %v1284, 0
    %v1287 = vshrl.u32 %v1286, 5
    %v1288 = vand.u32 %v1286, 31
    %v1289 = vsub.s32 32, %v1288
    %v1290 = vshrl.u32 683565275, %v1289
    %v1291 = vshll.u32 683565275, %v1288
    %v1292 = vshrl.u32 2475754826, %v1289
    %v1293 = vor.u32 %v1291, %v1292
    %v1294 = vshll.u32 2475754826, %v1288
    %v1295 = vshrl.u32 2131351028, %v1289
    %v1296 = vor.u32 %v1294, %v1295
    %v1297 = vshll.u32 2131351028, %v1288
    %v1298 = vshrl.u32 2102212464, %v1289
    %v1299 = vor.u32 %v1297, %v1298
    %v1300 = vshll.u32 2102212464, %v1288
    %v1301 = vshrl.u32 920167782, %v1289
    %v1302 = vor.u32 %v1300, %v1301
    %v1303 = vshll.u32 920167782, %v1288
    %v1304 = vshrl.u32 1326507024, %v1289
    %v1305 = vor.u32 %v1303, %v1304
    %vm1306 = vcmp.lt.s32.totalorder %v1287, 1
    %vm1307 = vcmp.lt.s32.totalorder %v1287, 2
    %vm1308 = vcmp.lt.s32.totalorder %v1287, 3
    %vm1309 = vcmp.lt.s32.totalorder %v1287, 4
    %v1310 = vsel %vm1306, %v1290, %v1293
    %v1311 = vsel %vm1309, %v1299, 2102212464
    %v1312 = vsel %vm1308, %v1296, %v1311
    %v1313 = vsel %vm1307, %v1310, %v1312
    %v1314 = vsel %vm1306, %v1293, %v1296
    %v1315 = vsel %vm1309, %v1302, 920167782
    %v1316 = vsel %vm1308, %v1299, %v1315
    %v1317 = vsel %vm1307, %v1314, %v1316
    %v1318 = vsel %vm1306, %v1296, %v1299
    %v1319 = vsel %vm1309, %v1305, 1326507024
    %v1320 = vsel %vm1308, %v1302, %v1319
    %v1321 = vsel %vm1307, %v1318, %v1320
    %v1322 = vshll.u32 %v1282, 8
    %v1323 = vand.u32 %v1322, 65535
    %v1324 = vshrl.u32 %v1322, 16
    %v1325 = vand.u32 %v1321, 65535
    %v1326 = vshrl.u32 %v1321, 16
    %v1327 = vmul.u32 %v1323, %v1325
    %v1328 = vmul.u32 %v1323, %v1326
    %v1329 = vmul.u32 %v1324, %v1325
    %v1330 = vmul.u32 %v1324, %v1326
    %v1331 = vshll.u32 %v1328, 16
    %v1332 = vshrl.u32 %v1328, 16
    %v1333 = vshll.u32 %v1329, 16
    %v1334 = vshrl.u32 %v1329, 16
    %vm1335 = vc.u32 %v1327, %v1331
    %v1336 = vsel %vm1335, 1, 0
    %v1337 = vadd.s32 %v1327, %v1331
    %v1338 = vadd.s32 %v1330, %v1336
    %vm1339 = vc.u32 %v1337, %v1333
    %v1340 = vsel %vm1339, 1, 0
    %v1341 = vadd.s32 %v1337, %v1333
    %v1342 = vadd.s32 %v1338, %v1340
    %v1343 = vadd.s32 %v1342, %v1332
    %v1344 = vadd.s32 %v1343, %v1334
    %v1345 = vand.u32 %v1322, 65535
    %v1346 = vshrl.u32 %v1322, 16
    %v1347 = vand.u32 %v1317, 65535
    %v1348 = vshrl.u32 %v1317, 16
    %v1349 = vmul.u32 %v1345, %v1347
    %v1350 = vmul.u32 %v1345, %v1348
    %v1351 = vmul.u32 %v1346, %v1347
    %v1352 = vmul.u32 %v1346, %v1348
    %v1353 = vshll.u32 %v1350, 16
    %v1354 = vshrl.u32 %v1350, 16
    %v1355 = vshll.u32 %v1351, 16
    %v1356 = vshrl.u32 %v1351, 16
    %vm1357 = vc.u32 %v1349, %v1353
    %v1358 = vsel %vm1357, 1, 0
    %v1359 = vadd.s32 %v1349, %v1353
    %v1360 = vadd.s32 %v1352, %v1358
    %vm1361 = vc.u32 %v1359, %v1355
    %v1362 = vsel %vm1361, 1, 0
    %v1363 = vadd.s32 %v1359, %v1355
    %v1364 = vadd.s32 %v1360, %v1362
    %v1365 = vadd.s32 %v1364, %v1354
    %v1366 = vadd.s32 %v1365, %v1356
    %v1367 = vmul.u32 %v1322, %v1313
    %v1368 = vadd.s32 %v1344, %v1363
    %vm1369 = vc.u32 %v1344, %v1363
    %v1370 = vadd.s32 %v1366, 1
    %v1371 = vsel %vm1369, %v1370, %v1366
    %v1372 = vadd.s32 %v1367, %v1371
    %v1373 = vadd.s32 %v1372, 536870912
    %v1374 = vshrl.u32 %v1373, 30
    %v1375 = vshll.u32 %v1374, 30
    %v1376 = vsub.s32 %v1372, %v1375
    %vm1377 = vcmp.lt.s32.totalorder %v1376, 0
    %v1378 = vsub.s32 0, %v1376
    %v1379 = vsel %vm1377, %v1378, %v1376
    %v1380 = vclz %v1379
    %v1381 = vsub.s32 %v1380, 2
    %vm1382 = vcmp.gt.s32.totalorder 0, %v1381
    %v1383 = vsel %vm1382, 0, %v1381
    %v1384 = vsub.s32 32, %v1383
    %v1385 = vshll.u32 %v1376, %v1383
    %v1386 = vshrl.u32 %v1368, %v1384
    %v1387 = vor.u32 %v1385, %v1386
    %v1388 = vsub.s32 4294967266, %v1383
    %v1389 = vadd.s32 %v1388, 127
    %v1390 = vshll.u32 %v1389, 23
    %v1391 = vor.u32 4788187, %v1390
    %v1392 = vand.u32 2147483647, %v1391
    %v1394 = vcvt.s32.f32 %v1387
    %v1395 = vmul.f32 %v1394, %v1392
    %v1396 = vxor.u32 %v1395, 2147483648
    %v1397 = vsel %vm1276, %v1396, %v1395
    %v1398 = vsub.s32 4, %v1374
    %v1399 = vsel %vm1276, %v1398, %v1374
    %v1400 = vsel %vm1275, %v1148, %v1397
    %v1401 = vsel %vm1275, 0, %v1399
    %v1402 = vmul.f32 %v1400, %v1400
    %v1403 = vmul.f32 %v1402, -0.001358992
    %v1404 = vadd.f32 %v1403, 0.041655596
    %v1405 = vmul.f32 %v1402, %v1404
    %v1406 = vadd.f32 %v1405, -0.4999988
    %v1407 = vmul.f32 %v1402, %v1406
    %v1408 = vadd.f32 1.0, %v1407
    %v1409 = vmul.f32 %v1400, %v1400
    %v1410 = vmul.f32 %v1409, -0.00019511016
    %v1411 = vadd.f32 %v1410, 0.008332121
    %v1412 = vmul.f32 %v1409, %v1411
    %v1413 = vadd.f32 %v1412, -0.16666654
    %v1414 = vmul.f32 %v1409, %v1413
    %v1415 = vadd.f32 %v1414, 1.0
    %v1416 = vmul.f32 %v1415, %v1400
    %vm1417 = vweird.f32 %v1148
    %v1418 = vadd.s32 %v1401, 3
    %v1419 = vand.u32 %v1418, 3
    %vm1420 = vcmp.lt.s32.totalorder %v1419, 2
    %vm1421 = vcmp.eq.s32.totalorder %v1419, 0
    %v1422 = vxor.u32 %v1416, 2147483648
    %v1423 = vsel %vm1421, %v1408, %v1422
    %vm1424 = vcmp.eq.s32.totalorder %v1419, 2
    %v1425 = vxor.u32 %v1408, 2147483648
    %v1426 = vsel %vm1424, %v1425, %v1416
    %v1427 = vsel %vm1420, %v1423, %v1426
    %v1428 = vsel %vm1417, nan, %v1427
    %v1429 = vand.u32 2147483647, %v1152
    %vm1430 = vcmp.le.f32.partialorder %v1429, 0.7853982
    %vm1431 = vcmp.lt.s32.totalorder %v1152, 0
    %v1432 = vand.u32 %v1152, 2139095040
    %v1433 = vshrl.u32 %v1432, 23
    %v1434 = vsub.s32 %v1433, 127
    %v1435 = vand.u32 2147483647, %v1152
    %v1436 = vand.u32 %v1435, 8388607
    %v1437 = vor.u32 %v1436, 8388608
    %v1438 = vsub.s32 0, %v1437
    %v1439 = vadd.s32 %v1434, 1
    %vm1440 = vcmp.gt.s32.totalorder %v1439, 0
    %v1441 = vsel %vm1440, %v1439, 0
    %v1442 = vshrl.u32 %v1441, 5
    %v1443 = vand.u32 %v1441, 31
    %v1444 = vsub.s32 32, %v1443
    %v1445 = vshrl.u32 683565275, %v1444
    %v1446 = vshll.u32 683565275, %v1443
    %v1447 = vshrl.u32 2475754826, %v1444
    %v1448 = vor.u32 %v1446, %v1447
    %v1449 = vshll.u32 2475754826, %v1443
    %v1450 = vshrl.u32 2131351028, %v1444
    %v1451 = vor.u32 %v1449, %v1450
    %v1452 = vshll.u32 2131351028, %v1443
    %v1453 = vshrl.u32 2102212464, %v1444
    %v1454 = vor.u32 %v1452, %v1453
    %v1455 = vshll.u32 2102212464, %v1443
    %v1456 = vshrl.u32 920167782, %v1444
    %v1457 = vor.u32 %v1455, %v1456
    %v1458 = vshll.u32 920167782, %v1443
    %v1459 = vshrl.u32 1326507024, %v1444
    %v1460 = vor.u32 %v1458, %v1459
    %vm1461 = vcmp.lt.s32.totalorder %v1442, 1
    %vm1462 = vcmp.lt.s32.totalorder %v1442, 2
    %vm1463 = vcmp.lt.s32.totalorder %v1442, 3
    %vm1464 = vcmp.lt.s32.totalorder %v1442, 4
    %v1465 = vsel %vm1461, %v1445, %v1448
    %v1466 = vsel %vm1464, %v1454, 2102212464
    %v1467 = vsel %vm1463, %v1451, %v1466
    %v1468 = vsel %vm1462, %v1465, %v1467
    %v1469 = vsel %vm1461, %v1448, %v1451
    %v1470 = vsel %vm1464, %v1457, 920167782
    %v1471 = vsel %vm1463, %v1454, %v1470
    %v1472 = vsel %vm1462, %v1469, %v1471
    %v1473 = vsel %vm1461, %v1451, %v1454
    %v1474 = vsel %vm1464, %v1460, 1326507024
    %v1475 = vsel %vm1463, %v1457, %v1474
    %v1476 = vsel %vm1462, %v1473, %v1475
    %v1477 = vshll.u32 %v1437, 8
    %v1478 = vand.u32 %v1477, 65535
    %v1479 = vshrl.u32 %v1477, 16
    %v1480 = vand.u32 %v1476, 65535
    %v1481 = vshrl.u32 %v1476, 16
    %v1482 = vmul.u32 %v1478, %v1480
    %v1483 = vmul.u32 %v1478, %v1481
    %v1484 = vmul.u32 %v1479, %v1480
    %v1485 = vmul.u32 %v1479, %v1481
    %v1486 = vshll.u32 %v1483, 16
    %v1487 = vshrl.u32 %v1483, 16
    %v1488 = vshll.u32 %v1484, 16
    %v1489 = vshrl.u32 %v1484, 16
    %vm1490 = vc.u32 %v1482, %v1486
    %v1491 = vsel %vm1490, 1, 0
    %v1492 = vadd.s32 %v1482, %v1486
    %v1493 = vadd.s32 %v1485, %v1491
    %vm1494 = vc.u32 %v1492, %v1488
    %v1495 = vsel %vm1494, 1, 0
    %v1496 = vadd.s32 %v1492, %v1488
    %v1497 = vadd.s32 %v1493, %v1495
    %v1498 = vadd.s32 %v1497, %v1487
    %v1499 = vadd.s32 %v1498, %v1489
    %v1500 = vand.u32 %v1477, 65535
    %v1501 = vshrl.u32 %v1477, 16
    %v1502 = vand.u32 %v1472, 65535
    %v1503 = vshrl.u32 %v1472, 16
    %v1504 = vmul.u32 %v1500, %v1502
    %v1505 = vmul.u32 %v1500, %v1503
    %v1506 = vmul.u32 %v1501, %v1502
    %v1507 = vmul.u32 %v1501, %v1503
    %v1508 = vshll.u32 %v1505, 16
    %v1509 = vshrl.u32 %v1505, 16
    %v1510 = vshll.u32 %v1506, 16
    %v1511 = vshrl.u32 %v1506, 16
    %vm1512 = vc.u32 %v1504, %v1508
    %v1513 = vsel %vm1512, 1, 0
    %v1514 = vadd.s32 %v1504, %v1508
    %v1515 = vadd.s32 %v1507, %v1513
    %vm1516 = vc.u32 %v1514, %v1510
    %v1517 = vsel %vm1516, 1, 0
    %v1518 = vadd.s32 %v1514, %v1510
    %v1519 = vadd.s32 %v1515, %v1517
    %v1520 = vadd.s32 %v1519, %v1509
    %v1521 = vadd.s32 %v1520, %v1511
    %v1522 = vmul.u32 %v1477, %v1468
    %v1523 = vadd.s32 %v1499, %v1518
    %vm1524 = vc.u32 %v1499, %v1518
    %v1525 = vadd.s32 %v1521, 1
    %v1526 = vsel %vm1524, %v1525, %v1521
    %v1527 = vadd.s32 %v1522, %v1526
    %v1528 = vadd.s32 %v1527, 536870912
    %v1529 = vshrl.u32 %v1528, 30
    %v1530 = vshll.u32 %v1529, 30
    %v1531 = vsub.s32 %v1527, %v1530
    %vm1532 = vcmp.lt.s32.totalorder %v1531, 0
    %v1533 = vsub.s32 0, %v1531
    %v1534 = vsel %vm1532, %v1533, %v1531
    %v1535 = vclz %v1534
    %v1536 = vsub.s32 %v1535, 2
    %vm1537 = vcmp.gt.s32.totalorder 0, %v1536
    %v1538 = vsel %vm1537, 0, %v1536
    %v1539 = vsub.s32 32, %v1538
    %v1540 = vshll.u32 %v1531, %v1538
    %v1541 = vshrl.u32 %v1523, %v1539
    %v1542 = vor.u32 %v1540, %v1541
    %v1543 = vsub.s32 4294967266, %v1538
    %v1544 = vadd.s32 %v1543, 127
    %v1545 = vshll.u32 %v1544, 23
    %v1546 = vor.u32 4788187, %v1545
    %v1547 = vand.u32 2147483647, %v1546
    %v1549 = vcvt.s32.f32 %v1542
    %v1550 = vmul.f32 %v1549, %v1547
    %v1551 = vxor.u32 %v1550, 2147483648
    %v1552 = vsel %vm1431, %v1551, %v1550
    %v1553 = vsub.s32 4, %v1529
    %v1554 = vsel %vm1431, %v1553, %v1529
    %v1555 = vsel %vm1430, %v1152, %v1552
    %v1556 = vsel %vm1430, 0, %v1554
    %v1557 = vmul.f32 %v1555, %v1555
    %v1558 = vmul.f32 %v1557, -0.001358992
    %v1559 = vadd.f32 %v1558, 0.041655596
    %v1560 = vmul.f32 %v1557, %v1559
    %v1561 = vadd.f32 %v1560, -0.4999988
    %v1562 = vmul.f32 %v1557, %v1561
    %v1563 = vadd.f32 1.0, %v1562
    %v1564 = vmul.f32 %v1555, %v1555
    %v1565 = vmul.f32 %v1564, -0.00019511016
    %v1566 = vadd.f32 %v1565, 0.008332121
    %v1567 = vmul.f32 %v1564, %v1566
    %v1568 = vadd.f32 %v1567, -0.16666654
    %v1569 = vmul.f32 %v1564, %v1568
    %v1570 = vadd.f32 %v1569, 1.0
    %v1571 = vmul.f32 %v1570, %v1555
    %vm1572 = vweird.f32 %v1152
    %v1573 = vadd.s32 %v1556, 3
    %v1574 = vand.u32 %v1573, 3
    %vm1575 = vcmp.lt.s32.totalorder %v1574, 2
    %vm1576 = vcmp.eq.s32.totalorder %v1574, 0
    %v1577 = vxor.u32 %v1571, 2147483648
    %v1578 = vsel %vm1576, %v1563, %v1577
    %vm1579 = vcmp.eq.s32.totalorder %v1574, 2
    %v1580 = vxor.u32 %v1563, 2147483648
    %v1581 = vsel %vm1579, %v1580, %v1571
    %v1582 = vsel %vm1575, %v1578, %v1581
    %v1583 = vsel %vm1572, nan, %v1582
    %v1584 = vand.u32 2147483647, %v1156
    %vm1585 = vcmp.le.f32.partialorder %v1584, 0.7853982
    %vm1586 = vcmp.lt.s32.totalorder %v1156, 0
    %v1587 = vand.u32 %v1156, 2139095040
    %v1588 = vshrl.u32 %v1587, 23
    %v1589 = vsub.s32 %v1588, 127
    %v1590 = vand.u32 2147483647, %v1156
    %v1591 = vand.u32 %v1590, 8388607
    %v1592 = vor.u32 %v1591, 8388608
    %v1593 = vsub.s32 0, %v1592
    %v1594 = vadd.s32 %v1589, 1
    %vm1595 = vcmp.gt.s32.totalorder %v1594, 0
    %v1596 = vsel %vm1595, %v1594, 0
    %v1597 = vshrl.u32 %v1596, 5
    %v1598 = vand.u32 %v1596, 31
    %v1599 = vsub.s32 32, %v1598
    %v1600 = vshrl.u32 683565275, %v1599
    %v1601 = vshll.u32 683565275, %v1598
    %v1602 = vshrl.u32 2475754826, %v1599
    %v1603 = vor.u32 %v1601, %v1602
    %v1604 = vshll.u32 2475754826, %v1598
    %v1605 = vshrl.u32 2131351028, %v1599
    %v1606 = vor.u32 %v1604, %v1605
    %v1607 = vshll.u32 2131351028, %v1598
    %v1608 = vshrl.u32 2102212464, %v1599
    %v1609 = vor.u32 %v1607, %v1608
    %v1610 = vshll.u32 2102212464, %v1598
    %v1611 = vshrl.u32 920167782, %v1599
    %v1612 = vor.u32 %v1610, %v1611
    %v1613 = vshll.u32 920167782, %v1598
    %v1614 = vshrl.u32 1326507024, %v1599
    %v1615 = vor.u32 %v1613, %v1614
    %vm1616 = vcmp.lt.s32.totalorder %v1597, 1
    %vm1617 = vcmp.lt.s32.totalorder %v1597, 2
    %vm1618 = vcmp.lt.s32.totalorder %v1597, 3
    %vm1619 = vcmp.lt.s32.totalorder %v1597, 4
    %v1620 = vsel %vm1616, %v1600, %v1603
    %v1621 = vsel %vm1619, %v1609, 2102212464
    %v1622 = vsel %vm1618, %v1606, %v1621
    %v1623 = vsel %vm1617, %v1620, %v1622
    %v1624 = vsel %vm1616, %v1603, %v1606
    %v1625 = vsel %vm1619, %v1612, 920167782
    %v1626 = vsel %vm1618, %v1609, %v1625
    %v1627 = vsel %vm1617, %v1624, %v1626
    %v1628 = vsel %vm1616, %v1606, %v1609
    %v1629 = vsel %vm1619, %v1615, 1326507024
    %v1630 = vsel %vm1618, %v1612, %v1629
    %v1631 = vsel %vm1617, %v1628, %v1630
    %v1632 = vshll.u32 %v1592, 8
    %v1633 = vand.u32 %v1632, 65535
    %v1634 = vshrl.u32 %v1632, 16
    %v1635 = vand.u32 %v1631, 65535
    %v1636 = vshrl.u32 %v1631, 16
    %v1637 = vmul.u32 %v1633, %v1635
    %v1638 = vmul.u32 %v1633, %v1636
    %v1639 = vmul.u32 %v1634, %v1635
    %v1640 = vmul.u32 %v1634, %v1636
    %v1641 = vshll.u32 %v1638, 16
    %v1642 = vshrl.u32 %v1638, 16
    %v1643 = vshll.u32 %v1639, 16
    %v1644 = vshrl.u32 %v1639, 16
    %vm1645 = vc.u32 %v1637, %v1641
    %v1646 = vsel %vm1645, 1, 0
    %v1647 = vadd.s32 %v1637, %v1641
    %v1648 = vadd.s32 %v1640, %v1646
    %vm1649 = vc.u32 %v1647, %v1643
    %v1650 = vsel %vm1649, 1, 0
    %v1651 = vadd.s32 %v1647, %v1643
    %v1652 = vadd.s32 %v1648, %v1650
    %v1653 = vadd.s32 %v1652, %v1642
    %v1654 = vadd.s32 %v1653, %v1644
    %v1655 = vand.u32 %v1632, 65535
    %v1656 = vshrl.u32 %v1632, 16
    %v1657 = vand.u32 %v1627, 65535
    %v1658 = vshrl.u32 %v1627, 16
    %v1659 = vmul.u32 %v1655, %v1657
    %v1660 = vmul.u32 %v1655, %v1658
    %v1661 = vmul.u32 %v1656, %v1657
    %v1662 = vmul.u32 %v1656, %v1658
    %v1663 = vshll.u32 %v1660, 16
    %v1664 = vshrl.u32 %v1660, 16
    %v1665 = vshll.u32 %v1661, 16
    %v1666 = vshrl.u32 %v1661, 16
    %vm1667 = vc.u32 %v1659, %v1663
    %v1668 = vsel %vm1667, 1, 0
    %v1669 = vadd.s32 %v1659, %v1663
    %v1670 = vadd.s32 %v1662, %v1668
    %vm1671 = vc.u32 %v1669, %v1665
    %v1672 = vsel %vm1671, 1, 0
    %v1673 = vadd.s32 %v1669, %v1665
    %v1674 = vadd.s32 %v1670, %v1672
    %v1675 = vadd.s32 %v1674, %v1664
    %v1676 = vadd.s32 %v1675, %v1666
    %v1677 = vmul.u32 %v1632, %v1623
    %v1678 = vadd.s32 %v1654, %v1673
    %vm1679 = vc.u32 %v1654, %v1673
    %v1680 = vadd.s32 %v1676, 1
    %v1681 = vsel %vm1679, %v1680, %v1676
    %v1682 = vadd.s32 %v1677, %v1681
    %v1683 = vadd.s32 %v1682, 536870912
    %v1684 = vshrl.u32 %v1683, 30
    %v1685 = vshll.u32 %v1684, 30
    %v1686 = vsub.s32 %v1682, %v1685
    %vm1687 = vcmp.lt.s32.totalorder %v1686, 0
    %v1688 = vsub.s32 0, %v1686
    %v1689 = vsel %vm1687, %v1688, %v1686
    %v1690 = vclz %v1689
    %v1691 = vsub.s32 %v1690, 2
    %vm1692 = vcmp.gt.s32.totalorder 0, %v1691
    %v1693 = vsel %vm1692, 0, %v1691
    %v1694 = vsub.s32 32, %v1693
    %v1695 = vshll.u32 %v1686, %v1693
    %v1696 = vshrl.u32 %v1678, %v1694
    %v1697 = vor.u32 %v1695, %v1696
    %v1698 = vsub.s32 4294967266, %v1693
    %v1699 = vadd.s32 %v1698, 127
    %v1700 = vshll.u32 %v1699, 23
    %v1701 = vor.u32 4788187, %v1700
    %v1702 = vand.u32 2147483647, %v1701
    %v1704 = vcvt.s32.f32 %v1697
    %v1705 = vmul.f32 %v1704, %v1702
    %v1706 = vxor.u32 %v1705, 2147483648
    %v1707 = vsel %vm1586, %v1706, %v1705
    %v1708 = vsub.s32 4, %v1684
    %v1709 = vsel %vm1586, %v1708, %v1684
    %v1710 = vsel %vm1585, %v1156, %v1707
    %v1711 = vsel %vm1585, 0, %v1709
    %v1712 = vmul.f32 %v1710, %v1710
    %v1713 = vmul.f32 %v1712, -0.001358992
    %v1714 = vadd.f32 %v1713, 0.041655596
    %v1715 = vmul.f32 %v1712, %v1714
    %v1716 = vadd.f32 %v1715, -0.4999988
    %v1717 = vmul.f32 %v1712, %v1716
    %v1718 = vadd.f32 1.0, %v1717
    %v1719 = vmul.f32 %v1710, %v1710
    %v1720 = vmul.f32 %v1719, -0.00019511016
    %v1721 = vadd.f32 %v1720, 0.008332121
    %v1722 = vmul.f32 %v1719, %v1721
    %v1723 = vadd.f32 %v1722, -0.16666654
    %v1724 = vmul.f32 %v1719, %v1723
    %v1725 = vadd.f32 %v1724, 1.0
    %v1726 = vmul.f32 %v1725, %v1710
    %vm1727 = vweird.f32 %v1156
    %v1728 = vadd.s32 %v1711, 3
    %v1729 = vand.u32 %v1728, 3
    %vm1730 = vcmp.lt.s32.totalorder %v1729, 2
    %vm1731 = vcmp.eq.s32.totalorder %v1729, 0
    %v1732 = vxor.u32 %v1726, 2147483648
    %v1733 = vsel %vm1731, %v1718, %v1732
    %vm1734 = vcmp.eq.s32.totalorder %v1729, 2
    %v1735 = vxor.u32 %v1718, 2147483648
    %v1736 = vsel %vm1734, %v1735, %v1726
    %v1737 = vsel %vm1730, %v1733, %v1736
    %v1738 = vsel %vm1727, nan, %v1737
    %v1739 = vand.u32 2147483647, %v1160
    %vm1740 = vcmp.le.f32.partialorder %v1739, 0.7853982
    %vm1741 = vcmp.lt.s32.totalorder %v1160, 0
    %v1742 = vand.u32 %v1160, 2139095040
    %v1743 = vshrl.u32 %v1742, 23
    %v1744 = vsub.s32 %v1743, 127
    %v1745 = vand.u32 2147483647, %v1160
    %v1746 = vand.u32 %v1745, 8388607
    %v1747 = vor.u32 %v1746, 8388608
    %v1748 = vsub.s32 0, %v1747
    %v1749 = vadd.s32 %v1744, 1
    %vm1750 = vcmp.gt.s32.totalorder %v1749, 0
    %v1751 = vsel %vm1750, %v1749, 0
    %v1752 = vshrl.u32 %v1751, 5
    %v1753 = vand.u32 %v1751, 31
    %v1754 = vsub.s32 32, %v1753
    %v1755 = vshrl.u32 683565275, %v1754
    %v1756 = vshll.u32 683565275, %v1753
    %v1757 = vshrl.u32 2475754826, %v1754
    %v1758 = vor.u32 %v1756, %v1757
    %v1759 = vshll.u32 2475754826, %v1753
    %v1760 = vshrl.u32 2131351028, %v1754
    %v1761 = vor.u32 %v1759, %v1760
    %v1762 = vshll.u32 2131351028, %v1753
    %v1763 = vshrl.u32 2102212464, %v1754
    %v1764 = vor.u32 %v1762, %v1763
    %v1765 = vshll.u32 2102212464, %v1753
    %v1766 = vshrl.u32 920167782, %v1754
    %v1767 = vor.u32 %v1765, %v1766
    %v1768 = vshll.u32 920167782, %v1753
    %v1769 = vshrl.u32 1326507024, %v1754
    %v1770 = vor.u32 %v1768, %v1769
    %vm1771 = vcmp.lt.s32.totalorder %v1752, 1
    %vm1772 = vcmp.lt.s32.totalorder %v1752, 2
    %vm1773 = vcmp.lt.s32.totalorder %v1752, 3
    %vm1774 = vcmp.lt.s32.totalorder %v1752, 4
    %v1775 = vsel %vm1771, %v1755, %v1758
    %v1776 = vsel %vm1774, %v1764, 2102212464
    %v1777 = vsel %vm1773, %v1761, %v1776
    %v1778 = vsel %vm1772, %v1775, %v1777
    %v1779 = vsel %vm1771, %v1758, %v1761
    %v1780 = vsel %vm1774, %v1767, 920167782
    %v1781 = vsel %vm1773, %v1764, %v1780
    %v1782 = vsel %vm1772, %v1779, %v1781
    %v1783 = vsel %vm1771, %v1761, %v1764
    %v1784 = vsel %vm1774, %v1770, 1326507024
    %v1785 = vsel %vm1773, %v1767, %v1784
    %v1786 = vsel %vm1772, %v1783, %v1785
    %v1787 = vshll.u32 %v1747, 8
    %v1788 = vand.u32 %v1787, 65535
    %v1789 = vshrl.u32 %v1787, 16
    %v1790 = vand.u32 %v1786, 65535
    %v1791 = vshrl.u32 %v1786, 16
    %v1792 = vmul.u32 %v1788, %v1790
    %v1793 = vmul.u32 %v1788, %v1791
    %v1794 = vmul.u32 %v1789, %v1790
    %v1795 = vmul.u32 %v1789, %v1791
    %v1796 = vshll.u32 %v1793, 16
    %v1797 = vshrl.u32 %v1793, 16
    %v1798 = vshll.u32 %v1794, 16
    %v1799 = vshrl.u32 %v1794, 16
    %vm1800 = vc.u32 %v1792, %v1796
    %v1801 = vsel %vm1800, 1, 0
    %v1802 = vadd.s32 %v1792, %v1796
    %v1803 = vadd.s32 %v1795, %v1801
    %vm1804 = vc.u32 %v1802, %v1798
    %v1805 = vsel %vm1804, 1, 0
    %v1806 = vadd.s32 %v1802, %v1798
    %v1807 = vadd.s32 %v1803, %v1805
    %v1808 = vadd.s32 %v1807, %v1797
    %v1809 = vadd.s32 %v1808, %v1799
    %v1810 = vand.u32 %v1787, 65535
    %v1811 = vshrl.u32 %v1787, 16
    %v1812 = vand.u32 %v1782, 65535
    %v1813 = vshrl.u32 %v1782, 16
    %v1814 = vmul.u32 %v1810, %v1812
    %v1815 = vmul.u32 %v1810, %v1813
    %v1816 = vmul.u32 %v1811, %v1812
    %v1817 = vmul.u32 %v1811, %v1813
    %v1818 = vshll.u32 %v1815, 16
    %v1819 = vshrl.u32 %v1815, 16
    %v1820 = vshll.u32 %v1816, 16
    %v1821 = vshrl.u32 %v1816, 16
    %vm1822 = vc.u32 %v1814, %v1818
    %v1823 = vsel %vm1822, 1, 0
    %v1824 = vadd.s32 %v1814, %v1818
    %v1825 = vadd.s32 %v1817, %v1823
    %vm1826 = vc.u32 %v1824, %v1820
    %v1827 = vsel %vm1826, 1, 0
    %v1828 = vadd.s32 %v1824, %v1820
    %v1829 = vadd.s32 %v1825, %v1827
    %v1830 = vadd.s32 %v1829, %v1819
    %v1831 = vadd.s32 %v1830, %v1821
    %v1832 = vmul.u32 %v1787, %v1778
    %v1833 = vadd.s32 %v1809, %v1828
    %vm1834 = vc.u32 %v1809, %v1828
    %v1835 = vadd.s32 %v1831, 1
    %v1836 = vsel %vm1834, %v1835, %v1831
    %v1837 = vadd.s32 %v1832, %v1836
    %v1838 = vadd.s32 %v1837, 536870912
    %v1839 = vshrl.u32 %v1838, 30
    %v1840 = vshll.u32 %v1839, 30
    %v1841 = vsub.s32 %v1837, %v1840
    %vm1842 = vcmp.lt.s32.totalorder %v1841, 0
    %v1843 = vsub.s32 0, %v1841
    %v1844 = vsel %vm1842, %v1843, %v1841
    %v1845 = vclz %v1844
    %v1846 = vsub.s32 %v1845, 2
    %vm1847 = vcmp.gt.s32.totalorder 0, %v1846
    %v1848 = vsel %vm1847, 0, %v1846
    %v1849 = vsub.s32 32, %v1848
    %v1850 = vshll.u32 %v1841, %v1848
    %v1851 = vshrl.u32 %v1833, %v1849
    %v1852 = vor.u32 %v1850, %v1851
    %v1853 = vsub.s32 4294967266, %v1848
    %v1854 = vadd.s32 %v1853, 127
    %v1855 = vshll.u32 %v1854, 23
    %v1856 = vor.u32 4788187, %v1855
    %v1857 = vand.u32 2147483647, %v1856
    %v1859 = vcvt.s32.f32 %v1852
    %v1860 = vmul.f32 %v1859, %v1857
    %v1861 = vxor.u32 %v1860, 2147483648
    %v1862 = vsel %vm1741, %v1861, %v1860
    %v1863 = vsub.s32 4, %v1839
    %v1864 = vsel %vm1741, %v1863, %v1839
    %v1865 = vsel %vm1740, %v1160, %v1862
    %v1866 = vsel %vm1740, 0, %v1864
    %v1867 = vmul.f32 %v1865, %v1865
    %v1868 = vmul.f32 %v1867, -0.001358992
    %v1869 = vadd.f32 %v1868, 0.041655596
    %v1870 = vmul.f32 %v1867, %v1869
    %v1871 = vadd.f32 %v1870, -0.4999988
    %v1872 = vmul.f32 %v1867, %v1871
    %v1873 = vadd.f32 1.0, %v1872
    %v1874 = vmul.f32 %v1865, %v1865
    %v1875 = vmul.f32 %v1874, -0.00019511016
    %v1876 = vadd.f32 %v1875, 0.008332121
    %v1877 = vmul.f32 %v1874, %v1876
    %v1878 = vadd.f32 %v1877, -0.16666654
    %v1879 = vmul.f32 %v1874, %v1878
    %v1880 = vadd.f32 %v1879, 1.0
    %v1881 = vmul.f32 %v1880, %v1865
    %vm1882 = vweird.f32 %v1160
    %v1883 = vadd.s32 %v1866, 3
    %v1884 = vand.u32 %v1883, 3
    %vm1885 = vcmp.lt.s32.totalorder %v1884, 2
    %vm1886 = vcmp.eq.s32.totalorder %v1884, 0
    %v1887 = vxor.u32 %v1881, 2147483648
    %v1888 = vsel %vm1886, %v1873, %v1887
    %vm1889 = vcmp.eq.s32.totalorder %v1884, 2
    %v1890 = vxor.u32 %v1873, 2147483648
    %v1891 = vsel %vm1889, %v1890, %v1881
    %v1892 = vsel %vm1885, %v1888, %v1891
    %v1893 = vsel %vm1882, nan, %v1892
    %v1894 = vand.u32 2147483647, %v1164
    %vm1895 = vcmp.le.f32.partialorder %v1894, 0.7853982
    %vm1896 = vcmp.lt.s32.totalorder %v1164, 0
    %v1897 = vand.u32 %v1164, 2139095040
    %v1898 = vshrl.u32 %v1897, 23
    %v1899 = vsub.s32 %v1898, 127
    %v1900 = vand.u32 2147483647, %v1164
    %v1901 = vand.u32 %v1900, 8388607
    %v1902 = vor.u32 %v1901, 8388608
    %v1903 = vsub.s32 0, %v1902
    %v1904 = vadd.s32 %v1899, 1
    %vm1905 = vcmp.gt.s32.totalorder %v1904, 0
    %v1906 = vsel %vm1905, %v1904, 0
    %v1907 = vshrl.u32 %v1906, 5
    %v1908 = vand.u32 %v1906, 31
    %v1909 = vsub.s32 32, %v1908
    %v1910 = vshrl.u32 683565275, %v1909
    %v1911 = vshll.u32 683565275, %v1908
    %v1912 = vshrl.u32 2475754826, %v1909
    %v1913 = vor.u32 %v1911, %v1912
    %v1914 = vshll.u32 2475754826, %v1908
    %v1915 = vshrl.u32 2131351028, %v1909
    %v1916 = vor.u32 %v1914, %v1915
    %v1917 = vshll.u32 2131351028, %v1908
    %v1918 = vshrl.u32 2102212464, %v1909
    %v1919 = vor.u32 %v1917, %v1918
    %v1920 = vshll.u32 2102212464, %v1908
    %v1921 = vshrl.u32 920167782, %v1909
    %v1922 = vor.u32 %v1920, %v1921
    %v1923 = vshll.u32 920167782, %v1908
    %v1924 = vshrl.u32 1326507024, %v1909
    %v1925 = vor.u32 %v1923, %v1924
    %vm1926 = vcmp.lt.s32.totalorder %v1907, 1
    %vm1927 = vcmp.lt.s32.totalorder %v1907, 2
    %vm1928 = vcmp.lt.s32.totalorder %v1907, 3
    %vm1929 = vcmp.lt.s32.totalorder %v1907, 4
    %v1930 = vsel %vm1926, %v1910, %v1913
    %v1931 = vsel %vm1929, %v1919, 2102212464
    %v1932 = vsel %vm1928, %v1916, %v1931
    %v1933 = vsel %vm1927, %v1930, %v1932
    %v1934 = vsel %vm1926, %v1913, %v1916
    %v1935 = vsel %vm1929, %v1922, 920167782
    %v1936 = vsel %vm1928, %v1919, %v1935
    %v1937 = vsel %vm1927, %v1934, %v1936
    %v1938 = vsel %vm1926, %v1916, %v1919
    %v1939 = vsel %vm1929, %v1925, 1326507024
    %v1940 = vsel %vm1928, %v1922, %v1939
    %v1941 = vsel %vm1927, %v1938, %v1940
    %v1942 = vshll.u32 %v1902, 8
    %v1943 = vand.u32 %v1942, 65535
    %v1944 = vshrl.u32 %v1942, 16
    %v1945 = vand.u32 %v1941, 65535
    %v1946 = vshrl.u32 %v1941, 16
    %v1947 = vmul.u32 %v1943, %v1945
    %v1948 = vmul.u32 %v1943, %v1946
    %v1949 = vmul.u32 %v1944, %v1945
    %v1950 = vmul.u32 %v1944, %v1946
    %v1951 = vshll.u32 %v1948, 16
    %v1952 = vshrl.u32 %v1948, 16
    %v1953 = vshll.u32 %v1949, 16
    %v1954 = vshrl.u32 %v1949, 16
    %vm1955 = vc.u32 %v1947, %v1951
    %v1956 = vsel %vm1955, 1, 0
    %v1957 = vadd.s32 %v1947, %v1951
    %v1958 = vadd.s32 %v1950, %v1956
    %vm1959 = vc.u32 %v1957, %v1953
    %v1960 = vsel %vm1959, 1, 0
    %v1961 = vadd.s32 %v1957, %v1953
    %v1962 = vadd.s32 %v1958, %v1960
    %v1963 = vadd.s32 %v1962, %v1952
    %v1964 = vadd.s32 %v1963, %v1954
    %v1965 = vand.u32 %v1942, 65535
    %v1966 = vshrl.u32 %v1942, 16
    %v1967 = vand.u32 %v1937, 65535
    %v1968 = vshrl.u32 %v1937, 16
    %v1969 = vmul.u32 %v1965, %v1967
    %v1970 = vmul.u32 %v1965, %v1968
    %v1971 = vmul.u32 %v1966, %v1967
    %v1972 = vmul.u32 %v1966, %v1968
    %v1973 = vshll.u32 %v1970, 16
    %v1974 = vshrl.u32 %v1970, 16
    %v1975 = vshll.u32 %v1971, 16
    %v1976 = vshrl.u32 %v1971, 16
    %vm1977 = vc.u32 %v1969, %v1973
    %v1978 = vsel %vm1977, 1, 0
    %v1979 = vadd.s32 %v1969, %v1973
    %v1980 = vadd.s32 %v1972, %v1978
    %vm1981 = vc.u32 %v1979, %v1975
    %v1982 = vsel %vm1981, 1, 0
    %v1983 = vadd.s32 %v1979, %v1975
    %v1984 = vadd.s32 %v1980, %v1982
    %v1985 = vadd.s32 %v1984, %v1974
    %v1986 = vadd.s32 %v1985, %v1976
    %v1987 = vmul.u32 %v1942, %v1933
    %v1988 = vadd.s32 %v1964, %v1983
    %vm1989 = vc.u32 %v1964, %v1983
    %v1990 = vadd.s32 %v1986, 1
    %v1991 = vsel %vm1989, %v1990, %v1986
    %v1992 = vadd.s32 %v1987, %v1991
    %v1993 = vadd.s32 %v1992, 536870912
    %v1994 = vshrl.u32 %v1993, 30
    %v1995 = vshll.u32 %v1994, 30
    %v1996 = vsub.s32 %v1992, %v1995
    %vm1997 = vcmp.lt.s32.totalorder %v1996, 0
    %v1998 = vsub.s32 0, %v1996
    %v1999 = vsel %vm1997, %v1998, %v1996
    %v2000 = vclz %v1999
    %v2001 = vsub.s32 %v2000, 2
    %vm2002 = vcmp.gt.s32.totalorder 0, %v2001
    %v2003 = vsel %vm2002, 0, %v2001
    %v2004 = vsub.s32 32, %v2003
    %v2005 = vshll.u32 %v1996, %v2003
    %v2006 = vshrl.u32 %v1988, %v2004
    %v2007 = vor.u32 %v2005, %v2006
    %v2008 = vsub.s32 4294967266, %v2003
    %v2009 = vadd.s32 %v2008, 127
    %v2010 = vshll.u32 %v2009, 23
    %v2011 = vor.u32 4788187, %v2010
    %v2012 = vand.u32 2147483647, %v2011
    %v2014 = vcvt.s32.f32 %v2007
    %v2015 = vmul.f32 %v2014, %v2012
    %v2016 = vxor.u32 %v2015, 2147483648
    %v2017 = vsel %vm1896, %v2016, %v2015
    %v2018 = vsub.s32 4, %v1994
    %v2019 = vsel %vm1896, %v2018, %v1994
    %v2020 = vsel %vm1895, %v1164, %v2017
    %v2021 = vsel %vm1895, 0, %v2019
    %v2022 = vmul.f32 %v2020, %v2020
    %v2023 = vmul.f32 %v2022, -0.001358992
    %v2024 = vadd.f32 %v2023, 0.041655596
    %v2025 = vmul.f32 %v2022, %v2024
    %v2026 = vadd.f32 %v2025, -0.4999988
    %v2027 = vmul.f32 %v2022, %v2026
    %v2028 = vadd.f32 1.0, %v2027
    %v2029 = vmul.f32 %v2020, %v2020
    %v2030 = vmul.f32 %v2029, -0.00019511016
    %v2031 = vadd.f32 %v2030, 0.008332121
    %v2032 = vmul.f32 %v2029, %v2031
    %v2033 = vadd.f32 %v2032, -0.16666654
    %v2034 = vmul.f32 %v2029, %v2033
    %v2035 = vadd.f32 %v2034, 1.0
    %v2036 = vmul.f32 %v2035, %v2020
    %vm2037 = vweird.f32 %v1164
    %v2038 = vadd.s32 %v2021, 3
    %v2039 = vand.u32 %v2038, 3
    %vm2040 = vcmp.lt.s32.totalorder %v2039, 2
    %vm2041 = vcmp.eq.s32.totalorder %v2039, 0
    %v2042 = vxor.u32 %v2036, 2147483648
    %v2043 = vsel %vm2041, %v2028, %v2042
    %vm2044 = vcmp.eq.s32.totalorder %v2039, 2
    %v2045 = vxor.u32 %v2028, 2147483648
    %v2046 = vsel %vm2044, %v2045, %v2036
    %v2047 = vsel %vm2040, %v2043, %v2046
    %v2048 = vsel %vm2037, nan, %v2047
    %v2049 = vand.u32 2147483647, %v1168
    %vm2050 = vcmp.le.f32.partialorder %v2049, 0.7853982
    %vm2051 = vcmp.lt.s32.totalorder %v1168, 0
    %v2052 = vand.u32 %v1168, 2139095040
    %v2053 = vshrl.u32 %v2052, 23
    %v2054 = vsub.s32 %v2053, 127
    %v2055 = vand.u32 2147483647, %v1168
    %v2056 = vand.u32 %v2055, 8388607
    %v2057 = vor.u32 %v2056, 8388608
    %v2058 = vsub.s32 0, %v2057
    %v2059 = vadd.s32 %v2054, 1
    %vm2060 = vcmp.gt.s32.totalorder %v2059, 0
    %v2061 = vsel %vm2060, %v2059, 0
    %v2062 = vshrl.u32 %v2061, 5
    %v2063 = vand.u32 %v2061, 31
    %v2064 = vsub.s32 32, %v2063
    %v2065 = vshrl.u32 683565275, %v2064
    %v2066 = vshll.u32 683565275, %v2063
    %v2067 = vshrl.u32 2475754826, %v2064
    %v2068 = vor.u32 %v2066, %v2067
    %v2069 = vshll.u32 2475754826, %v2063
    %v2070 = vshrl.u32 2131351028, %v2064
    %v2071 = vor.u32 %v2069, %v2070
    %v2072 = vshll.u32 2131351028, %v2063
    %v2073 = vshrl.u32 2102212464, %v2064
    %v2074 = vor.u32 %v2072, %v2073
    %v2075 = vshll.u32 2102212464, %v2063
    %v2076 = vshrl.u32 920167782, %v2064
    %v2077 = vor.u32 %v2075, %v2076
    %v2078 = vshll.u32 920167782, %v2063
    %v2079 = vshrl.u32 1326507024, %v2064
    %v2080 = vor.u32 %v2078, %v2079
    %vm2081 = vcmp.lt.s32.totalorder %v2062, 1
    %vm2082 = vcmp.lt.s32.totalorder %v2062, 2
    %vm2083 = vcmp.lt.s32.totalorder %v2062, 3
    %vm2084 = vcmp.lt.s32.totalorder %v2062, 4
    %v2085 = vsel %vm2081, %v2065, %v2068
    %v2086 = vsel %vm2084, %v2074, 2102212464
    %v2087 = vsel %vm2083, %v2071, %v2086
    %v2088 = vsel %vm2082, %v2085, %v2087
    %v2089 = vsel %vm2081, %v2068, %v2071
    %v2090 = vsel %vm2084, %v2077, 920167782
    %v2091 = vsel %vm2083, %v2074, %v2090
    %v2092 = vsel %vm2082, %v2089, %v2091
    %v2093 = vsel %vm2081, %v2071, %v2074
    %v2094 = vsel %vm2084, %v2080, 1326507024
    %v2095 = vsel %vm2083, %v2077, %v2094
    %v2096 = vsel %vm2082, %v2093, %v2095
    %v2097 = vshll.u32 %v2057, 8
    %v2098 = vand.u32 %v2097, 65535
    %v2099 = vshrl.u32 %v2097, 16
    %v2100 = vand.u32 %v2096, 65535
    %v2101 = vshrl.u32 %v2096, 16
    %v2102 = vmul.u32 %v2098, %v2100
    %v2103 = vmul.u32 %v2098, %v2101
    %v2104 = vmul.u32 %v2099, %v2100
    %v2105 = vmul.u32 %v2099, %v2101
    %v2106 = vshll.u32 %v2103, 16
    %v2107 = vshrl.u32 %v2103, 16
    %v2108 = vshll.u32 %v2104, 16
    %v2109 = vshrl.u32 %v2104, 16
    %vm2110 = vc.u32 %v2102, %v2106
    %v2111 = vsel %vm2110, 1, 0
    %v2112 = vadd.s32 %v2102, %v2106
    %v2113 = vadd.s32 %v2105, %v2111
    %vm2114 = vc.u32 %v2112, %v2108
    %v2115 = vsel %vm2114, 1, 0
    %v2116 = vadd.s32 %v2112, %v2108
    %v2117 = vadd.s32 %v2113, %v2115
    %v2118 = vadd.s32 %v2117, %v2107
    %v2119 = vadd.s32 %v2118, %v2109
    %v2120 = vand.u32 %v2097, 65535
    %v2121 = vshrl.u32 %v2097, 16
    %v2122 = vand.u32 %v2092, 65535
    %v2123 = vshrl.u32 %v2092, 16
    %v2124 = vmul.u32 %v2120, %v2122
    %v2125 = vmul.u32 %v2120, %v2123
    %v2126 = vmul.u32 %v2121, %v2122
    %v2127 = vmul.u32 %v2121, %v2123
    %v2128 = vshll.u32 %v2125, 16
    %v2129 = vshrl.u32 %v2125, 16
    %v2130 = vshll.u32 %v2126, 16
    %v2131 = vshrl.u32 %v2126, 16
    %vm2132 = vc.u32 %v2124, %v2128
    %v2133 = vsel %vm2132, 1, 0
    %v2134 = vadd.s32 %v2124, %v2128
    %v2135 = vadd.s32 %v2127, %v2133
    %vm2136 = vc.u32 %v2134, %v2130
    %v2137 = vsel %vm2136, 1, 0
    %v2138 = vadd.s32 %v2134, %v2130
    %v2139 = vadd.s32 %v2135, %v2137
    %v2140 = vadd.s32 %v2139, %v2129
    %v2141 = vadd.s32 %v2140, %v2131
    %v2142 = vmul.u32 %v2097, %v2088
    %v2143 = vadd.s32 %v2119, %v2138
    %vm2144 = vc.u32 %v2119, %v2138
    %v2145 = vadd.s32 %v2141, 1
    %v2146 = vsel %vm2144, %v2145, %v2141
    %v2147 = vadd.s32 %v2142, %v2146
    %v2148 = vadd.s32 %v2147, 536870912
    %v2149 = vshrl.u32 %v2148, 30
    %v2150 = vshll.u32 %v2149, 30
    %v2151 = vsub.s32 %v2147, %v2150
    %vm2152 = vcmp.lt.s32.totalorder %v2151, 0
    %v2153 = vsub.s32 0, %v2151
    %v2154 = vsel %vm2152, %v2153, %v2151
    %v2155 = vclz %v2154
    %v2156 = vsub.s32 %v2155, 2
    %vm2157 = vcmp.gt.s32.totalorder 0, %v2156
    %v2158 = vsel %vm2157, 0, %v2156
    %v2159 = vsub.s32 32, %v2158
    %v2160 = vshll.u32 %v2151, %v2158
    %v2161 = vshrl.u32 %v2143, %v2159
    %v2162 = vor.u32 %v2160, %v2161
    %v2163 = vsub.s32 4294967266, %v2158
    %v2164 = vadd.s32 %v2163, 127
    %v2165 = vshll.u32 %v2164, 23
    %v2166 = vor.u32 4788187, %v2165
    %v2167 = vand.u32 2147483647, %v2166
    %v2169 = vcvt.s32.f32 %v2162
    %v2170 = vmul.f32 %v2169, %v2167
    %v2171 = vxor.u32 %v2170, 2147483648
    %v2172 = vsel %vm2051, %v2171, %v2170
    %v2173 = vsub.s32 4, %v2149
    %v2174 = vsel %vm2051, %v2173, %v2149
    %v2175 = vsel %vm2050, %v1168, %v2172
    %v2176 = vsel %vm2050, 0, %v2174
    %v2177 = vmul.f32 %v2175, %v2175
    %v2178 = vmul.f32 %v2177, -0.001358992
    %v2179 = vadd.f32 %v2178, 0.041655596
    %v2180 = vmul.f32 %v2177, %v2179
    %v2181 = vadd.f32 %v2180, -0.4999988
    %v2182 = vmul.f32 %v2177, %v2181
    %v2183 = vadd.f32 1.0, %v2182
    %v2184 = vmul.f32 %v2175, %v2175
    %v2185 = vmul.f32 %v2184, -0.00019511016
    %v2186 = vadd.f32 %v2185, 0.008332121
    %v2187 = vmul.f32 %v2184, %v2186
    %v2188 = vadd.f32 %v2187, -0.16666654
    %v2189 = vmul.f32 %v2184, %v2188
    %v2190 = vadd.f32 %v2189, 1.0
    %v2191 = vmul.f32 %v2190, %v2175
    %vm2192 = vweird.f32 %v1168
    %v2193 = vadd.s32 %v2176, 3
    %v2194 = vand.u32 %v2193, 3
    %vm2195 = vcmp.lt.s32.totalorder %v2194, 2
    %vm2196 = vcmp.eq.s32.totalorder %v2194, 0
    %v2197 = vxor.u32 %v2191, 2147483648
    %v2198 = vsel %vm2196, %v2183, %v2197
    %vm2199 = vcmp.eq.s32.totalorder %v2194, 2
    %v2200 = vxor.u32 %v2183, 2147483648
    %v2201 = vsel %vm2199, %v2200, %v2191
    %v2202 = vsel %vm2195, %v2198, %v2201
    %v2203 = vsel %vm2192, nan, %v2202
    %v2204 = vand.u32 2147483647, %v1172
    %vm2205 = vcmp.le.f32.partialorder %v2204, 0.7853982
    %vm2206 = vcmp.lt.s32.totalorder %v1172, 0
    %v2207 = vand.u32 %v1172, 2139095040
    %v2208 = vshrl.u32 %v2207, 23
    %v2209 = vsub.s32 %v2208, 127
    %v2210 = vand.u32 2147483647, %v1172
    %v2211 = vand.u32 %v2210, 8388607
    %v2212 = vor.u32 %v2211, 8388608
    %v2213 = vsub.s32 0, %v2212
    %v2214 = vadd.s32 %v2209, 1
    %vm2215 = vcmp.gt.s32.totalorder %v2214, 0
    %v2216 = vsel %vm2215, %v2214, 0
    %v2217 = vshrl.u32 %v2216, 5
    %v2218 = vand.u32 %v2216, 31
    %v2219 = vsub.s32 32, %v2218
    %v2220 = vshrl.u32 683565275, %v2219
    %v2221 = vshll.u32 683565275, %v2218
    %v2222 = vshrl.u32 2475754826, %v2219
    %v2223 = vor.u32 %v2221, %v2222
    %v2224 = vshll.u32 2475754826, %v2218
    %v2225 = vshrl.u32 2131351028, %v2219
    %v2226 = vor.u32 %v2224, %v2225
    %v2227 = vshll.u32 2131351028, %v2218
    %v2228 = vshrl.u32 2102212464, %v2219
    %v2229 = vor.u32 %v2227, %v2228
    %v2230 = vshll.u32 2102212464, %v2218
    %v2231 = vshrl.u32 920167782, %v2219
    %v2232 = vor.u32 %v2230, %v2231
    %v2233 = vshll.u32 920167782, %v2218
    %v2234 = vshrl.u32 1326507024, %v2219
    %v2235 = vor.u32 %v2233, %v2234
    %vm2236 = vcmp.lt.s32.totalorder %v2217, 1
    %vm2237 = vcmp.lt.s32.totalorder %v2217, 2
    %vm2238 = vcmp.lt.s32.totalorder %v2217, 3
    %vm2239 = vcmp.lt.s32.totalorder %v2217, 4
    %v2240 = vsel %vm2236, %v2220, %v2223
    %v2241 = vsel %vm2239, %v2229, 2102212464
    %v2242 = vsel %vm2238, %v2226, %v2241
    %v2243 = vsel %vm2237, %v2240, %v2242
    %v2244 = vsel %vm2236, %v2223, %v2226
    %v2245 = vsel %vm2239, %v2232, 920167782
    %v2246 = vsel %vm2238, %v2229, %v2245
    %v2247 = vsel %vm2237, %v2244, %v2246
    %v2248 = vsel %vm2236, %v2226, %v2229
    %v2249 = vsel %vm2239, %v2235, 1326507024
    %v2250 = vsel %vm2238, %v2232, %v2249
    %v2251 = vsel %vm2237, %v2248, %v2250
    %v2252 = vshll.u32 %v2212, 8
    %v2253 = vand.u32 %v2252, 65535
    %v2254 = vshrl.u32 %v2252, 16
    %v2255 = vand.u32 %v2251, 65535
    %v2256 = vshrl.u32 %v2251, 16
    %v2257 = vmul.u32 %v2253, %v2255
    %v2258 = vmul.u32 %v2253, %v2256
    %v2259 = vmul.u32 %v2254, %v2255
    %v2260 = vmul.u32 %v2254, %v2256
    %v2261 = vshll.u32 %v2258, 16
    %v2262 = vshrl.u32 %v2258, 16
    %v2263 = vshll.u32 %v2259, 16
    %v2264 = vshrl.u32 %v2259, 16
    %vm2265 = vc.u32 %v2257, %v2261
    %v2266 = vsel %vm2265, 1, 0
    %v2267 = vadd.s32 %v2257, %v2261
    %v2268 = vadd.s32 %v2260, %v2266
    %vm2269 = vc.u32 %v2267, %v2263
    %v2270 = vsel %vm2269, 1, 0
    %v2271 = vadd.s32 %v2267, %v2263
    %v2272 = vadd.s32 %v2268, %v2270
    %v2273 = vadd.s32 %v2272, %v2262
    %v2274 = vadd.s32 %v2273, %v2264
    %v2275 = vand.u32 %v2252, 65535
    %v2276 = vshrl.u32 %v2252, 16
    %v2277 = vand.u32 %v2247, 65535
    %v2278 = vshrl.u32 %v2247, 16
    %v2279 = vmul.u32 %v2275, %v2277
    %v2280 = vmul.u32 %v2275, %v2278
    %v2281 = vmul.u32 %v2276, %v2277
    %v2282 = vmul.u32 %v2276, %v2278
    %v2283 = vshll.u32 %v2280, 16
    %v2284 = vshrl.u32 %v2280, 16
    %v2285 = vshll.u32 %v2281, 16
    %v2286 = vshrl.u32 %v2281, 16
    %vm2287 = vc.u32 %v2279, %v2283
    %v2288 = vsel %vm2287, 1, 0
    %v2289 = vadd.s32 %v2279, %v2283
    %v2290 = vadd.s32 %v2282, %v2288
    %vm2291 = vc.u32 %v2289, %v2285
    %v2292 = vsel %vm2291, 1, 0
    %v2293 = vadd.s32 %v2289, %v2285
    %v2294 = vadd.s32 %v2290, %v2292
    %v2295 = vadd.s32 %v2294, %v2284
    %v2296 = vadd.s32 %v2295, %v2286
    %v2297 = vmul.u32 %v2252, %v2243
    %v2298 = vadd.s32 %v2274, %v2293
    %vm2299 = vc.u32 %v2274, %v2293
    %v2300 = vadd.s32 %v2296, 1
    %v2301 = vsel %vm2299, %v2300, %v2296
    %v2302 = vadd.s32 %v2297, %v2301
    %v2303 = vadd.s32 %v2302, 536870912
    %v2304 = vshrl.u32 %v2303, 30
    %v2305 = vshll.u32 %v2304, 30
    %v2306 = vsub.s32 %v2302, %v2305
    %vm2307 = vcmp.lt.s32.totalorder %v2306, 0
    %v2308 = vsub.s32 0, %v2306
    %v2309 = vsel %vm2307, %v2308, %v2306
    %v2310 = vclz %v2309
    %v2311 = vsub.s32 %v2310, 2
    %vm2312 = vcmp.gt.s32.totalorder 0, %v2311
    %v2313 = vsel %vm2312, 0, %v2311
    %v2314 = vsub.s32 32, %v2313
    %v2315 = vshll.u32 %v2306, %v2313
    %v2316 = vshrl.u32 %v2298, %v2314
    %v2317 = vor.u32 %v2315, %v2316
    %v2318 = vsub.s32 4294967266, %v2313
    %v2319 = vadd.s32 %v2318, 127
    %v2320 = vshll.u32 %v2319, 23
    %v2321 = vor.u32 4788187, %v2320
    %v2322 = vand.u32 2147483647, %v2321
    %v2324 = vcvt.s32.f32 %v2317
    %v2325 = vmul.f32 %v2324, %v2322
    %v2326 = vxor.u32 %v2325, 2147483648
    %v2327 = vsel %vm2206, %v2326, %v2325
    %v2328 = vsub.s32 4, %v2304
    %v2329 = vsel %vm2206, %v2328, %v2304
    %v2330 = vsel %vm2205, %v1172, %v2327
    %v2331 = vsel %vm2205, 0, %v2329
    %v2332 = vmul.f32 %v2330, %v2330
    %v2333 = vmul.f32 %v2332, -0.001358992
    %v2334 = vadd.f32 %v2333, 0.041655596
    %v2335 = vmul.f32 %v2332, %v2334
    %v2336 = vadd.f32 %v2335, -0.4999988
    %v2337 = vmul.f32 %v2332, %v2336
    %v2338 = vadd.f32 1.0, %v2337
    %v2339 = vmul.f32 %v2330, %v2330
    %v2340 = vmul.f32 %v2339, -0.00019511016
    %v2341 = vadd.f32 %v2340, 0.008332121
    %v2342 = vmul.f32 %v2339, %v2341
    %v2343 = vadd.f32 %v2342, -0.16666654
    %v2344 = vmul.f32 %v2339, %v2343
    %v2345 = vadd.f32 %v2344, 1.0
    %v2346 = vmul.f32 %v2345, %v2330
    %vm2347 = vweird.f32 %v1172
    %v2348 = vadd.s32 %v2331, 3
    %v2349 = vand.u32 %v2348, 3
    %vm2350 = vcmp.lt.s32.totalorder %v2349, 2
    %vm2351 = vcmp.eq.s32.totalorder %v2349, 0
    %v2352 = vxor.u32 %v2346, 2147483648
    %v2353 = vsel %vm2351, %v2338, %v2352
    %vm2354 = vcmp.eq.s32.totalorder %v2349, 2
    %v2355 = vxor.u32 %v2338, 2147483648
    %v2356 = vsel %vm2354, %v2355, %v2346
    %v2357 = vsel %vm2350, %v2353, %v2356
    %v2358 = vsel %vm2347, nan, %v2357
    %v2359 = vand.u32 2147483647, %v1176
    %vm2360 = vcmp.le.f32.partialorder %v2359, 0.7853982
    %vm2361 = vcmp.lt.s32.totalorder %v1176, 0
    %v2362 = vand.u32 %v1176, 2139095040
    %v2363 = vshrl.u32 %v2362, 23
    %v2364 = vsub.s32 %v2363, 127
    %v2365 = vand.u32 2147483647, %v1176
    %v2366 = vand.u32 %v2365, 8388607
    %v2367 = vor.u32 %v2366, 8388608
    %v2368 = vsub.s32 0, %v2367
    %v2369 = vadd.s32 %v2364, 1
    %vm2370 = vcmp.gt.s32.totalorder %v2369, 0
    %v2371 = vsel %vm2370, %v2369, 0
    %v2372 = vshrl.u32 %v2371, 5
    %v2373 = vand.u32 %v2371, 31
    %v2374 = vsub.s32 32, %v2373
    %v2375 = vshrl.u32 683565275, %v2374
    %v2376 = vshll.u32 683565275, %v2373
    %v2377 = vshrl.u32 2475754826, %v2374
    %v2378 = vor.u32 %v2376, %v2377
    %v2379 = vshll.u32 2475754826, %v2373
    %v2380 = vshrl.u32 2131351028, %v2374
    %v2381 = vor.u32 %v2379, %v2380
    %v2382 = vshll.u32 2131351028, %v2373
    %v2383 = vshrl.u32 2102212464, %v2374
    %v2384 = vor.u32 %v2382, %v2383
    %v2385 = vshll.u32 2102212464, %v2373
    %v2386 = vshrl.u32 920167782, %v2374
    %v2387 = vor.u32 %v2385, %v2386
    %v2388 = vshll.u32 920167782, %v2373
    %v2389 = vshrl.u32 1326507024, %v2374
    %v2390 = vor.u32 %v2388, %v2389
    %vm2391 = vcmp.lt.s32.totalorder %v2372, 1
    %vm2392 = vcmp.lt.s32.totalorder %v2372, 2
    %vm2393 = vcmp.lt.s32.totalorder %v2372, 3
    %vm2394 = vcmp.lt.s32.totalorder %v2372, 4
    %v2395 = vsel %vm2391, %v2375, %v2378
    %v2396 = vsel %vm2394, %v2384, 2102212464
    %v2397 = vsel %vm2393, %v2381, %v2396
    %v2398 = vsel %vm2392, %v2395, %v2397
    %v2399 = vsel %vm2391, %v2378, %v2381
    %v2400 = vsel %vm2394, %v2387, 920167782
    %v2401 = vsel %vm2393, %v2384, %v2400
    %v2402 = vsel %vm2392, %v2399, %v2401
    %v2403 = vsel %vm2391, %v2381, %v2384
    %v2404 = vsel %vm2394, %v2390, 1326507024
    %v2405 = vsel %vm2393, %v2387, %v2404
    %v2406 = vsel %vm2392, %v2403, %v2405
    %v2407 = vshll.u32 %v2367, 8
    %v2408 = vand.u32 %v2407, 65535
    %v2409 = vshrl.u32 %v2407, 16
    %v2410 = vand.u32 %v2406, 65535
    %v2411 = vshrl.u32 %v2406, 16
    %v2412 = vmul.u32 %v2408, %v2410
    %v2413 = vmul.u32 %v2408, %v2411
    %v2414 = vmul.u32 %v2409, %v2410
    %v2415 = vmul.u32 %v2409, %v2411
    %v2416 = vshll.u32 %v2413, 16
    %v2417 = vshrl.u32 %v2413, 16
    %v2418 = vshll.u32 %v2414, 16
    %v2419 = vshrl.u32 %v2414, 16
    %vm2420 = vc.u32 %v2412, %v2416
    %v2421 = vsel %vm2420, 1, 0
    %v2422 = vadd.s32 %v2412, %v2416
    %v2423 = vadd.s32 %v2415, %v2421
    %vm2424 = vc.u32 %v2422, %v2418
    %v2425 = vsel %vm2424, 1, 0
    %v2426 = vadd.s32 %v2422, %v2418
    %v2427 = vadd.s32 %v2423, %v2425
    %v2428 = vadd.s32 %v2427, %v2417
    %v2429 = vadd.s32 %v2428, %v2419
    %v2430 = vand.u32 %v2407, 65535
    %v2431 = vshrl.u32 %v2407, 16
    %v2432 = vand.u32 %v2402, 65535
    %v2433 = vshrl.u32 %v2402, 16
    %v2434 = vmul.u32 %v2430, %v2432
    %v2435 = vmul.u32 %v2430, %v2433
    %v2436 = vmul.u32 %v2431, %v2432
    %v2437 = vmul.u32 %v2431, %v2433
    %v2438 = vshll.u32 %v2435, 16
    %v2439 = vshrl.u32 %v2435, 16
    %v2440 = vshll.u32 %v2436, 16
    %v2441 = vshrl.u32 %v2436, 16
    %vm2442 = vc.u32 %v2434, %v2438
    %v2443 = vsel %vm2442, 1, 0
    %v2444 = vadd.s32 %v2434, %v2438
    %v2445 = vadd.s32 %v2437, %v2443
    %vm2446 = vc.u32 %v2444, %v2440
    %v2447 = vsel %vm2446, 1, 0
    %v2448 = vadd.s32 %v2444, %v2440
    %v2449 = vadd.s32 %v2445, %v2447
    %v2450 = vadd.s32 %v2449, %v2439
    %v2451 = vadd.s32 %v2450, %v2441
    %v2452 = vmul.u32 %v2407, %v2398
    %v2453 = vadd.s32 %v2429, %v2448
    %vm2454 = vc.u32 %v2429, %v2448
    %v2455 = vadd.s32 %v2451, 1
    %v2456 = vsel %vm2454, %v2455, %v2451
    %v2457 = vadd.s32 %v2452, %v2456
    %v2458 = vadd.s32 %v2457, 536870912
    %v2459 = vshrl.u32 %v2458, 30
    %v2460 = vshll.u32 %v2459, 30
    %v2461 = vsub.s32 %v2457, %v2460
    %vm2462 = vcmp.lt.s32.totalorder %v2461, 0
    %v2463 = vsub.s32 0, %v2461
    %v2464 = vsel %vm2462, %v2463, %v2461
    %v2465 = vclz %v2464
    %v2466 = vsub.s32 %v2465, 2
    %vm2467 = vcmp.gt.s32.totalorder 0, %v2466
    %v2468 = vsel %vm2467, 0, %v2466
    %v2469 = vsub.s32 32, %v2468
    %v2470 = vshll.u32 %v2461, %v2468
    %v2471 = vshrl.u32 %v2453, %v2469
    %v2472 = vor.u32 %v2470, %v2471
    %v2473 = vsub.s32 4294967266, %v2468
    %v2474 = vadd.s32 %v2473, 127
    %v2475 = vshll.u32 %v2474, 23
    %v2476 = vor.u32 4788187, %v2475
    %v2477 = vand.u32 2147483647, %v2476
    %v2479 = vcvt.s32.f32 %v2472
    %v2480 = vmul.f32 %v2479, %v2477
    %v2481 = vxor.u32 %v2480, 2147483648
    %v2482 = vsel %vm2361, %v2481, %v2480
    %v2483 = vsub.s32 4, %v2459
    %v2484 = vsel %vm2361, %v2483, %v2459
    %v2485 = vsel %vm2360, %v1176, %v2482
    %v2486 = vsel %vm2360, 0, %v2484
    %v2487 = vmul.f32 %v2485, %v2485
    %v2488 = vmul.f32 %v2487, -0.001358992
    %v2489 = vadd.f32 %v2488, 0.041655596
    %v2490 = vmul.f32 %v2487, %v2489
    %v2491 = vadd.f32 %v2490, -0.4999988
    %v2492 = vmul.f32 %v2487, %v2491
    %v2493 = vadd.f32 1.0, %v2492
    %v2494 = vmul.f32 %v2485, %v2485
    %v2495 = vmul.f32 %v2494, -0.00019511016
    %v2496 = vadd.f32 %v2495, 0.008332121
    %v2497 = vmul.f32 %v2494, %v2496
    %v2498 = vadd.f32 %v2497, -0.16666654
    %v2499 = vmul.f32 %v2494, %v2498
    %v2500 = vadd.f32 %v2499, 1.0
    %v2501 = vmul.f32 %v2500, %v2485
    %vm2502 = vweird.f32 %v1176
    %v2503 = vadd.s32 %v2486, 3
    %v2504 = vand.u32 %v2503, 3
    %vm2505 = vcmp.lt.s32.totalorder %v2504, 2
    %vm2506 = vcmp.eq.s32.totalorder %v2504, 0
    %v2507 = vxor.u32 %v2501, 2147483648
    %v2508 = vsel %vm2506, %v2493, %v2507
    %vm2509 = vcmp.eq.s32.totalorder %v2504, 2
    %v2510 = vxor.u32 %v2493, 2147483648
    %v2511 = vsel %vm2509, %v2510, %v2501
    %v2512 = vsel %vm2505, %v2508, %v2511
    %v2513 = vsel %vm2502, nan, %v2512
    %v2514 = vand.u32 2147483647, %v1180
    %vm2515 = vcmp.le.f32.partialorder %v2514, 0.7853982
    %vm2516 = vcmp.lt.s32.totalorder %v1180, 0
    %v2517 = vand.u32 %v1180, 2139095040
    %v2518 = vshrl.u32 %v2517, 23
    %v2519 = vsub.s32 %v2518, 127
    %v2520 = vand.u32 2147483647, %v1180
    %v2521 = vand.u32 %v2520, 8388607
    %v2522 = vor.u32 %v2521, 8388608
    %v2523 = vsub.s32 0, %v2522
    %v2524 = vadd.s32 %v2519, 1
    %vm2525 = vcmp.gt.s32.totalorder %v2524, 0
    %v2526 = vsel %vm2525, %v2524, 0
    %v2527 = vshrl.u32 %v2526, 5
    %v2528 = vand.u32 %v2526, 31
    %v2529 = vsub.s32 32, %v2528
    %v2530 = vshrl.u32 683565275, %v2529
    %v2531 = vshll.u32 683565275, %v2528
    %v2532 = vshrl.u32 2475754826, %v2529
    %v2533 = vor.u32 %v2531, %v2532
    %v2534 = vshll.u32 2475754826, %v2528
    %v2535 = vshrl.u32 2131351028, %v2529
    %v2536 = vor.u32 %v2534, %v2535
    %v2537 = vshll.u32 2131351028, %v2528
    %v2538 = vshrl.u32 2102212464, %v2529
    %v2539 = vor.u32 %v2537, %v2538
    %v2540 = vshll.u32 2102212464, %v2528
    %v2541 = vshrl.u32 920167782, %v2529
    %v2542 = vor.u32 %v2540, %v2541
    %v2543 = vshll.u32 920167782, %v2528
    %v2544 = vshrl.u32 1326507024, %v2529
    %v2545 = vor.u32 %v2543, %v2544
    %vm2546 = vcmp.lt.s32.totalorder %v2527, 1
    %vm2547 = vcmp.lt.s32.totalorder %v2527, 2
    %vm2548 = vcmp.lt.s32.totalorder %v2527, 3
    %vm2549 = vcmp.lt.s32.totalorder %v2527, 4
    %v2550 = vsel %vm2546, %v2530, %v2533
    %v2551 = vsel %vm2549, %v2539, 2102212464
    %v2552 = vsel %vm2548, %v2536, %v2551
    %v2553 = vsel %vm2547, %v2550, %v2552
    %v2554 = vsel %vm2546, %v2533, %v2536
    %v2555 = vsel %vm2549, %v2542, 920167782
    %v2556 = vsel %vm2548, %v2539, %v2555
    %v2557 = vsel %vm2547, %v2554, %v2556
    %v2558 = vsel %vm2546, %v2536, %v2539
    %v2559 = vsel %vm2549, %v2545, 1326507024
    %v2560 = vsel %vm2548, %v2542, %v2559
    %v2561 = vsel %vm2547, %v2558, %v2560
    %v2562 = vshll.u32 %v2522, 8
    %v2563 = vand.u32 %v2562, 65535
    %v2564 = vshrl.u32 %v2562, 16
    %v2565 = vand.u32 %v2561, 65535
    %v2566 = vshrl.u32 %v2561, 16
    %v2567 = vmul.u32 %v2563, %v2565
    %v2568 = vmul.u32 %v2563, %v2566
    %v2569 = vmul.u32 %v2564, %v2565
    %v2570 = vmul.u32 %v2564, %v2566
    %v2571 = vshll.u32 %v2568, 16
    %v2572 = vshrl.u32 %v2568, 16
    %v2573 = vshll.u32 %v2569, 16
    %v2574 = vshrl.u32 %v2569, 16
    %vm2575 = vc.u32 %v2567, %v2571
    %v2576 = vsel %vm2575, 1, 0
    %v2577 = vadd.s32 %v2567, %v2571
    %v2578 = vadd.s32 %v2570, %v2576
    %vm2579 = vc.u32 %v2577, %v2573
    %v2580 = vsel %vm2579, 1, 0
    %v2581 = vadd.s32 %v2577, %v2573
    %v2582 = vadd.s32 %v2578, %v2580
    %v2583 = vadd.s32 %v2582, %v2572
    %v2584 = vadd.s32 %v2583, %v2574
    %v2585 = vand.u32 %v2562, 65535
    %v2586 = vshrl.u32 %v2562, 16
    %v2587 = vand.u32 %v2557, 65535
    %v2588 = vshrl.u32 %v2557, 16
    %v2589 = vmul.u32 %v2585, %v2587
    %v2590 = vmul.u32 %v2585, %v2588
    %v2591 = vmul.u32 %v2586, %v2587
    %v2592 = vmul.u32 %v2586, %v2588
    %v2593 = vshll.u32 %v2590, 16
    %v2594 = vshrl.u32 %v2590, 16
    %v2595 = vshll.u32 %v2591, 16
    %v2596 = vshrl.u32 %v2591, 16
    %vm2597 = vc.u32 %v2589, %v2593
    %v2598 = vsel %vm2597, 1, 0
    %v2599 = vadd.s32 %v2589, %v2593
    %v2600 = vadd.s32 %v2592, %v2598
    %vm2601 = vc.u32 %v2599, %v2595
    %v2602 = vsel %vm2601, 1, 0
    %v2603 = vadd.s32 %v2599, %v2595
    %v2604 = vadd.s32 %v2600, %v2602
    %v2605 = vadd.s32 %v2604, %v2594
    %v2606 = vadd.s32 %v2605, %v2596
    %v2607 = vmul.u32 %v2562, %v2553
    %v2608 = vadd.s32 %v2584, %v2603
    %vm2609 = vc.u32 %v2584, %v2603
    %v2610 = vadd.s32 %v2606, 1
    %v2611 = vsel %vm2609, %v2610, %v2606
    %v2612 = vadd.s32 %v2607, %v2611
    %v2613 = vadd.s32 %v2612, 536870912
    %v2614 = vshrl.u32 %v2613, 30
    %v2615 = vshll.u32 %v2614, 30
    %v2616 = vsub.s32 %v2612, %v2615
    %vm2617 = vcmp.lt.s32.totalorder %v2616, 0
    %v2618 = vsub.s32 0, %v2616
    %v2619 = vsel %vm2617, %v2618, %v2616
    %v2620 = vclz %v2619
    %v2621 = vsub.s32 %v2620, 2
    %vm2622 = vcmp.gt.s32.totalorder 0, %v2621
    %v2623 = vsel %vm2622, 0, %v2621
    %v2624 = vsub.s32 32, %v2623
    %v2625 = vshll.u32 %v2616, %v2623
    %v2626 = vshrl.u32 %v2608, %v2624
    %v2627 = vor.u32 %v2625, %v2626
    %v2628 = vsub.s32 4294967266, %v2623
    %v2629 = vadd.s32 %v2628, 127
    %v2630 = vshll.u32 %v2629, 23
    %v2631 = vor.u32 4788187, %v2630
    %v2632 = vand.u32 2147483647, %v2631
    %v2634 = vcvt.s32.f32 %v2627
    %v2635 = vmul.f32 %v2634, %v2632
    %v2636 = vxor.u32 %v2635, 2147483648
    %v2637 = vsel %vm2516, %v2636, %v2635
    %v2638 = vsub.s32 4, %v2614
    %v2639 = vsel %vm2516, %v2638, %v2614
    %v2640 = vsel %vm2515, %v1180, %v2637
    %v2641 = vsel %vm2515, 0, %v2639
    %v2642 = vmul.f32 %v2640, %v2640
    %v2643 = vmul.f32 %v2642, -0.001358992
    %v2644 = vadd.f32 %v2643, 0.041655596
    %v2645 = vmul.f32 %v2642, %v2644
    %v2646 = vadd.f32 %v2645, -0.4999988
    %v2647 = vmul.f32 %v2642, %v2646
    %v2648 = vadd.f32 1.0, %v2647
    %v2649 = vmul.f32 %v2640, %v2640
    %v2650 = vmul.f32 %v2649, -0.00019511016
    %v2651 = vadd.f32 %v2650, 0.008332121
    %v2652 = vmul.f32 %v2649, %v2651
    %v2653 = vadd.f32 %v2652, -0.16666654
    %v2654 = vmul.f32 %v2649, %v2653
    %v2655 = vadd.f32 %v2654, 1.0
    %v2656 = vmul.f32 %v2655, %v2640
    %vm2657 = vweird.f32 %v1180
    %v2658 = vadd.s32 %v2641, 3
    %v2659 = vand.u32 %v2658, 3
    %vm2660 = vcmp.lt.s32.totalorder %v2659, 2
    %vm2661 = vcmp.eq.s32.totalorder %v2659, 0
    %v2662 = vxor.u32 %v2656, 2147483648
    %v2663 = vsel %vm2661, %v2648, %v2662
    %vm2664 = vcmp.eq.s32.totalorder %v2659, 2
    %v2665 = vxor.u32 %v2648, 2147483648
    %v2666 = vsel %vm2664, %v2665, %v2656
    %v2667 = vsel %vm2660, %v2663, %v2666
    %v2668 = vsel %vm2657, nan, %v2667
    %v2669 = vand.u32 2147483647, %v1184
    %vm2670 = vcmp.le.f32.partialorder %v2669, 0.7853982
    %vm2671 = vcmp.lt.s32.totalorder %v1184, 0
    %v2672 = vand.u32 %v1184, 2139095040
    %v2673 = vshrl.u32 %v2672, 23
    %v2674 = vsub.s32 %v2673, 127
    %v2675 = vand.u32 2147483647, %v1184
    %v2676 = vand.u32 %v2675, 8388607
    %v2677 = vor.u32 %v2676, 8388608
    %v2678 = vsub.s32 0, %v2677
    %v2679 = vadd.s32 %v2674, 1
    %vm2680 = vcmp.gt.s32.totalorder %v2679, 0
    %v2681 = vsel %vm2680, %v2679, 0
    %v2682 = vshrl.u32 %v2681, 5
    %v2683 = vand.u32 %v2681, 31
    %v2684 = vsub.s32 32, %v2683
    %v2685 = vshrl.u32 683565275, %v2684
    %v2686 = vshll.u32 683565275, %v2683
    %v2687 = vshrl.u32 2475754826, %v2684
    %v2688 = vor.u32 %v2686, %v2687
    %v2689 = vshll.u32 2475754826, %v2683
    %v2690 = vshrl.u32 2131351028, %v2684
    %v2691 = vor.u32 %v2689, %v2690
    %v2692 = vshll.u32 2131351028, %v2683
    %v2693 = vshrl.u32 2102212464, %v2684
    %v2694 = vor.u32 %v2692, %v2693
    %v2695 = vshll.u32 2102212464, %v2683
    %v2696 = vshrl.u32 920167782, %v2684
    %v2697 = vor.u32 %v2695, %v2696
    %v2698 = vshll.u32 920167782, %v2683
    %v2699 = vshrl.u32 1326507024, %v2684
    %v2700 = vor.u32 %v2698, %v2699
    %vm2701 = vcmp.lt.s32.totalorder %v2682, 1
    %vm2702 = vcmp.lt.s32.totalorder %v2682, 2
    %vm2703 = vcmp.lt.s32.totalorder %v2682, 3
    %vm2704 = vcmp.lt.s32.totalorder %v2682, 4
    %v2705 = vsel %vm2701, %v2685, %v2688
    %v2706 = vsel %vm2704, %v2694, 2102212464
    %v2707 = vsel %vm2703, %v2691, %v2706
    %v2708 = vsel %vm2702, %v2705, %v2707
    %v2709 = vsel %vm2701, %v2688, %v2691
    %v2710 = vsel %vm2704, %v2697, 920167782
    %v2711 = vsel %vm2703, %v2694, %v2710
    %v2712 = vsel %vm2702, %v2709, %v2711
    %v2713 = vsel %vm2701, %v2691, %v2694
    %v2714 = vsel %vm2704, %v2700, 1326507024
    %v2715 = vsel %vm2703, %v2697, %v2714
    %v2716 = vsel %vm2702, %v2713, %v2715
    %v2717 = vshll.u32 %v2677, 8
    %v2718 = vand.u32 %v2717, 65535
    %v2719 = vshrl.u32 %v2717, 16
    %v2720 = vand.u32 %v2716, 65535
    %v2721 = vshrl.u32 %v2716, 16
    %v2722 = vmul.u32 %v2718, %v2720
    %v2723 = vmul.u32 %v2718, %v2721
    %v2724 = vmul.u32 %v2719, %v2720
    %v2725 = vmul.u32 %v2719, %v2721
    %v2726 = vshll.u32 %v2723, 16
    %v2727 = vshrl.u32 %v2723, 16
    %v2728 = vshll.u32 %v2724, 16
    %v2729 = vshrl.u32 %v2724, 16
    %vm2730 = vc.u32 %v2722, %v2726
    %v2731 = vsel %vm2730, 1, 0
    %v2732 = vadd.s32 %v2722, %v2726
    %v2733 = vadd.s32 %v2725, %v2731
    %vm2734 = vc.u32 %v2732, %v2728
    %v2735 = vsel %vm2734, 1, 0
    %v2736 = vadd.s32 %v2732, %v2728
    %v2737 = vadd.s32 %v2733, %v2735
    %v2738 = vadd.s32 %v2737, %v2727
    %v2739 = vadd.s32 %v2738, %v2729
    %v2740 = vand.u32 %v2717, 65535
    %v2741 = vshrl.u32 %v2717, 16
    %v2742 = vand.u32 %v2712, 65535
    %v2743 = vshrl.u32 %v2712, 16
    %v2744 = vmul.u32 %v2740, %v2742
    %v2745 = vmul.u32 %v2740, %v2743
    %v2746 = vmul.u32 %v2741, %v2742
    %v2747 = vmul.u32 %v2741, %v2743
    %v2748 = vshll.u32 %v2745, 16
    %v2749 = vshrl.u32 %v2745, 16
    %v2750 = vshll.u32 %v2746, 16
    %v2751 = vshrl.u32 %v2746, 16
    %vm2752 = vc.u32 %v2744, %v2748
    %v2753 = vsel %vm2752, 1, 0
    %v2754 = vadd.s32 %v2744, %v2748
    %v2755 = vadd.s32 %v2747, %v2753
    %vm2756 = vc.u32 %v2754, %v2750
    %v2757 = vsel %vm2756, 1, 0
    %v2758 = vadd.s32 %v2754, %v2750
    %v2759 = vadd.s32 %v2755, %v2757
    %v2760 = vadd.s32 %v2759, %v2749
    %v2761 = vadd.s32 %v2760, %v2751
    %v2762 = vmul.u32 %v2717, %v2708
    %v2763 = vadd.s32 %v2739, %v2758
    %vm2764 = vc.u32 %v2739, %v2758
    %v2765 = vadd.s32 %v2761, 1
    %v2766 = vsel %vm2764, %v2765, %v2761
    %v2767 = vadd.s32 %v2762, %v2766
    %v2768 = vadd.s32 %v2767, 536870912
    %v2769 = vshrl.u32 %v2768, 30
    %v2770 = vshll.u32 %v2769, 30
    %v2771 = vsub.s32 %v2767, %v2770
    %vm2772 = vcmp.lt.s32.totalorder %v2771, 0
    %v2773 = vsub.s32 0, %v2771
    %v2774 = vsel %vm2772, %v2773, %v2771
    %v2775 = vclz %v2774
    %v2776 = vsub.s32 %v2775, 2
    %vm2777 = vcmp.gt.s32.totalorder 0, %v2776
    %v2778 = vsel %vm2777, 0, %v2776
    %v2779 = vsub.s32 32, %v2778
    %v2780 = vshll.u32 %v2771, %v2778
    %v2781 = vshrl.u32 %v2763, %v2779
    %v2782 = vor.u32 %v2780, %v2781
    %v2783 = vsub.s32 4294967266, %v2778
    %v2784 = vadd.s32 %v2783, 127
    %v2785 = vshll.u32 %v2784, 23
    %v2786 = vor.u32 4788187, %v2785
    %v2787 = vand.u32 2147483647, %v2786
    %v2789 = vcvt.s32.f32 %v2782
    %v2790 = vmul.f32 %v2789, %v2787
    %v2791 = vxor.u32 %v2790, 2147483648
    %v2792 = vsel %vm2671, %v2791, %v2790
    %v2793 = vsub.s32 4, %v2769
    %v2794 = vsel %vm2671, %v2793, %v2769
    %v2795 = vsel %vm2670, %v1184, %v2792
    %v2796 = vsel %vm2670, 0, %v2794
    %v2797 = vmul.f32 %v2795, %v2795
    %v2798 = vmul.f32 %v2797, -0.001358992
    %v2799 = vadd.f32 %v2798, 0.041655596
    %v2800 = vmul.f32 %v2797, %v2799
    %v2801 = vadd.f32 %v2800, -0.4999988
    %v2802 = vmul.f32 %v2797, %v2801
    %v2803 = vadd.f32 1.0, %v2802
    %v2804 = vmul.f32 %v2795, %v2795
    %v2805 = vmul.f32 %v2804, -0.00019511016
    %v2806 = vadd.f32 %v2805, 0.008332121
    %v2807 = vmul.f32 %v2804, %v2806
    %v2808 = vadd.f32 %v2807, -0.16666654
    %v2809 = vmul.f32 %v2804, %v2808
    %v2810 = vadd.f32 %v2809, 1.0
    %v2811 = vmul.f32 %v2810, %v2795
    %vm2812 = vweird.f32 %v1184
    %v2813 = vadd.s32 %v2796, 3
    %v2814 = vand.u32 %v2813, 3
    %vm2815 = vcmp.lt.s32.totalorder %v2814, 2
    %vm2816 = vcmp.eq.s32.totalorder %v2814, 0
    %v2817 = vxor.u32 %v2811, 2147483648
    %v2818 = vsel %vm2816, %v2803, %v2817
    %vm2819 = vcmp.eq.s32.totalorder %v2814, 2
    %v2820 = vxor.u32 %v2803, 2147483648
    %v2821 = vsel %vm2819, %v2820, %v2811
    %v2822 = vsel %vm2815, %v2818, %v2821
    %v2823 = vsel %vm2812, nan, %v2822
    %v2824 = vand.u32 2147483647, %v1188
    %vm2825 = vcmp.le.f32.partialorder %v2824, 0.7853982
    %vm2826 = vcmp.lt.s32.totalorder %v1188, 0
    %v2827 = vand.u32 %v1188, 2139095040
    %v2828 = vshrl.u32 %v2827, 23
    %v2829 = vsub.s32 %v2828, 127
    %v2830 = vand.u32 2147483647, %v1188
    %v2831 = vand.u32 %v2830, 8388607
    %v2832 = vor.u32 %v2831, 8388608
    %v2833 = vsub.s32 0, %v2832
    %v2834 = vadd.s32 %v2829, 1
    %vm2835 = vcmp.gt.s32.totalorder %v2834, 0
    %v2836 = vsel %vm2835, %v2834, 0
    %v2837 = vshrl.u32 %v2836, 5
    %v2838 = vand.u32 %v2836, 31
    %v2839 = vsub.s32 32, %v2838
    %v2840 = vshrl.u32 683565275, %v2839
    %v2841 = vshll.u32 683565275, %v2838
    %v2842 = vshrl.u32 2475754826, %v2839
    %v2843 = vor.u32 %v2841, %v2842
    %v2844 = vshll.u32 2475754826, %v2838
    %v2845 = vshrl.u32 2131351028, %v2839
    %v2846 = vor.u32 %v2844, %v2845
    %v2847 = vshll.u32 2131351028, %v2838
    %v2848 = vshrl.u32 2102212464, %v2839
    %v2849 = vor.u32 %v2847, %v2848
    %v2850 = vshll.u32 2102212464, %v2838
    %v2851 = vshrl.u32 920167782, %v2839
    %v2852 = vor.u32 %v2850, %v2851
    %v2853 = vshll.u32 920167782, %v2838
    %v2854 = vshrl.u32 1326507024, %v2839
    %v2855 = vor.u32 %v2853, %v2854
    %vm2856 = vcmp.lt.s32.totalorder %v2837, 1
    %vm2857 = vcmp.lt.s32.totalorder %v2837, 2
    %vm2858 = vcmp.lt.s32.totalorder %v2837, 3
    %vm2859 = vcmp.lt.s32.totalorder %v2837, 4
    %v2860 = vsel %vm2856, %v2840, %v2843
    %v2861 = vsel %vm2859, %v2849, 2102212464
    %v2862 = vsel %vm2858, %v2846, %v2861
    %v2863 = vsel %vm2857, %v2860, %v2862
    %v2864 = vsel %vm2856, %v2843, %v2846
    %v2865 = vsel %vm2859, %v2852, 920167782
    %v2866 = vsel %vm2858, %v2849, %v2865
    %v2867 = vsel %vm2857, %v2864, %v2866
    %v2868 = vsel %vm2856, %v2846, %v2849
    %v2869 = vsel %vm2859, %v2855, 1326507024
    %v2870 = vsel %vm2858, %v2852, %v2869
    %v2871 = vsel %vm2857, %v2868, %v2870
    %v2872 = vshll.u32 %v2832, 8
    %v2873 = vand.u32 %v2872, 65535
    %v2874 = vshrl.u32 %v2872, 16
    %v2875 = vand.u32 %v2871, 65535
    %v2876 = vshrl.u32 %v2871, 16
    %v2877 = vmul.u32 %v2873, %v2875
    %v2878 = vmul.u32 %v2873, %v2876
    %v2879 = vmul.u32 %v2874, %v2875
    %v2880 = vmul.u32 %v2874, %v2876
    %v2881 = vshll.u32 %v2878, 16
    %v2882 = vshrl.u32 %v2878, 16
    %v2883 = vshll.u32 %v2879, 16
    %v2884 = vshrl.u32 %v2879, 16
    %vm2885 = vc.u32 %v2877, %v2881
    %v2886 = vsel %vm2885, 1, 0
    %v2887 = vadd.s32 %v2877, %v2881
    %v2888 = vadd.s32 %v2880, %v2886
    %vm2889 = vc.u32 %v2887, %v2883
    %v2890 = vsel %vm2889, 1, 0
    %v2891 = vadd.s32 %v2887, %v2883
    %v2892 = vadd.s32 %v2888, %v2890
    %v2893 = vadd.s32 %v2892, %v2882
    %v2894 = vadd.s32 %v2893, %v2884
    %v2895 = vand.u32 %v2872, 65535
    %v2896 = vshrl.u32 %v2872, 16
    %v2897 = vand.u32 %v2867, 65535
    %v2898 = vshrl.u32 %v2867, 16
    %v2899 = vmul.u32 %v2895, %v2897
    %v2900 = vmul.u32 %v2895, %v2898
    %v2901 = vmul.u32 %v2896, %v2897
    %v2902 = vmul.u32 %v2896, %v2898
    %v2903 = vshll.u32 %v2900, 16
    %v2904 = vshrl.u32 %v2900, 16
    %v2905 = vshll.u32 %v2901, 16
    %v2906 = vshrl.u32 %v2901, 16
    %vm2907 = vc.u32 %v2899, %v2903
    %v2908 = vsel %vm2907, 1, 0
    %v2909 = vadd.s32 %v2899, %v2903
    %v2910 = vadd.s32 %v2902, %v2908
    %vm2911 = vc.u32 %v2909, %v2905
    %v2912 = vsel %vm2911, 1, 0
    %v2913 = vadd.s32 %v2909, %v2905
    %v2914 = vadd.s32 %v2910, %v2912
    %v2915 = vadd.s32 %v2914, %v2904
    %v2916 = vadd.s32 %v2915, %v2906
    %v2917 = vmul.u32 %v2872, %v2863
    %v2918 = vadd.s32 %v2894, %v2913
    %vm2919 = vc.u32 %v2894, %v2913
    %v2920 = vadd.s32 %v2916, 1
    %v2921 = vsel %vm2919, %v2920, %v2916
    %v2922 = vadd.s32 %v2917, %v2921
    %v2923 = vadd.s32 %v2922, 536870912
    %v2924 = vshrl.u32 %v2923, 30
    %v2925 = vshll.u32 %v2924, 30
    %v2926 = vsub.s32 %v2922, %v2925
    %vm2927 = vcmp.lt.s32.totalorder %v2926, 0
    %v2928 = vsub.s32 0, %v2926
    %v2929 = vsel %vm2927, %v2928, %v2926
    %v2930 = vclz %v2929
    %v2931 = vsub.s32 %v2930, 2
    %vm2932 = vcmp.gt.s32.totalorder 0, %v2931
    %v2933 = vsel %vm2932, 0, %v2931
    %v2934 = vsub.s32 32, %v2933
    %v2935 = vshll.u32 %v2926, %v2933
    %v2936 = vshrl.u32 %v2918, %v2934
    %v2937 = vor.u32 %v2935, %v2936
    %v2938 = vsub.s32 4294967266, %v2933
    %v2939 = vadd.s32 %v2938, 127
    %v2940 = vshll.u32 %v2939, 23
    %v2941 = vor.u32 4788187, %v2940
    %v2942 = vand.u32 2147483647, %v2941
    %v2944 = vcvt.s32.f32 %v2937
    %v2945 = vmul.f32 %v2944, %v2942
    %v2946 = vxor.u32 %v2945, 2147483648
    %v2947 = vsel %vm2826, %v2946, %v2945
    %v2948 = vsub.s32 4, %v2924
    %v2949 = vsel %vm2826, %v2948, %v2924
    %v2950 = vsel %vm2825, %v1188, %v2947
    %v2951 = vsel %vm2825, 0, %v2949
    %v2952 = vmul.f32 %v2950, %v2950
    %v2953 = vmul.f32 %v2952, -0.001358992
    %v2954 = vadd.f32 %v2953, 0.041655596
    %v2955 = vmul.f32 %v2952, %v2954
    %v2956 = vadd.f32 %v2955, -0.4999988
    %v2957 = vmul.f32 %v2952, %v2956
    %v2958 = vadd.f32 1.0, %v2957
    %v2959 = vmul.f32 %v2950, %v2950
    %v2960 = vmul.f32 %v2959, -0.00019511016
    %v2961 = vadd.f32 %v2960, 0.008332121
    %v2962 = vmul.f32 %v2959, %v2961
    %v2963 = vadd.f32 %v2962, -0.16666654
    %v2964 = vmul.f32 %v2959, %v2963
    %v2965 = vadd.f32 %v2964, 1.0
    %v2966 = vmul.f32 %v2965, %v2950
    %vm2967 = vweird.f32 %v1188
    %v2968 = vadd.s32 %v2951, 3
    %v2969 = vand.u32 %v2968, 3
    %vm2970 = vcmp.lt.s32.totalorder %v2969, 2
    %vm2971 = vcmp.eq.s32.totalorder %v2969, 0
    %v2972 = vxor.u32 %v2966, 2147483648
    %v2973 = vsel %vm2971, %v2958, %v2972
    %vm2974 = vcmp.eq.s32.totalorder %v2969, 2
    %v2975 = vxor.u32 %v2958, 2147483648
    %v2976 = vsel %vm2974, %v2975, %v2966
    %v2977 = vsel %vm2970, %v2973, %v2976
    %v2978 = vsel %vm2967, nan, %v2977
    %v2979 = vand.u32 2147483647, %v1192
    %vm2980 = vcmp.le.f32.partialorder %v2979, 0.7853982
    %vm2981 = vcmp.lt.s32.totalorder %v1192, 0
    %v2982 = vand.u32 %v1192, 2139095040
    %v2983 = vshrl.u32 %v2982, 23
    %v2984 = vsub.s32 %v2983, 127
    %v2985 = vand.u32 2147483647, %v1192
    %v2986 = vand.u32 %v2985, 8388607
    %v2987 = vor.u32 %v2986, 8388608
    %v2988 = vsub.s32 0, %v2987
    %v2989 = vadd.s32 %v2984, 1
    %vm2990 = vcmp.gt.s32.totalorder %v2989, 0
    %v2991 = vsel %vm2990, %v2989, 0
    %v2992 = vshrl.u32 %v2991, 5
    %v2993 = vand.u32 %v2991, 31
    %v2994 = vsub.s32 32, %v2993
    %v2995 = vshrl.u32 683565275, %v2994
    %v2996 = vshll.u32 683565275, %v2993
    %v2997 = vshrl.u32 2475754826, %v2994
    %v2998 = vor.u32 %v2996, %v2997
    %v2999 = vshll.u32 2475754826, %v2993
    %v3000 = vshrl.u32 2131351028, %v2994
    %v3001 = vor.u32 %v2999, %v3000
    %v3002 = vshll.u32 2131351028, %v2993
    %v3003 = vshrl.u32 2102212464, %v2994
    %v3004 = vor.u32 %v3002, %v3003
    %v3005 = vshll.u32 2102212464, %v2993
    %v3006 = vshrl.u32 920167782, %v2994
    %v3007 = vor.u32 %v3005, %v3006
    %v3008 = vshll.u32 920167782, %v2993
    %v3009 = vshrl.u32 1326507024, %v2994
    %v3010 = vor.u32 %v3008, %v3009
    %vm3011 = vcmp.lt.s32.totalorder %v2992, 1
    %vm3012 = vcmp.lt.s32.totalorder %v2992, 2
    %vm3013 = vcmp.lt.s32.totalorder %v2992, 3
    %vm3014 = vcmp.lt.s32.totalorder %v2992, 4
    %v3015 = vsel %vm3011, %v2995, %v2998
    %v3016 = vsel %vm3014, %v3004, 2102212464
    %v3017 = vsel %vm3013, %v3001, %v3016
    %v3018 = vsel %vm3012, %v3015, %v3017
    %v3019 = vsel %vm3011, %v2998, %v3001
    %v3020 = vsel %vm3014, %v3007, 920167782
    %v3021 = vsel %vm3013, %v3004, %v3020
    %v3022 = vsel %vm3012, %v3019, %v3021
    %v3023 = vsel %vm3011, %v3001, %v3004
    %v3024 = vsel %vm3014, %v3010, 1326507024
    %v3025 = vsel %vm3013, %v3007, %v3024
    %v3026 = vsel %vm3012, %v3023, %v3025
    %v3027 = vshll.u32 %v2987, 8
    %v3028 = vand.u32 %v3027, 65535
    %v3029 = vshrl.u32 %v3027, 16
    %v3030 = vand.u32 %v3026, 65535
    %v3031 = vshrl.u32 %v3026, 16
    %v3032 = vmul.u32 %v3028, %v3030
    %v3033 = vmul.u32 %v3028, %v3031
    %v3034 = vmul.u32 %v3029, %v3030
    %v3035 = vmul.u32 %v3029, %v3031
    %v3036 = vshll.u32 %v3033, 16
    %v3037 = vshrl.u32 %v3033, 16
    %v3038 = vshll.u32 %v3034, 16
    %v3039 = vshrl.u32 %v3034, 16
    %vm3040 = vc.u32 %v3032, %v3036
    %v3041 = vsel %vm3040, 1, 0
    %v3042 = vadd.s32 %v3032, %v3036
    %v3043 = vadd.s32 %v3035, %v3041
    %vm3044 = vc.u32 %v3042, %v3038
    %v3045 = vsel %vm3044, 1, 0
    %v3046 = vadd.s32 %v3042, %v3038
    %v3047 = vadd.s32 %v3043, %v3045
    %v3048 = vadd.s32 %v3047, %v3037
    %v3049 = vadd.s32 %v3048, %v3039
    %v3050 = vand.u32 %v3027, 65535
    %v3051 = vshrl.u32 %v3027, 16
    %v3052 = vand.u32 %v3022, 65535
    %v3053 = vshrl.u32 %v3022, 16
    %v3054 = vmul.u32 %v3050, %v3052
    %v3055 = vmul.u32 %v3050, %v3053
    %v3056 = vmul.u32 %v3051, %v3052
    %v3057 = vmul.u32 %v3051, %v3053
    %v3058 = vshll.u32 %v3055, 16
    %v3059 = vshrl.u32 %v3055, 16
    %v3060 = vshll.u32 %v3056, 16
    %v3061 = vshrl.u32 %v3056, 16
    %vm3062 = vc.u32 %v3054, %v3058
    %v3063 = vsel %vm3062, 1, 0
    %v3064 = vadd.s32 %v3054, %v3058
    %v3065 = vadd.s32 %v3057, %v3063
    %vm3066 = vc.u32 %v3064, %v3060
    %v3067 = vsel %vm3066, 1, 0
    %v3068 = vadd.s32 %v3064, %v3060
    %v3069 = vadd.s32 %v3065, %v3067
    %v3070 = vadd.s32 %v3069, %v3059
    %v3071 = vadd.s32 %v3070, %v3061
    %v3072 = vmul.u32 %v3027, %v3018
    %v3073 = vadd.s32 %v3049, %v3068
    %vm3074 = vc.u32 %v3049, %v3068
    %v3075 = vadd.s32 %v3071, 1
    %v3076 = vsel %vm3074, %v3075, %v3071
    %v3077 = vadd.s32 %v3072, %v3076
    %v3078 = vadd.s32 %v3077, 536870912
    %v3079 = vshrl.u32 %v3078, 30
    %v3080 = vshll.u32 %v3079, 30
    %v3081 = vsub.s32 %v3077, %v3080
    %vm3082 = vcmp.lt.s32.totalorder %v3081, 0
    %v3083 = vsub.s32 0, %v3081
    %v3084 = vsel %vm3082, %v3083, %v3081
    %v3085 = vclz %v3084
    %v3086 = vsub.s32 %v3085, 2
    %vm3087 = vcmp.gt.s32.totalorder 0, %v3086
    %v3088 = vsel %vm3087, 0, %v3086
    %v3089 = vsub.s32 32, %v3088
    %v3090 = vshll.u32 %v3081, %v3088
    %v3091 = vshrl.u32 %v3073, %v3089
    %v3092 = vor.u32 %v3090, %v3091
    %v3093 = vsub.s32 4294967266, %v3088
    %v3094 = vadd.s32 %v3093, 127
    %v3095 = vshll.u32 %v3094, 23
    %v3096 = vor.u32 4788187, %v3095
    %v3097 = vand.u32 2147483647, %v3096
    %v3099 = vcvt.s32.f32 %v3092
    %v3100 = vmul.f32 %v3099, %v3097
    %v3101 = vxor.u32 %v3100, 2147483648
    %v3102 = vsel %vm2981, %v3101, %v3100
    %v3103 = vsub.s32 4, %v3079
    %v3104 = vsel %vm2981, %v3103, %v3079
    %v3105 = vsel %vm2980, %v1192, %v3102
    %v3106 = vsel %vm2980, 0, %v3104
    %v3107 = vmul.f32 %v3105, %v3105
    %v3108 = vmul.f32 %v3107, -0.001358992
    %v3109 = vadd.f32 %v3108, 0.041655596
    %v3110 = vmul.f32 %v3107, %v3109
    %v3111 = vadd.f32 %v3110, -0.4999988
    %v3112 = vmul.f32 %v3107, %v3111
    %v3113 = vadd.f32 1.0, %v3112
    %v3114 = vmul.f32 %v3105, %v3105
    %v3115 = vmul.f32 %v3114, -0.00019511016
    %v3116 = vadd.f32 %v3115, 0.008332121
    %v3117 = vmul.f32 %v3114, %v3116
    %v3118 = vadd.f32 %v3117, -0.16666654
    %v3119 = vmul.f32 %v3114, %v3118
    %v3120 = vadd.f32 %v3119, 1.0
    %v3121 = vmul.f32 %v3120, %v3105
    %vm3122 = vweird.f32 %v1192
    %v3123 = vadd.s32 %v3106, 3
    %v3124 = vand.u32 %v3123, 3
    %vm3125 = vcmp.lt.s32.totalorder %v3124, 2
    %vm3126 = vcmp.eq.s32.totalorder %v3124, 0
    %v3127 = vxor.u32 %v3121, 2147483648
    %v3128 = vsel %vm3126, %v3113, %v3127
    %vm3129 = vcmp.eq.s32.totalorder %v3124, 2
    %v3130 = vxor.u32 %v3113, 2147483648
    %v3131 = vsel %vm3129, %v3130, %v3121
    %v3132 = vsel %vm3125, %v3128, %v3131
    %v3133 = vsel %vm3122, nan, %v3132
    %v3134 = vand.u32 2147483647, %v1196
    %vm3135 = vcmp.le.f32.partialorder %v3134, 0.7853982
    %vm3136 = vcmp.lt.s32.totalorder %v1196, 0
    %v3137 = vand.u32 %v1196, 2139095040
    %v3138 = vshrl.u32 %v3137, 23
    %v3139 = vsub.s32 %v3138, 127
    %v3140 = vand.u32 2147483647, %v1196
    %v3141 = vand.u32 %v3140, 8388607
    %v3142 = vor.u32 %v3141, 8388608
    %v3143 = vsub.s32 0, %v3142
    %v3144 = vadd.s32 %v3139, 1
    %vm3145 = vcmp.gt.s32.totalorder %v3144, 0
    %v3146 = vsel %vm3145, %v3144, 0
    %v3147 = vshrl.u32 %v3146, 5
    %v3148 = vand.u32 %v3146, 31
    %v3149 = vsub.s32 32, %v3148
    %v3150 = vshrl.u32 683565275, %v3149
    %v3151 = vshll.u32 683565275, %v3148
    %v3152 = vshrl.u32 2475754826, %v3149
    %v3153 = vor.u32 %v3151, %v3152
    %v3154 = vshll.u32 2475754826, %v3148
    %v3155 = vshrl.u32 2131351028, %v3149
    %v3156 = vor.u32 %v3154, %v3155
    %v3157 = vshll.u32 2131351028, %v3148
    %v3158 = vshrl.u32 2102212464, %v3149
    %v3159 = vor.u32 %v3157, %v3158
    %v3160 = vshll.u32 2102212464, %v3148
    %v3161 = vshrl.u32 920167782, %v3149
    %v3162 = vor.u32 %v3160, %v3161
    %v3163 = vshll.u32 920167782, %v3148
    %v3164 = vshrl.u32 1326507024, %v3149
    %v3165 = vor.u32 %v3163, %v3164
    %vm3166 = vcmp.lt.s32.totalorder %v3147, 1
    %vm3167 = vcmp.lt.s32.totalorder %v3147, 2
    %vm3168 = vcmp.lt.s32.totalorder %v3147, 3
    %vm3169 = vcmp.lt.s32.totalorder %v3147, 4
    %v3170 = vsel %vm3166, %v3150, %v3153
    %v3171 = vsel %vm3169, %v3159, 2102212464
    %v3172 = vsel %vm3168, %v3156, %v3171
    %v3173 = vsel %vm3167, %v3170, %v3172
    %v3174 = vsel %vm3166, %v3153, %v3156
    %v3175 = vsel %vm3169, %v3162, 920167782
    %v3176 = vsel %vm3168, %v3159, %v3175
    %v3177 = vsel %vm3167, %v3174, %v3176
    %v3178 = vsel %vm3166, %v3156, %v3159
    %v3179 = vsel %vm3169, %v3165, 1326507024
    %v3180 = vsel %vm3168, %v3162, %v3179
    %v3181 = vsel %vm3167, %v3178, %v3180
    %v3182 = vshll.u32 %v3142, 8
    %v3183 = vand.u32 %v3182, 65535
    %v3184 = vshrl.u32 %v3182, 16
    %v3185 = vand.u32 %v3181, 65535
    %v3186 = vshrl.u32 %v3181, 16
    %v3187 = vmul.u32 %v3183, %v3185
    %v3188 = vmul.u32 %v3183, %v3186
    %v3189 = vmul.u32 %v3184, %v3185
    %v3190 = vmul.u32 %v3184, %v3186
    %v3191 = vshll.u32 %v3188, 16
    %v3192 = vshrl.u32 %v3188, 16
    %v3193 = vshll.u32 %v3189, 16
    %v3194 = vshrl.u32 %v3189, 16
    %vm3195 = vc.u32 %v3187, %v3191
    %v3196 = vsel %vm3195, 1, 0
    %v3197 = vadd.s32 %v3187, %v3191
    %v3198 = vadd.s32 %v3190, %v3196
    %vm3199 = vc.u32 %v3197, %v3193
    %v3200 = vsel %vm3199, 1, 0
    %v3201 = vadd.s32 %v3197, %v3193
    %v3202 = vadd.s32 %v3198, %v3200
    %v3203 = vadd.s32 %v3202, %v3192
    %v3204 = vadd.s32 %v3203, %v3194
    %v3205 = vand.u32 %v3182, 65535
    %v3206 = vshrl.u32 %v3182, 16
    %v3207 = vand.u32 %v3177, 65535
    %v3208 = vshrl.u32 %v3177, 16
    %v3209 = vmul.u32 %v3205, %v3207
    %v3210 = vmul.u32 %v3205, %v3208
    %v3211 = vmul.u32 %v3206, %v3207
    %v3212 = vmul.u32 %v3206, %v3208
    %v3213 = vshll.u32 %v3210, 16
    %v3214 = vshrl.u32 %v3210, 16
    %v3215 = vshll.u32 %v3211, 16
    %v3216 = vshrl.u32 %v3211, 16
    %vm3217 = vc.u32 %v3209, %v3213
    %v3218 = vsel %vm3217, 1, 0
    %v3219 = vadd.s32 %v3209, %v3213
    %v3220 = vadd.s32 %v3212, %v3218
    %vm3221 = vc.u32 %v3219, %v3215
    %v3222 = vsel %vm3221, 1, 0
    %v3223 = vadd.s32 %v3219, %v3215
    %v3224 = vadd.s32 %v3220, %v3222
    %v3225 = vadd.s32 %v3224, %v3214
    %v3226 = vadd.s32 %v3225, %v3216
    %v3227 = vmul.u32 %v3182, %v3173
    %v3228 = vadd.s32 %v3204, %v3223
    %vm3229 = vc.u32 %v3204, %v3223
    %v3230 = vadd.s32 %v3226, 1
    %v3231 = vsel %vm3229, %v3230, %v3226
    %v3232 = vadd.s32 %v3227, %v3231
    %v3233 = vadd.s32 %v3232, 536870912
    %v3234 = vshrl.u32 %v3233, 30
    %v3235 = vshll.u32 %v3234, 30
    %v3236 = vsub.s32 %v3232, %v3235
    %vm3237 = vcmp.lt.s32.totalorder %v3236, 0
    %v3238 = vsub.s32 0, %v3236
    %v3239 = vsel %vm3237, %v3238, %v3236
    %v3240 = vclz %v3239
    %v3241 = vsub.s32 %v3240, 2
    %vm3242 = vcmp.gt.s32.totalorder 0, %v3241
    %v3243 = vsel %vm3242, 0, %v3241
    %v3244 = vsub.s32 32, %v3243
    %v3245 = vshll.u32 %v3236, %v3243
    %v3246 = vshrl.u32 %v3228, %v3244
    %v3247 = vor.u32 %v3245, %v3246
    %v3248 = vsub.s32 4294967266, %v3243
    %v3249 = vadd.s32 %v3248, 127
    %v3250 = vshll.u32 %v3249, 23
    %v3251 = vor.u32 4788187, %v3250
    %v3252 = vand.u32 2147483647, %v3251
    %v3254 = vcvt.s32.f32 %v3247
    %v3255 = vmul.f32 %v3254, %v3252
    %v3256 = vxor.u32 %v3255, 2147483648
    %v3257 = vsel %vm3136, %v3256, %v3255
    %v3258 = vsub.s32 4, %v3234
    %v3259 = vsel %vm3136, %v3258, %v3234
    %v3260 = vsel %vm3135, %v1196, %v3257
    %v3261 = vsel %vm3135, 0, %v3259
    %v3262 = vmul.f32 %v3260, %v3260
    %v3263 = vmul.f32 %v3262, -0.001358992
    %v3264 = vadd.f32 %v3263, 0.041655596
    %v3265 = vmul.f32 %v3262, %v3264
    %v3266 = vadd.f32 %v3265, -0.4999988
    %v3267 = vmul.f32 %v3262, %v3266
    %v3268 = vadd.f32 1.0, %v3267
    %v3269 = vmul.f32 %v3260, %v3260
    %v3270 = vmul.f32 %v3269, -0.00019511016
    %v3271 = vadd.f32 %v3270, 0.008332121
    %v3272 = vmul.f32 %v3269, %v3271
    %v3273 = vadd.f32 %v3272, -0.16666654
    %v3274 = vmul.f32 %v3269, %v3273
    %v3275 = vadd.f32 %v3274, 1.0
    %v3276 = vmul.f32 %v3275, %v3260
    %vm3277 = vweird.f32 %v1196
    %v3278 = vadd.s32 %v3261, 3
    %v3279 = vand.u32 %v3278, 3
    %vm3280 = vcmp.lt.s32.totalorder %v3279, 2
    %vm3281 = vcmp.eq.s32.totalorder %v3279, 0
    %v3282 = vxor.u32 %v3276, 2147483648
    %v3283 = vsel %vm3281, %v3268, %v3282
    %vm3284 = vcmp.eq.s32.totalorder %v3279, 2
    %v3285 = vxor.u32 %v3268, 2147483648
    %v3286 = vsel %vm3284, %v3285, %v3276
    %v3287 = vsel %vm3280, %v3283, %v3286
    %v3288 = vsel %vm3277, nan, %v3287
    %v3289 = vand.u32 2147483647, %v1200
    %vm3290 = vcmp.le.f32.partialorder %v3289, 0.7853982
    %vm3291 = vcmp.lt.s32.totalorder %v1200, 0
    %v3292 = vand.u32 %v1200, 2139095040
    %v3293 = vshrl.u32 %v3292, 23
    %v3294 = vsub.s32 %v3293, 127
    %v3295 = vand.u32 2147483647, %v1200
    %v3296 = vand.u32 %v3295, 8388607
    %v3297 = vor.u32 %v3296, 8388608
    %v3298 = vsub.s32 0, %v3297
    %v3299 = vadd.s32 %v3294, 1
    %vm3300 = vcmp.gt.s32.totalorder %v3299, 0
    %v3301 = vsel %vm3300, %v3299, 0
    %v3302 = vshrl.u32 %v3301, 5
    %v3303 = vand.u32 %v3301, 31
    %v3304 = vsub.s32 32, %v3303
    %v3305 = vshrl.u32 683565275, %v3304
    %v3306 = vshll.u32 683565275, %v3303
    %v3307 = vshrl.u32 2475754826, %v3304
    %v3308 = vor.u32 %v3306, %v3307
    %v3309 = vshll.u32 2475754826, %v3303
    %v3310 = vshrl.u32 2131351028, %v3304
    %v3311 = vor.u32 %v3309, %v3310
    %v3312 = vshll.u32 2131351028, %v3303
    %v3313 = vshrl.u32 2102212464, %v3304
    %v3314 = vor.u32 %v3312, %v3313
    %v3315 = vshll.u32 2102212464, %v3303
    %v3316 = vshrl.u32 920167782, %v3304
    %v3317 = vor.u32 %v3315, %v3316
    %v3318 = vshll.u32 920167782, %v3303
    %v3319 = vshrl.u32 1326507024, %v3304
    %v3320 = vor.u32 %v3318, %v3319
    %vm3321 = vcmp.lt.s32.totalorder %v3302, 1
    %vm3322 = vcmp.lt.s32.totalorder %v3302, 2
    %vm3323 = vcmp.lt.s32.totalorder %v3302, 3
    %vm3324 = vcmp.lt.s32.totalorder %v3302, 4
    %v3325 = vsel %vm3321, %v3305, %v3308
    %v3326 = vsel %vm3324, %v3314, 2102212464
    %v3327 = vsel %vm3323, %v3311, %v3326
    %v3328 = vsel %vm3322, %v3325, %v3327
    %v3329 = vsel %vm3321, %v3308, %v3311
    %v3330 = vsel %vm3324, %v3317, 920167782
    %v3331 = vsel %vm3323, %v3314, %v3330
    %v3332 = vsel %vm3322, %v3329, %v3331
    %v3333 = vsel %vm3321, %v3311, %v3314
    %v3334 = vsel %vm3324, %v3320, 1326507024
    %v3335 = vsel %vm3323, %v3317, %v3334
    %v3336 = vsel %vm3322, %v3333, %v3335
    %v3337 = vshll.u32 %v3297, 8
    %v3338 = vand.u32 %v3337, 65535
    %v3339 = vshrl.u32 %v3337, 16
    %v3340 = vand.u32 %v3336, 65535
    %v3341 = vshrl.u32 %v3336, 16
    %v3342 = vmul.u32 %v3338, %v3340
    %v3343 = vmul.u32 %v3338, %v3341
    %v3344 = vmul.u32 %v3339, %v3340
    %v3345 = vmul.u32 %v3339, %v3341
    %v3346 = vshll.u32 %v3343, 16
    %v3347 = vshrl.u32 %v3343, 16
    %v3348 = vshll.u32 %v3344, 16
    %v3349 = vshrl.u32 %v3344, 16
    %vm3350 = vc.u32 %v3342, %v3346
    %v3351 = vsel %vm3350, 1, 0
    %v3352 = vadd.s32 %v3342, %v3346
    %v3353 = vadd.s32 %v3345, %v3351
    %vm3354 = vc.u32 %v3352, %v3348
    %v3355 = vsel %vm3354, 1, 0
    %v3356 = vadd.s32 %v3352, %v3348
    %v3357 = vadd.s32 %v3353, %v3355
    %v3358 = vadd.s32 %v3357, %v3347
    %v3359 = vadd.s32 %v3358, %v3349
    %v3360 = vand.u32 %v3337, 65535
    %v3361 = vshrl.u32 %v3337, 16
    %v3362 = vand.u32 %v3332, 65535
    %v3363 = vshrl.u32 %v3332, 16
    %v3364 = vmul.u32 %v3360, %v3362
    %v3365 = vmul.u32 %v3360, %v3363
    %v3366 = vmul.u32 %v3361, %v3362
    %v3367 = vmul.u32 %v3361, %v3363
    %v3368 = vshll.u32 %v3365, 16
    %v3369 = vshrl.u32 %v3365, 16
    %v3370 = vshll.u32 %v3366, 16
    %v3371 = vshrl.u32 %v3366, 16
    %vm3372 = vc.u32 %v3364, %v3368
    %v3373 = vsel %vm3372, 1, 0
    %v3374 = vadd.s32 %v3364, %v3368
    %v3375 = vadd.s32 %v3367, %v3373
    %vm3376 = vc.u32 %v3374, %v3370
    %v3377 = vsel %vm3376, 1, 0
    %v3378 = vadd.s32 %v3374, %v3370
    %v3379 = vadd.s32 %v3375, %v3377
    %v3380 = vadd.s32 %v3379, %v3369
    %v3381 = vadd.s32 %v3380, %v3371
    %v3382 = vmul.u32 %v3337, %v3328
    %v3383 = vadd.s32 %v3359, %v3378
    %vm3384 = vc.u32 %v3359, %v3378
    %v3385 = vadd.s32 %v3381, 1
    %v3386 = vsel %vm3384, %v3385, %v3381
    %v3387 = vadd.s32 %v3382, %v3386
    %v3388 = vadd.s32 %v3387, 536870912
    %v3389 = vshrl.u32 %v3388, 30
    %v3390 = vshll.u32 %v3389, 30
    %v3391 = vsub.s32 %v3387, %v3390
    %vm3392 = vcmp.lt.s32.totalorder %v3391, 0
    %v3393 = vsub.s32 0, %v3391
    %v3394 = vsel %vm3392, %v3393, %v3391
    %v3395 = vclz %v3394
    %v3396 = vsub.s32 %v3395, 2
    %vm3397 = vcmp.gt.s32.totalorder 0, %v3396
    %v3398 = vsel %vm3397, 0, %v3396
    %v3399 = vsub.s32 32, %v3398
    %v3400 = vshll.u32 %v3391, %v3398
    %v3401 = vshrl.u32 %v3383, %v3399
    %v3402 = vor.u32 %v3400, %v3401
    %v3403 = vsub.s32 4294967266, %v3398
    %v3404 = vadd.s32 %v3403, 127
    %v3405 = vshll.u32 %v3404, 23
    %v3406 = vor.u32 4788187, %v3405
    %v3407 = vand.u32 2147483647, %v3406
    %v3409 = vcvt.s32.f32 %v3402
    %v3410 = vmul.f32 %v3409, %v3407
    %v3411 = vxor.u32 %v3410, 2147483648
    %v3412 = vsel %vm3291, %v3411, %v3410
    %v3413 = vsub.s32 4, %v3389
    %v3414 = vsel %vm3291, %v3413, %v3389
    %v3415 = vsel %vm3290, %v1200, %v3412
    %v3416 = vsel %vm3290, 0, %v3414
    %v3417 = vmul.f32 %v3415, %v3415
    %v3418 = vmul.f32 %v3417, -0.001358992
    %v3419 = vadd.f32 %v3418, 0.041655596
    %v3420 = vmul.f32 %v3417, %v3419
    %v3421 = vadd.f32 %v3420, -0.4999988
    %v3422 = vmul.f32 %v3417, %v3421
    %v3423 = vadd.f32 1.0, %v3422
    %v3424 = vmul.f32 %v3415, %v3415
    %v3425 = vmul.f32 %v3424, -0.00019511016
    %v3426 = vadd.f32 %v3425, 0.008332121
    %v3427 = vmul.f32 %v3424, %v3426
    %v3428 = vadd.f32 %v3427, -0.16666654
    %v3429 = vmul.f32 %v3424, %v3428
    %v3430 = vadd.f32 %v3429, 1.0
    %v3431 = vmul.f32 %v3430, %v3415
    %vm3432 = vweird.f32 %v1200
    %v3433 = vadd.s32 %v3416, 3
    %v3434 = vand.u32 %v3433, 3
    %vm3435 = vcmp.lt.s32.totalorder %v3434, 2
    %vm3436 = vcmp.eq.s32.totalorder %v3434, 0
    %v3437 = vxor.u32 %v3431, 2147483648
    %v3438 = vsel %vm3436, %v3423, %v3437
    %vm3439 = vcmp.eq.s32.totalorder %v3434, 2
    %v3440 = vxor.u32 %v3423, 2147483648
    %v3441 = vsel %vm3439, %v3440, %v3431
    %v3442 = vsel %vm3435, %v3438, %v3441
    %v3443 = vsel %vm3432, nan, %v3442
    %v3444 = vand.u32 2147483647, %v1204
    %vm3445 = vcmp.le.f32.partialorder %v3444, 0.7853982
    %vm3446 = vcmp.lt.s32.totalorder %v1204, 0
    %v3447 = vand.u32 %v1204, 2139095040
    %v3448 = vshrl.u32 %v3447, 23
    %v3449 = vsub.s32 %v3448, 127
    %v3450 = vand.u32 2147483647, %v1204
    %v3451 = vand.u32 %v3450, 8388607
    %v3452 = vor.u32 %v3451, 8388608
    %v3453 = vsub.s32 0, %v3452
    %v3454 = vadd.s32 %v3449, 1
    %vm3455 = vcmp.gt.s32.totalorder %v3454, 0
    %v3456 = vsel %vm3455, %v3454, 0
    %v3457 = vshrl.u32 %v3456, 5
    %v3458 = vand.u32 %v3456, 31
    %v3459 = vsub.s32 32, %v3458
    %v3460 = vshrl.u32 683565275, %v3459
    %v3461 = vshll.u32 683565275, %v3458
    %v3462 = vshrl.u32 2475754826, %v3459
    %v3463 = vor.u32 %v3461, %v3462
    %v3464 = vshll.u32 2475754826, %v3458
    %v3465 = vshrl.u32 2131351028, %v3459
    %v3466 = vor.u32 %v3464, %v3465
    %v3467 = vshll.u32 2131351028, %v3458
    %v3468 = vshrl.u32 2102212464, %v3459
    %v3469 = vor.u32 %v3467, %v3468
    %v3470 = vshll.u32 2102212464, %v3458
    %v3471 = vshrl.u32 920167782, %v3459
    %v3472 = vor.u32 %v3470, %v3471
    %v3473 = vshll.u32 920167782, %v3458
    %v3474 = vshrl.u32 1326507024, %v3459
    %v3475 = vor.u32 %v3473, %v3474
    %vm3476 = vcmp.lt.s32.totalorder %v3457, 1
    %vm3477 = vcmp.lt.s32.totalorder %v3457, 2
    %vm3478 = vcmp.lt.s32.totalorder %v3457, 3
    %vm3479 = vcmp.lt.s32.totalorder %v3457, 4
    %v3480 = vsel %vm3476, %v3460, %v3463
    %v3481 = vsel %vm3479, %v3469, 2102212464
    %v3482 = vsel %vm3478, %v3466, %v3481
    %v3483 = vsel %vm3477, %v3480, %v3482
    %v3484 = vsel %vm3476, %v3463, %v3466
    %v3485 = vsel %vm3479, %v3472, 920167782
    %v3486 = vsel %vm3478, %v3469, %v3485
    %v3487 = vsel %vm3477, %v3484, %v3486
    %v3488 = vsel %vm3476, %v3466, %v3469
    %v3489 = vsel %vm3479, %v3475, 1326507024
    %v3490 = vsel %vm3478, %v3472, %v3489
    %v3491 = vsel %vm3477, %v3488, %v3490
    %v3492 = vshll.u32 %v3452, 8
    %v3493 = vand.u32 %v3492, 65535
    %v3494 = vshrl.u32 %v3492, 16
    %v3495 = vand.u32 %v3491, 65535
    %v3496 = vshrl.u32 %v3491, 16
    %v3497 = vmul.u32 %v3493, %v3495
    %v3498 = vmul.u32 %v3493, %v3496
    %v3499 = vmul.u32 %v3494, %v3495
    %v3500 = vmul.u32 %v3494, %v3496
    %v3501 = vshll.u32 %v3498, 16
    %v3502 = vshrl.u32 %v3498, 16
    %v3503 = vshll.u32 %v3499, 16
    %v3504 = vshrl.u32 %v3499, 16
    %vm3505 = vc.u32 %v3497, %v3501
    %v3506 = vsel %vm3505, 1, 0
    %v3507 = vadd.s32 %v3497, %v3501
    %v3508 = vadd.s32 %v3500, %v3506
    %vm3509 = vc.u32 %v3507, %v3503
    %v3510 = vsel %vm3509, 1, 0
    %v3511 = vadd.s32 %v3507, %v3503
    %v3512 = vadd.s32 %v3508, %v3510
    %v3513 = vadd.s32 %v3512, %v3502
    %v3514 = vadd.s32 %v3513, %v3504
    %v3515 = vand.u32 %v3492, 65535
    %v3516 = vshrl.u32 %v3492, 16
    %v3517 = vand.u32 %v3487, 65535
    %v3518 = vshrl.u32 %v3487, 16
    %v3519 = vmul.u32 %v3515, %v3517
    %v3520 = vmul.u32 %v3515, %v3518
    %v3521 = vmul.u32 %v3516, %v3517
    %v3522 = vmul.u32 %v3516, %v3518
    %v3523 = vshll.u32 %v3520, 16
    %v3524 = vshrl.u32 %v3520, 16
    %v3525 = vshll.u32 %v3521, 16
    %v3526 = vshrl.u32 %v3521, 16
    %vm3527 = vc.u32 %v3519, %v3523
    %v3528 = vsel %vm3527, 1, 0
    %v3529 = vadd.s32 %v3519, %v3523
    %v3530 = vadd.s32 %v3522, %v3528
    %vm3531 = vc.u32 %v3529, %v3525
    %v3532 = vsel %vm3531, 1, 0
    %v3533 = vadd.s32 %v3529, %v3525
    %v3534 = vadd.s32 %v3530, %v3532
    %v3535 = vadd.s32 %v3534, %v3524
    %v3536 = vadd.s32 %v3535, %v3526
    %v3537 = vmul.u32 %v3492, %v3483
    %v3538 = vadd.s32 %v3514, %v3533
    %vm3539 = vc.u32 %v3514, %v3533
    %v3540 = vadd.s32 %v3536, 1
    %v3541 = vsel %vm3539, %v3540, %v3536
    %v3542 = vadd.s32 %v3537, %v3541
    %v3543 = vadd.s32 %v3542, 536870912
    %v3544 = vshrl.u32 %v3543, 30
    %v3545 = vshll.u32 %v3544, 30
    %v3546 = vsub.s32 %v3542, %v3545
    %vm3547 = vcmp.lt.s32.totalorder %v3546, 0
    %v3548 = vsub.s32 0, %v3546
    %v3549 = vsel %vm3547, %v3548, %v3546
    %v3550 = vclz %v3549
    %v3551 = vsub.s32 %v3550, 2
    %vm3552 = vcmp.gt.s32.totalorder 0, %v3551
    %v3553 = vsel %vm3552, 0, %v3551
    %v3554 = vsub.s32 32, %v3553
    %v3555 = vshll.u32 %v3546, %v3553
    %v3556 = vshrl.u32 %v3538, %v3554
    %v3557 = vor.u32 %v3555, %v3556
    %v3558 = vsub.s32 4294967266, %v3553
    %v3559 = vadd.s32 %v3558, 127
    %v3560 = vshll.u32 %v3559, 23
    %v3561 = vor.u32 4788187, %v3560
    %v3562 = vand.u32 2147483647, %v3561
    %v3564 = vcvt.s32.f32 %v3557
    %v3565 = vmul.f32 %v3564, %v3562
    %v3566 = vxor.u32 %v3565, 2147483648
    %v3567 = vsel %vm3446, %v3566, %v3565
    %v3568 = vsub.s32 4, %v3544
    %v3569 = vsel %vm3446, %v3568, %v3544
    %v3570 = vsel %vm3445, %v1204, %v3567
    %v3571 = vsel %vm3445, 0, %v3569
    %v3572 = vmul.f32 %v3570, %v3570
    %v3573 = vmul.f32 %v3572, -0.001358992
    %v3574 = vadd.f32 %v3573, 0.041655596
    %v3575 = vmul.f32 %v3572, %v3574
    %v3576 = vadd.f32 %v3575, -0.4999988
    %v3577 = vmul.f32 %v3572, %v3576
    %v3578 = vadd.f32 1.0, %v3577
    %v3579 = vmul.f32 %v3570, %v3570
    %v3580 = vmul.f32 %v3579, -0.00019511016
    %v3581 = vadd.f32 %v3580, 0.008332121
    %v3582 = vmul.f32 %v3579, %v3581
    %v3583 = vadd.f32 %v3582, -0.16666654
    %v3584 = vmul.f32 %v3579, %v3583
    %v3585 = vadd.f32 %v3584, 1.0
    %v3586 = vmul.f32 %v3585, %v3570
    %vm3587 = vweird.f32 %v1204
    %v3588 = vadd.s32 %v3571, 3
    %v3589 = vand.u32 %v3588, 3
    %vm3590 = vcmp.lt.s32.totalorder %v3589, 2
    %vm3591 = vcmp.eq.s32.totalorder %v3589, 0
    %v3592 = vxor.u32 %v3586, 2147483648
    %v3593 = vsel %vm3591, %v3578, %v3592
    %vm3594 = vcmp.eq.s32.totalorder %v3589, 2
    %v3595 = vxor.u32 %v3578, 2147483648
    %v3596 = vsel %vm3594, %v3595, %v3586
    %v3597 = vsel %vm3590, %v3593, %v3596
    %v3598 = vsel %vm3587, nan, %v3597
    %v3599 = vand.u32 2147483647, %v1208
    %vm3600 = vcmp.le.f32.partialorder %v3599, 0.7853982
    %vm3601 = vcmp.lt.s32.totalorder %v1208, 0
    %v3602 = vand.u32 %v1208, 2139095040
    %v3603 = vshrl.u32 %v3602, 23
    %v3604 = vsub.s32 %v3603, 127
    %v3605 = vand.u32 2147483647, %v1208
    %v3606 = vand.u32 %v3605, 8388607
    %v3607 = vor.u32 %v3606, 8388608
    %v3608 = vsub.s32 0, %v3607
    %v3609 = vadd.s32 %v3604, 1
    %vm3610 = vcmp.gt.s32.totalorder %v3609, 0
    %v3611 = vsel %vm3610, %v3609, 0
    %v3612 = vshrl.u32 %v3611, 5
    %v3613 = vand.u32 %v3611, 31
    %v3614 = vsub.s32 32, %v3613
    %v3615 = vshrl.u32 683565275, %v3614
    %v3616 = vshll.u32 683565275, %v3613
    %v3617 = vshrl.u32 2475754826, %v3614
    %v3618 = vor.u32 %v3616, %v3617
    %v3619 = vshll.u32 2475754826, %v3613
    %v3620 = vshrl.u32 2131351028, %v3614
    %v3621 = vor.u32 %v3619, %v3620
    %v3622 = vshll.u32 2131351028, %v3613
    %v3623 = vshrl.u32 2102212464, %v3614
    %v3624 = vor.u32 %v3622, %v3623
    %v3625 = vshll.u32 2102212464, %v3613
    %v3626 = vshrl.u32 920167782, %v3614
    %v3627 = vor.u32 %v3625, %v3626
    %v3628 = vshll.u32 920167782, %v3613
    %v3629 = vshrl.u32 1326507024, %v3614
    %v3630 = vor.u32 %v3628, %v3629
    %vm3631 = vcmp.lt.s32.totalorder %v3612, 1
    %vm3632 = vcmp.lt.s32.totalorder %v3612, 2
    %vm3633 = vcmp.lt.s32.totalorder %v3612, 3
    %vm3634 = vcmp.lt.s32.totalorder %v3612, 4
    %v3635 = vsel %vm3631, %v3615, %v3618
    %v3636 = vsel %vm3634, %v3624, 2102212464
    %v3637 = vsel %vm3633, %v3621, %v3636
    %v3638 = vsel %vm3632, %v3635, %v3637
    %v3639 = vsel %vm3631, %v3618, %v3621
    %v3640 = vsel %vm3634, %v3627, 920167782
    %v3641 = vsel %vm3633, %v3624, %v3640
    %v3642 = vsel %vm3632, %v3639, %v3641
    %v3643 = vsel %vm3631, %v3621, %v3624
    %v3644 = vsel %vm3634, %v3630, 1326507024
    %v3645 = vsel %vm3633, %v3627, %v3644
    %v3646 = vsel %vm3632, %v3643, %v3645
    %v3647 = vshll.u32 %v3607, 8
    %v3648 = vand.u32 %v3647, 65535
    %v3649 = vshrl.u32 %v3647, 16
    %v3650 = vand.u32 %v3646, 65535
    %v3651 = vshrl.u32 %v3646, 16
    %v3652 = vmul.u32 %v3648, %v3650
    %v3653 = vmul.u32 %v3648, %v3651
    %v3654 = vmul.u32 %v3649, %v3650
    %v3655 = vmul.u32 %v3649, %v3651
    %v3656 = vshll.u32 %v3653, 16
    %v3657 = vshrl.u32 %v3653, 16
    %v3658 = vshll.u32 %v3654, 16
    %v3659 = vshrl.u32 %v3654, 16
    %vm3660 = vc.u32 %v3652, %v3656
    %v3661 = vsel %vm3660, 1, 0
    %v3662 = vadd.s32 %v3652, %v3656
    %v3663 = vadd.s32 %v3655, %v3661
    %vm3664 = vc.u32 %v3662, %v3658
    %v3665 = vsel %vm3664, 1, 0
    %v3666 = vadd.s32 %v3662, %v3658
    %v3667 = vadd.s32 %v3663, %v3665
    %v3668 = vadd.s32 %v3667, %v3657
    %v3669 = vadd.s32 %v3668, %v3659
    %v3670 = vand.u32 %v3647, 65535
    %v3671 = vshrl.u32 %v3647, 16
    %v3672 = vand.u32 %v3642, 65535
    %v3673 = vshrl.u32 %v3642, 16
    %v3674 = vmul.u32 %v3670, %v3672
    %v3675 = vmul.u32 %v3670, %v3673
    %v3676 = vmul.u32 %v3671, %v3672
    %v3677 = vmul.u32 %v3671, %v3673
    %v3678 = vshll.u32 %v3675, 16
    %v3679 = vshrl.u32 %v3675, 16
    %v3680 = vshll.u32 %v3676, 16
    %v3681 = vshrl.u32 %v3676, 16
    %vm3682 = vc.u32 %v3674, %v3678
    %v3683 = vsel %vm3682, 1, 0
    %v3684 = vadd.s32 %v3674, %v3678
    %v3685 = vadd.s32 %v3677, %v3683
    %vm3686 = vc.u32 %v3684, %v3680
    %v3687 = vsel %vm3686, 1, 0
    %v3688 = vadd.s32 %v3684, %v3680
    %v3689 = vadd.s32 %v3685, %v3687
    %v3690 = vadd.s32 %v3689, %v3679
    %v3691 = vadd.s32 %v3690, %v3681
    %v3692 = vmul.u32 %v3647, %v3638
    %v3693 = vadd.s32 %v3669, %v3688
    %vm3694 = vc.u32 %v3669, %v3688
    %v3695 = vadd.s32 %v3691, 1
    %v3696 = vsel %vm3694, %v3695, %v3691
    %v3697 = vadd.s32 %v3692, %v3696
    %v3698 = vadd.s32 %v3697, 536870912
    %v3699 = vshrl.u32 %v3698, 30
    %v3700 = vshll.u32 %v3699, 30
    %v3701 = vsub.s32 %v3697, %v3700
    %vm3702 = vcmp.lt.s32.totalorder %v3701, 0
    %v3703 = vsub.s32 0, %v3701
    %v3704 = vsel %vm3702, %v3703, %v3701
    %v3705 = vclz %v3704
    %v3706 = vsub.s32 %v3705, 2
    %vm3707 = vcmp.gt.s32.totalorder 0, %v3706
    %v3708 = vsel %vm3707, 0, %v3706
    %v3709 = vsub.s32 32, %v3708
    %v3710 = vshll.u32 %v3701, %v3708
    %v3711 = vshrl.u32 %v3693, %v3709
    %v3712 = vor.u32 %v3710, %v3711
    %v3713 = vsub.s32 4294967266, %v3708
    %v3714 = vadd.s32 %v3713, 127
    %v3715 = vshll.u32 %v3714, 23
    %v3716 = vor.u32 4788187, %v3715
    %v3717 = vand.u32 2147483647, %v3716
    %v3719 = vcvt.s32.f32 %v3712
    %v3720 = vmul.f32 %v3719, %v3717
    %v3721 = vxor.u32 %v3720, 2147483648
    %v3722 = vsel %vm3601, %v3721, %v3720
    %v3723 = vsub.s32 4, %v3699
    %v3724 = vsel %vm3601, %v3723, %v3699
    %v3725 = vsel %vm3600, %v1208, %v3722
    %v3726 = vsel %vm3600, 0, %v3724
    %v3727 = vmul.f32 %v3725, %v3725
    %v3728 = vmul.f32 %v3727, -0.001358992
    %v3729 = vadd.f32 %v3728, 0.041655596
    %v3730 = vmul.f32 %v3727, %v3729
    %v3731 = vadd.f32 %v3730, -0.4999988
    %v3732 = vmul.f32 %v3727, %v3731
    %v3733 = vadd.f32 1.0, %v3732
    %v3734 = vmul.f32 %v3725, %v3725
    %v3735 = vmul.f32 %v3734, -0.00019511016
    %v3736 = vadd.f32 %v3735, 0.008332121
    %v3737 = vmul.f32 %v3734, %v3736
    %v3738 = vadd.f32 %v3737, -0.16666654
    %v3739 = vmul.f32 %v3734, %v3738
    %v3740 = vadd.f32 %v3739, 1.0
    %v3741 = vmul.f32 %v3740, %v3725
    %vm3742 = vweird.f32 %v1208
    %v3743 = vadd.s32 %v3726, 3
    %v3744 = vand.u32 %v3743, 3
    %vm3745 = vcmp.lt.s32.totalorder %v3744, 2
    %vm3746 = vcmp.eq.s32.totalorder %v3744, 0
    %v3747 = vxor.u32 %v3741, 2147483648
    %v3748 = vsel %vm3746, %v3733, %v3747
    %vm3749 = vcmp.eq.s32.totalorder %v3744, 2
    %v3750 = vxor.u32 %v3733, 2147483648
    %v3751 = vsel %vm3749, %v3750, %v3741
    %v3752 = vsel %vm3745, %v3748, %v3751
    %v3753 = vsel %vm3742, nan, %v3752
    %v3754 = vand.u32 2147483647, %v1212
    %vm3755 = vcmp.le.f32.partialorder %v3754, 0.7853982
    %vm3756 = vcmp.lt.s32.totalorder %v1212, 0
    %v3757 = vand.u32 %v1212, 2139095040
    %v3758 = vshrl.u32 %v3757, 23
    %v3759 = vsub.s32 %v3758, 127
    %v3760 = vand.u32 2147483647, %v1212
    %v3761 = vand.u32 %v3760, 8388607
    %v3762 = vor.u32 %v3761, 8388608
    %v3763 = vsub.s32 0, %v3762
    %v3764 = vadd.s32 %v3759, 1
    %vm3765 = vcmp.gt.s32.totalorder %v3764, 0
    %v3766 = vsel %vm3765, %v3764, 0
    %v3767 = vshrl.u32 %v3766, 5
    %v3768 = vand.u32 %v3766, 31
    %v3769 = vsub.s32 32, %v3768
    %v3770 = vshrl.u32 683565275, %v3769
    %v3771 = vshll.u32 683565275, %v3768
    %v3772 = vshrl.u32 2475754826, %v3769
    %v3773 = vor.u32 %v3771, %v3772
    %v3774 = vshll.u32 2475754826, %v3768
    %v3775 = vshrl.u32 2131351028, %v3769
    %v3776 = vor.u32 %v3774, %v3775
    %v3777 = vshll.u32 2131351028, %v3768
    %v3778 = vshrl.u32 2102212464, %v3769
    %v3779 = vor.u32 %v3777, %v3778
    %v3780 = vshll.u32 2102212464, %v3768
    %v3781 = vshrl.u32 920167782, %v3769
    %v3782 = vor.u32 %v3780, %v3781
    %v3783 = vshll.u32 920167782, %v3768
    %v3784 = vshrl.u32 1326507024, %v3769
    %v3785 = vor.u32 %v3783, %v3784
    %vm3786 = vcmp.lt.s32.totalorder %v3767, 1
    %vm3787 = vcmp.lt.s32.totalorder %v3767, 2
    %vm3788 = vcmp.lt.s32.totalorder %v3767, 3
    %vm3789 = vcmp.lt.s32.totalorder %v3767, 4
    %v3790 = vsel %vm3786, %v3770, %v3773
    %v3791 = vsel %vm3789, %v3779, 2102212464
    %v3792 = vsel %vm3788, %v3776, %v3791
    %v3793 = vsel %vm3787, %v3790, %v3792
    %v3794 = vsel %vm3786, %v3773, %v3776
    %v3795 = vsel %vm3789, %v3782, 920167782
    %v3796 = vsel %vm3788, %v3779, %v3795
    %v3797 = vsel %vm3787, %v3794, %v3796
    %v3798 = vsel %vm3786, %v3776, %v3779
    %v3799 = vsel %vm3789, %v3785, 1326507024
    %v3800 = vsel %vm3788, %v3782, %v3799
    %v3801 = vsel %vm3787, %v3798, %v3800
    %v3802 = vshll.u32 %v3762, 8
    %v3803 = vand.u32 %v3802, 65535
    %v3804 = vshrl.u32 %v3802, 16
    %v3805 = vand.u32 %v3801, 65535
    %v3806 = vshrl.u32 %v3801, 16
    %v3807 = vmul.u32 %v3803, %v3805
    %v3808 = vmul.u32 %v3803, %v3806
    %v3809 = vmul.u32 %v3804, %v3805
    %v3810 = vmul.u32 %v3804, %v3806
    %v3811 = vshll.u32 %v3808, 16
    %v3812 = vshrl.u32 %v3808, 16
    %v3813 = vshll.u32 %v3809, 16
    %v3814 = vshrl.u32 %v3809, 16
    %vm3815 = vc.u32 %v3807, %v3811
    %v3816 = vsel %vm3815, 1, 0
    %v3817 = vadd.s32 %v3807, %v3811
    %v3818 = vadd.s32 %v3810, %v3816
    %vm3819 = vc.u32 %v3817, %v3813
    %v3820 = vsel %vm3819, 1, 0
    %v3821 = vadd.s32 %v3817, %v3813
    %v3822 = vadd.s32 %v3818, %v3820
    %v3823 = vadd.s32 %v3822, %v3812
    %v3824 = vadd.s32 %v3823, %v3814
    %v3825 = vand.u32 %v3802, 65535
    %v3826 = vshrl.u32 %v3802, 16
    %v3827 = vand.u32 %v3797, 65535
    %v3828 = vshrl.u32 %v3797, 16
    %v3829 = vmul.u32 %v3825, %v3827
    %v3830 = vmul.u32 %v3825, %v3828
    %v3831 = vmul.u32 %v3826, %v3827
    %v3832 = vmul.u32 %v3826, %v3828
    %v3833 = vshll.u32 %v3830, 16
    %v3834 = vshrl.u32 %v3830, 16
    %v3835 = vshll.u32 %v3831, 16
    %v3836 = vshrl.u32 %v3831, 16
    %vm3837 = vc.u32 %v3829, %v3833
    %v3838 = vsel %vm3837, 1, 0
    %v3839 = vadd.s32 %v3829, %v3833
    %v3840 = vadd.s32 %v3832, %v3838
    %vm3841 = vc.u32 %v3839, %v3835
    %v3842 = vsel %vm3841, 1, 0
    %v3843 = vadd.s32 %v3839, %v3835
    %v3844 = vadd.s32 %v3840, %v3842
    %v3845 = vadd.s32 %v3844, %v3834
    %v3846 = vadd.s32 %v3845, %v3836
    %v3847 = vmul.u32 %v3802, %v3793
    %v3848 = vadd.s32 %v3824, %v3843
    %vm3849 = vc.u32 %v3824, %v3843
    %v3850 = vadd.s32 %v3846, 1
    %v3851 = vsel %vm3849, %v3850, %v3846
    %v3852 = vadd.s32 %v3847, %v3851
    %v3853 = vadd.s32 %v3852, 536870912
    %v3854 = vshrl.u32 %v3853, 30
    %v3855 = vshll.u32 %v3854, 30
    %v3856 = vsub.s32 %v3852, %v3855
    %vm3857 = vcmp.lt.s32.totalorder %v3856, 0
    %v3858 = vsub.s32 0, %v3856
    %v3859 = vsel %vm3857, %v3858, %v3856
    %v3860 = vclz %v3859
    %v3861 = vsub.s32 %v3860, 2
    %vm3862 = vcmp.gt.s32.totalorder 0, %v3861
    %v3863 = vsel %vm3862, 0, %v3861
    %v3864 = vsub.s32 32, %v3863
    %v3865 = vshll.u32 %v3856, %v3863
    %v3866 = vshrl.u32 %v3848, %v3864
    %v3867 = vor.u32 %v3865, %v3866
    %v3868 = vsub.s32 4294967266, %v3863
    %v3869 = vadd.s32 %v3868, 127
    %v3870 = vshll.u32 %v3869, 23
    %v3871 = vor.u32 4788187, %v3870
    %v3872 = vand.u32 2147483647, %v3871
    %v3874 = vcvt.s32.f32 %v3867
    %v3875 = vmul.f32 %v3874, %v3872
    %v3876 = vxor.u32 %v3875, 2147483648
    %v3877 = vsel %vm3756, %v3876, %v3875
    %v3878 = vsub.s32 4, %v3854
    %v3879 = vsel %vm3756, %v3878, %v3854
    %v3880 = vsel %vm3755, %v1212, %v3877
    %v3881 = vsel %vm3755, 0, %v3879
    %v3882 = vmul.f32 %v3880, %v3880
    %v3883 = vmul.f32 %v3882, -0.001358992
    %v3884 = vadd.f32 %v3883, 0.041655596
    %v3885 = vmul.f32 %v3882, %v3884
    %v3886 = vadd.f32 %v3885, -0.4999988
    %v3887 = vmul.f32 %v3882, %v3886
    %v3888 = vadd.f32 1.0, %v3887
    %v3889 = vmul.f32 %v3880, %v3880
    %v3890 = vmul.f32 %v3889, -0.00019511016
    %v3891 = vadd.f32 %v3890, 0.008332121
    %v3892 = vmul.f32 %v3889, %v3891
    %v3893 = vadd.f32 %v3892, -0.16666654
    %v3894 = vmul.f32 %v3889, %v3893
    %v3895 = vadd.f32 %v3894, 1.0
    %v3896 = vmul.f32 %v3895, %v3880
    %vm3897 = vweird.f32 %v1212
    %v3898 = vadd.s32 %v3881, 3
    %v3899 = vand.u32 %v3898, 3
    %vm3900 = vcmp.lt.s32.totalorder %v3899, 2
    %vm3901 = vcmp.eq.s32.totalorder %v3899, 0
    %v3902 = vxor.u32 %v3896, 2147483648
    %v3903 = vsel %vm3901, %v3888, %v3902
    %vm3904 = vcmp.eq.s32.totalorder %v3899, 2
    %v3905 = vxor.u32 %v3888, 2147483648
    %v3906 = vsel %vm3904, %v3905, %v3896
    %v3907 = vsel %vm3900, %v3903, %v3906
    %v3908 = vsel %vm3897, nan, %v3907
    %v3909 = vand.u32 2147483647, %v1216
    %vm3910 = vcmp.le.f32.partialorder %v3909, 0.7853982
    %vm3911 = vcmp.lt.s32.totalorder %v1216, 0
    %v3912 = vand.u32 %v1216, 2139095040
    %v3913 = vshrl.u32 %v3912, 23
    %v3914 = vsub.s32 %v3913, 127
    %v3915 = vand.u32 2147483647, %v1216
    %v3916 = vand.u32 %v3915, 8388607
    %v3917 = vor.u32 %v3916, 8388608
    %v3918 = vsub.s32 0, %v3917
    %v3919 = vadd.s32 %v3914, 1
    %vm3920 = vcmp.gt.s32.totalorder %v3919, 0
    %v3921 = vsel %vm3920, %v3919, 0
    %v3922 = vshrl.u32 %v3921, 5
    %v3923 = vand.u32 %v3921, 31
    %v3924 = vsub.s32 32, %v3923
    %v3925 = vshrl.u32 683565275, %v3924
    %v3926 = vshll.u32 683565275, %v3923
    %v3927 = vshrl.u32 2475754826, %v3924
    %v3928 = vor.u32 %v3926, %v3927
    %v3929 = vshll.u32 2475754826, %v3923
    %v3930 = vshrl.u32 2131351028, %v3924
    %v3931 = vor.u32 %v3929, %v3930
    %v3932 = vshll.u32 2131351028, %v3923
    %v3933 = vshrl.u32 2102212464, %v3924
    %v3934 = vor.u32 %v3932, %v3933
    %v3935 = vshll.u32 2102212464, %v3923
    %v3936 = vshrl.u32 920167782, %v3924
    %v3937 = vor.u32 %v3935, %v3936
    %v3938 = vshll.u32 920167782, %v3923
    %v3939 = vshrl.u32 1326507024, %v3924
    %v3940 = vor.u32 %v3938, %v3939
    %vm3941 = vcmp.lt.s32.totalorder %v3922, 1
    %vm3942 = vcmp.lt.s32.totalorder %v3922, 2
    %vm3943 = vcmp.lt.s32.totalorder %v3922, 3
    %vm3944 = vcmp.lt.s32.totalorder %v3922, 4
    %v3945 = vsel %vm3941, %v3925, %v3928
    %v3946 = vsel %vm3944, %v3934, 2102212464
    %v3947 = vsel %vm3943, %v3931, %v3946
    %v3948 = vsel %vm3942, %v3945, %v3947
    %v3949 = vsel %vm3941, %v3928, %v3931
    %v3950 = vsel %vm3944, %v3937, 920167782
    %v3951 = vsel %vm3943, %v3934, %v3950
    %v3952 = vsel %vm3942, %v3949, %v3951
    %v3953 = vsel %vm3941, %v3931, %v3934
    %v3954 = vsel %vm3944, %v3940, 1326507024
    %v3955 = vsel %vm3943, %v3937, %v3954
    %v3956 = vsel %vm3942, %v3953, %v3955
    %v3957 = vshll.u32 %v3917, 8
    %v3958 = vand.u32 %v3957, 65535
    %v3959 = vshrl.u32 %v3957, 16
    %v3960 = vand.u32 %v3956, 65535
    %v3961 = vshrl.u32 %v3956, 16
    %v3962 = vmul.u32 %v3958, %v3960
    %v3963 = vmul.u32 %v3958, %v3961
    %v3964 = vmul.u32 %v3959, %v3960
    %v3965 = vmul.u32 %v3959, %v3961
    %v3966 = vshll.u32 %v3963, 16
    %v3967 = vshrl.u32 %v3963, 16
    %v3968 = vshll.u32 %v3964, 16
    %v3969 = vshrl.u32 %v3964, 16
    %vm3970 = vc.u32 %v3962, %v3966
    %v3971 = vsel %vm3970, 1, 0
    %v3972 = vadd.s32 %v3962, %v3966
    %v3973 = vadd.s32 %v3965, %v3971
    %vm3974 = vc.u32 %v3972, %v3968
    %v3975 = vsel %vm3974, 1, 0
    %v3976 = vadd.s32 %v3972, %v3968
    %v3977 = vadd.s32 %v3973, %v3975
    %v3978 = vadd.s32 %v3977, %v3967
    %v3979 = vadd.s32 %v3978, %v3969
    %v3980 = vand.u32 %v3957, 65535
    %v3981 = vshrl.u32 %v3957, 16
    %v3982 = vand.u32 %v3952, 65535
    %v3983 = vshrl.u32 %v3952, 16
    %v3984 = vmul.u32 %v3980, %v3982
    %v3985 = vmul.u32 %v3980, %v3983
    %v3986 = vmul.u32 %v3981, %v3982
    %v3987 = vmul.u32 %v3981, %v3983
    %v3988 = vshll.u32 %v3985, 16
    %v3989 = vshrl.u32 %v3985, 16
    %v3990 = vshll.u32 %v3986, 16
    %v3991 = vshrl.u32 %v3986, 16
    %vm3992 = vc.u32 %v3984, %v3988
    %v3993 = vsel %vm3992, 1, 0
    %v3994 = vadd.s32 %v3984, %v3988
    %v3995 = vadd.s32 %v3987, %v3993
    %vm3996 = vc.u32 %v3994, %v3990
    %v3997 = vsel %vm3996, 1, 0
    %v3998 = vadd.s32 %v3994, %v3990
    %v3999 = vadd.s32 %v3995, %v3997
    %v4000 = vadd.s32 %v3999, %v3989
    %v4001 = vadd.s32 %v4000, %v3991
    %v4002 = vmul.u32 %v3957, %v3948
    %v4003 = vadd.s32 %v3979, %v3998
    %vm4004 = vc.u32 %v3979, %v3998
    %v4005 = vadd.s32 %v4001, 1
    %v4006 = vsel %vm4004, %v4005, %v4001
    %v4007 = vadd.s32 %v4002, %v4006
    %v4008 = vadd.s32 %v4007, 536870912
    %v4009 = vshrl.u32 %v4008, 30
    %v4010 = vshll.u32 %v4009, 30
    %v4011 = vsub.s32 %v4007, %v4010
    %vm4012 = vcmp.lt.s32.totalorder %v4011, 0
    %v4013 = vsub.s32 0, %v4011
    %v4014 = vsel %vm4012, %v4013, %v4011
    %v4015 = vclz %v4014
    %v4016 = vsub.s32 %v4015, 2
    %vm4017 = vcmp.gt.s32.totalorder 0, %v4016
    %v4018 = vsel %vm4017, 0, %v4016
    %v4019 = vsub.s32 32, %v4018
    %v4020 = vshll.u32 %v4011, %v4018
    %v4021 = vshrl.u32 %v4003, %v4019
    %v4022 = vor.u32 %v4020, %v4021
    %v4023 = vsub.s32 4294967266, %v4018
    %v4024 = vadd.s32 %v4023, 127
    %v4025 = vshll.u32 %v4024, 23
    %v4026 = vor.u32 4788187, %v4025
    %v4027 = vand.u32 2147483647, %v4026
    %v4029 = vcvt.s32.f32 %v4022
    %v4030 = vmul.f32 %v4029, %v4027
    %v4031 = vxor.u32 %v4030, 2147483648
    %v4032 = vsel %vm3911, %v4031, %v4030
    %v4033 = vsub.s32 4, %v4009
    %v4034 = vsel %vm3911, %v4033, %v4009
    %v4035 = vsel %vm3910, %v1216, %v4032
    %v4036 = vsel %vm3910, 0, %v4034
    %v4037 = vmul.f32 %v4035, %v4035
    %v4038 = vmul.f32 %v4037, -0.001358992
    %v4039 = vadd.f32 %v4038, 0.041655596
    %v4040 = vmul.f32 %v4037, %v4039
    %v4041 = vadd.f32 %v4040, -0.4999988
    %v4042 = vmul.f32 %v4037, %v4041
    %v4043 = vadd.f32 1.0, %v4042
    %v4044 = vmul.f32 %v4035, %v4035
    %v4045 = vmul.f32 %v4044, -0.00019511016
    %v4046 = vadd.f32 %v4045, 0.008332121
    %v4047 = vmul.f32 %v4044, %v4046
    %v4048 = vadd.f32 %v4047, -0.16666654
    %v4049 = vmul.f32 %v4044, %v4048
    %v4050 = vadd.f32 %v4049, 1.0
    %v4051 = vmul.f32 %v4050, %v4035
    %vm4052 = vweird.f32 %v1216
    %v4053 = vadd.s32 %v4036, 3
    %v4054 = vand.u32 %v4053, 3
    %vm4055 = vcmp.lt.s32.totalorder %v4054, 2
    %vm4056 = vcmp.eq.s32.totalorder %v4054, 0
    %v4057 = vxor.u32 %v4051, 2147483648
    %v4058 = vsel %vm4056, %v4043, %v4057
    %vm4059 = vcmp.eq.s32.totalorder %v4054, 2
    %v4060 = vxor.u32 %v4043, 2147483648
    %v4061 = vsel %vm4059, %v4060, %v4051
    %v4062 = vsel %vm4055, %v4058, %v4061
    %v4063 = vsel %vm4052, nan, %v4062
    %v4064 = vand.u32 2147483647, %v1220
    %vm4065 = vcmp.le.f32.partialorder %v4064, 0.7853982
    %vm4066 = vcmp.lt.s32.totalorder %v1220, 0
    %v4067 = vand.u32 %v1220, 2139095040
    %v4068 = vshrl.u32 %v4067, 23
    %v4069 = vsub.s32 %v4068, 127
    %v4070 = vand.u32 2147483647, %v1220
    %v4071 = vand.u32 %v4070, 8388607
    %v4072 = vor.u32 %v4071, 8388608
    %v4073 = vsub.s32 0, %v4072
    %v4074 = vadd.s32 %v4069, 1
    %vm4075 = vcmp.gt.s32.totalorder %v4074, 0
    %v4076 = vsel %vm4075, %v4074, 0
    %v4077 = vshrl.u32 %v4076, 5
    %v4078 = vand.u32 %v4076, 31
    %v4079 = vsub.s32 32, %v4078
    %v4080 = vshrl.u32 683565275, %v4079
    %v4081 = vshll.u32 683565275, %v4078
    %v4082 = vshrl.u32 2475754826, %v4079
    %v4083 = vor.u32 %v4081, %v4082
    %v4084 = vshll.u32 2475754826, %v4078
    %v4085 = vshrl.u32 2131351028, %v4079
    %v4086 = vor.u32 %v4084, %v4085
    %v4087 = vshll.u32 2131351028, %v4078
    %v4088 = vshrl.u32 2102212464, %v4079
    %v4089 = vor.u32 %v4087, %v4088
    %v4090 = vshll.u32 2102212464, %v4078
    %v4091 = vshrl.u32 920167782, %v4079
    %v4092 = vor.u32 %v4090, %v4091
    %v4093 = vshll.u32 920167782, %v4078
    %v4094 = vshrl.u32 1326507024, %v4079
    %v4095 = vor.u32 %v4093, %v4094
    %vm4096 = vcmp.lt.s32.totalorder %v4077, 1
    %vm4097 = vcmp.lt.s32.totalorder %v4077, 2
    %vm4098 = vcmp.lt.s32.totalorder %v4077, 3
    %vm4099 = vcmp.lt.s32.totalorder %v4077, 4
    %v4100 = vsel %vm4096, %v4080, %v4083
    %v4101 = vsel %vm4099, %v4089, 2102212464
    %v4102 = vsel %vm4098, %v4086, %v4101
    %v4103 = vsel %vm4097, %v4100, %v4102
    %v4104 = vsel %vm4096, %v4083, %v4086
    %v4105 = vsel %vm4099, %v4092, 920167782
    %v4106 = vsel %vm4098, %v4089, %v4105
    %v4107 = vsel %vm4097, %v4104, %v4106
    %v4108 = vsel %vm4096, %v4086, %v4089
    %v4109 = vsel %vm4099, %v4095, 1326507024
    %v4110 = vsel %vm4098, %v4092, %v4109
    %v4111 = vsel %vm4097, %v4108, %v4110
    %v4112 = vshll.u32 %v4072, 8
    %v4113 = vand.u32 %v4112, 65535
    %v4114 = vshrl.u32 %v4112, 16
    %v4115 = vand.u32 %v4111, 65535
    %v4116 = vshrl.u32 %v4111, 16
    %v4117 = vmul.u32 %v4113, %v4115
    %v4118 = vmul.u32 %v4113, %v4116
    %v4119 = vmul.u32 %v4114, %v4115
    %v4120 = vmul.u32 %v4114, %v4116
    %v4121 = vshll.u32 %v4118, 16
    %v4122 = vshrl.u32 %v4118, 16
    %v4123 = vshll.u32 %v4119, 16
    %v4124 = vshrl.u32 %v4119, 16
    %vm4125 = vc.u32 %v4117, %v4121
    %v4126 = vsel %vm4125, 1, 0
    %v4127 = vadd.s32 %v4117, %v4121
    %v4128 = vadd.s32 %v4120, %v4126
    %vm4129 = vc.u32 %v4127, %v4123
    %v4130 = vsel %vm4129, 1, 0
    %v4131 = vadd.s32 %v4127, %v4123
    %v4132 = vadd.s32 %v4128, %v4130
    %v4133 = vadd.s32 %v4132, %v4122
    %v4134 = vadd.s32 %v4133, %v4124
    %v4135 = vand.u32 %v4112, 65535
    %v4136 = vshrl.u32 %v4112, 16
    %v4137 = vand.u32 %v4107, 65535
    %v4138 = vshrl.u32 %v4107, 16
    %v4139 = vmul.u32 %v4135, %v4137
    %v4140 = vmul.u32 %v4135, %v4138
    %v4141 = vmul.u32 %v4136, %v4137
    %v4142 = vmul.u32 %v4136, %v4138
    %v4143 = vshll.u32 %v4140, 16
    %v4144 = vshrl.u32 %v4140, 16
    %v4145 = vshll.u32 %v4141, 16
    %v4146 = vshrl.u32 %v4141, 16
    %vm4147 = vc.u32 %v4139, %v4143
    %v4148 = vsel %vm4147, 1, 0
    %v4149 = vadd.s32 %v4139, %v4143
    %v4150 = vadd.s32 %v4142, %v4148
    %vm4151 = vc.u32 %v4149, %v4145
    %v4152 = vsel %vm4151, 1, 0
    %v4153 = vadd.s32 %v4149, %v4145
    %v4154 = vadd.s32 %v4150, %v4152
    %v4155 = vadd.s32 %v4154, %v4144
    %v4156 = vadd.s32 %v4155, %v4146
    %v4157 = vmul.u32 %v4112, %v4103
    %v4158 = vadd.s32 %v4134, %v4153
    %vm4159 = vc.u32 %v4134, %v4153
    %v4160 = vadd.s32 %v4156, 1
    %v4161 = vsel %vm4159, %v4160, %v4156
    %v4162 = vadd.s32 %v4157, %v4161
    %v4163 = vadd.s32 %v4162, 536870912
    %v4164 = vshrl.u32 %v4163, 30
    %v4165 = vshll.u32 %v4164, 30
    %v4166 = vsub.s32 %v4162, %v4165
    %vm4167 = vcmp.lt.s32.totalorder %v4166, 0
    %v4168 = vsub.s32 0, %v4166
    %v4169 = vsel %vm4167, %v4168, %v4166
    %v4170 = vclz %v4169
    %v4171 = vsub.s32 %v4170, 2
    %vm4172 = vcmp.gt.s32.totalorder 0, %v4171
    %v4173 = vsel %vm4172, 0, %v4171
    %v4174 = vsub.s32 32, %v4173
    %v4175 = vshll.u32 %v4166, %v4173
    %v4176 = vshrl.u32 %v4158, %v4174
    %v4177 = vor.u32 %v4175, %v4176
    %v4178 = vsub.s32 4294967266, %v4173
    %v4179 = vadd.s32 %v4178, 127
    %v4180 = vshll.u32 %v4179, 23
    %v4181 = vor.u32 4788187, %v4180
    %v4182 = vand.u32 2147483647, %v4181
    %v4184 = vcvt.s32.f32 %v4177
    %v4185 = vmul.f32 %v4184, %v4182
    %v4186 = vxor.u32 %v4185, 2147483648
    %v4187 = vsel %vm4066, %v4186, %v4185
    %v4188 = vsub.s32 4, %v4164
    %v4189 = vsel %vm4066, %v4188, %v4164
    %v4190 = vsel %vm4065, %v1220, %v4187
    %v4191 = vsel %vm4065, 0, %v4189
    %v4192 = vmul.f32 %v4190, %v4190
    %v4193 = vmul.f32 %v4192, -0.001358992
    %v4194 = vadd.f32 %v4193, 0.041655596
    %v4195 = vmul.f32 %v4192, %v4194
    %v4196 = vadd.f32 %v4195, -0.4999988
    %v4197 = vmul.f32 %v4192, %v4196
    %v4198 = vadd.f32 1.0, %v4197
    %v4199 = vmul.f32 %v4190, %v4190
    %v4200 = vmul.f32 %v4199, -0.00019511016
    %v4201 = vadd.f32 %v4200, 0.008332121
    %v4202 = vmul.f32 %v4199, %v4201
    %v4203 = vadd.f32 %v4202, -0.16666654
    %v4204 = vmul.f32 %v4199, %v4203
    %v4205 = vadd.f32 %v4204, 1.0
    %v4206 = vmul.f32 %v4205, %v4190
    %vm4207 = vweird.f32 %v1220
    %v4208 = vadd.s32 %v4191, 3
    %v4209 = vand.u32 %v4208, 3
    %vm4210 = vcmp.lt.s32.totalorder %v4209, 2
    %vm4211 = vcmp.eq.s32.totalorder %v4209, 0
    %v4212 = vxor.u32 %v4206, 2147483648
    %v4213 = vsel %vm4211, %v4198, %v4212
    %vm4214 = vcmp.eq.s32.totalorder %v4209, 2
    %v4215 = vxor.u32 %v4198, 2147483648
    %v4216 = vsel %vm4214, %v4215, %v4206
    %v4217 = vsel %vm4210, %v4213, %v4216
    %v4218 = vsel %vm4207, nan, %v4217
    %v4219 = vand.u32 2147483647, %v1224
    %vm4220 = vcmp.le.f32.partialorder %v4219, 0.7853982
    %vm4221 = vcmp.lt.s32.totalorder %v1224, 0
    %v4222 = vand.u32 %v1224, 2139095040
    %v4223 = vshrl.u32 %v4222, 23
    %v4224 = vsub.s32 %v4223, 127
    %v4225 = vand.u32 2147483647, %v1224
    %v4226 = vand.u32 %v4225, 8388607
    %v4227 = vor.u32 %v4226, 8388608
    %v4228 = vsub.s32 0, %v4227
    %v4229 = vadd.s32 %v4224, 1
    %vm4230 = vcmp.gt.s32.totalorder %v4229, 0
    %v4231 = vsel %vm4230, %v4229, 0
    %v4232 = vshrl.u32 %v4231, 5
    %v4233 = vand.u32 %v4231, 31
    %v4234 = vsub.s32 32, %v4233
    %v4235 = vshrl.u32 683565275, %v4234
    %v4236 = vshll.u32 683565275, %v4233
    %v4237 = vshrl.u32 2475754826, %v4234
    %v4238 = vor.u32 %v4236, %v4237
    %v4239 = vshll.u32 2475754826, %v4233
    %v4240 = vshrl.u32 2131351028, %v4234
    %v4241 = vor.u32 %v4239, %v4240
    %v4242 = vshll.u32 2131351028, %v4233
    %v4243 = vshrl.u32 2102212464, %v4234
    %v4244 = vor.u32 %v4242, %v4243
    %v4245 = vshll.u32 2102212464, %v4233
    %v4246 = vshrl.u32 920167782, %v4234
    %v4247 = vor.u32 %v4245, %v4246
    %v4248 = vshll.u32 920167782, %v4233
    %v4249 = vshrl.u32 1326507024, %v4234
    %v4250 = vor.u32 %v4248, %v4249
    %vm4251 = vcmp.lt.s32.totalorder %v4232, 1
    %vm4252 = vcmp.lt.s32.totalorder %v4232, 2
    %vm4253 = vcmp.lt.s32.totalorder %v4232, 3
    %vm4254 = vcmp.lt.s32.totalorder %v4232, 4
    %v4255 = vsel %vm4251, %v4235, %v4238
    %v4256 = vsel %vm4254, %v4244, 2102212464
    %v4257 = vsel %vm4253, %v4241, %v4256
    %v4258 = vsel %vm4252, %v4255, %v4257
    %v4259 = vsel %vm4251, %v4238, %v4241
    %v4260 = vsel %vm4254, %v4247, 920167782
    %v4261 = vsel %vm4253, %v4244, %v4260
    %v4262 = vsel %vm4252, %v4259, %v4261
    %v4263 = vsel %vm4251, %v4241, %v4244
    %v4264 = vsel %vm4254, %v4250, 1326507024
    %v4265 = vsel %vm4253, %v4247, %v4264
    %v4266 = vsel %vm4252, %v4263, %v4265
    %v4267 = vshll.u32 %v4227, 8
    %v4268 = vand.u32 %v4267, 65535
    %v4269 = vshrl.u32 %v4267, 16
    %v4270 = vand.u32 %v4266, 65535
    %v4271 = vshrl.u32 %v4266, 16
    %v4272 = vmul.u32 %v4268, %v4270
    %v4273 = vmul.u32 %v4268, %v4271
    %v4274 = vmul.u32 %v4269, %v4270
    %v4275 = vmul.u32 %v4269, %v4271
    %v4276 = vshll.u32 %v4273, 16
    %v4277 = vshrl.u32 %v4273, 16
    %v4278 = vshll.u32 %v4274, 16
    %v4279 = vshrl.u32 %v4274, 16
    %vm4280 = vc.u32 %v4272, %v4276
    %v4281 = vsel %vm4280, 1, 0
    %v4282 = vadd.s32 %v4272, %v4276
    %v4283 = vadd.s32 %v4275, %v4281
    %vm4284 = vc.u32 %v4282, %v4278
    %v4285 = vsel %vm4284, 1, 0
    %v4286 = vadd.s32 %v4282, %v4278
    %v4287 = vadd.s32 %v4283, %v4285
    %v4288 = vadd.s32 %v4287, %v4277
    %v4289 = vadd.s32 %v4288, %v4279
    %v4290 = vand.u32 %v4267, 65535
    %v4291 = vshrl.u32 %v4267, 16
    %v4292 = vand.u32 %v4262, 65535
    %v4293 = vshrl.u32 %v4262, 16
    %v4294 = vmul.u32 %v4290, %v4292
    %v4295 = vmul.u32 %v4290, %v4293
    %v4296 = vmul.u32 %v4291, %v4292
    %v4297 = vmul.u32 %v4291, %v4293
    %v4298 = vshll.u32 %v4295, 16
    %v4299 = vshrl.u32 %v4295, 16
    %v4300 = vshll.u32 %v4296, 16
    %v4301 = vshrl.u32 %v4296, 16
    %vm4302 = vc.u32 %v4294, %v4298
    %v4303 = vsel %vm4302, 1, 0
    %v4304 = vadd.s32 %v4294, %v4298
    %v4305 = vadd.s32 %v4297, %v4303
    %vm4306 = vc.u32 %v4304, %v4300
    %v4307 = vsel %vm4306, 1, 0
    %v4308 = vadd.s32 %v4304, %v4300
    %v4309 = vadd.s32 %v4305, %v4307
    %v4310 = vadd.s32 %v4309, %v4299
    %v4311 = vadd.s32 %v4310, %v4301
    %v4312 = vmul.u32 %v4267, %v4258
    %v4313 = vadd.s32 %v4289, %v4308
    %vm4314 = vc.u32 %v4289, %v4308
    %v4315 = vadd.s32 %v4311, 1
    %v4316 = vsel %vm4314, %v4315, %v4311
    %v4317 = vadd.s32 %v4312, %v4316
    %v4318 = vadd.s32 %v4317, 536870912
    %v4319 = vshrl.u32 %v4318, 30
    %v4320 = vshll.u32 %v4319, 30
    %v4321 = vsub.s32 %v4317, %v4320
    %vm4322 = vcmp.lt.s32.totalorder %v4321, 0
    %v4323 = vsub.s32 0, %v4321
    %v4324 = vsel %vm4322, %v4323, %v4321
    %v4325 = vclz %v4324
    %v4326 = vsub.s32 %v4325, 2
    %vm4327 = vcmp.gt.s32.totalorder 0, %v4326
    %v4328 = vsel %vm4327, 0, %v4326
    %v4329 = vsub.s32 32, %v4328
    %v4330 = vshll.u32 %v4321, %v4328
    %v4331 = vshrl.u32 %v4313, %v4329
    %v4332 = vor.u32 %v4330, %v4331
    %v4333 = vsub.s32 4294967266, %v4328
    %v4334 = vadd.s32 %v4333, 127
    %v4335 = vshll.u32 %v4334, 23
    %v4336 = vor.u32 4788187, %v4335
    %v4337 = vand.u32 2147483647, %v4336
    %v4339 = vcvt.s32.f32 %v4332
    %v4340 = vmul.f32 %v4339, %v4337
    %v4341 = vxor.u32 %v4340, 2147483648
    %v4342 = vsel %vm4221, %v4341, %v4340
    %v4343 = vsub.s32 4, %v4319
    %v4344 = vsel %vm4221, %v4343, %v4319
    %v4345 = vsel %vm4220, %v1224, %v4342
    %v4346 = vsel %vm4220, 0, %v4344
    %v4347 = vmul.f32 %v4345, %v4345
    %v4348 = vmul.f32 %v4347, -0.001358992
    %v4349 = vadd.f32 %v4348, 0.041655596
    %v4350 = vmul.f32 %v4347, %v4349
    %v4351 = vadd.f32 %v4350, -0.4999988
    %v4352 = vmul.f32 %v4347, %v4351
    %v4353 = vadd.f32 1.0, %v4352
    %v4354 = vmul.f32 %v4345, %v4345
    %v4355 = vmul.f32 %v4354, -0.00019511016
    %v4356 = vadd.f32 %v4355, 0.008332121
    %v4357 = vmul.f32 %v4354, %v4356
    %v4358 = vadd.f32 %v4357, -0.16666654
    %v4359 = vmul.f32 %v4354, %v4358
    %v4360 = vadd.f32 %v4359, 1.0
    %v4361 = vmul.f32 %v4360, %v4345
    %vm4362 = vweird.f32 %v1224
    %v4363 = vadd.s32 %v4346, 3
    %v4364 = vand.u32 %v4363, 3
    %vm4365 = vcmp.lt.s32.totalorder %v4364, 2
    %vm4366 = vcmp.eq.s32.totalorder %v4364, 0
    %v4367 = vxor.u32 %v4361, 2147483648
    %v4368 = vsel %vm4366, %v4353, %v4367
    %vm4369 = vcmp.eq.s32.totalorder %v4364, 2
    %v4370 = vxor.u32 %v4353, 2147483648
    %v4371 = vsel %vm4369, %v4370, %v4361
    %v4372 = vsel %vm4365, %v4368, %v4371
    %v4373 = vsel %vm4362, nan, %v4372
    %v4374 = vand.u32 2147483647, %v1228
    %vm4375 = vcmp.le.f32.partialorder %v4374, 0.7853982
    %vm4376 = vcmp.lt.s32.totalorder %v1228, 0
    %v4377 = vand.u32 %v1228, 2139095040
    %v4378 = vshrl.u32 %v4377, 23
    %v4379 = vsub.s32 %v4378, 127
    %v4380 = vand.u32 2147483647, %v1228
    %v4381 = vand.u32 %v4380, 8388607
    %v4382 = vor.u32 %v4381, 8388608
    %v4383 = vsub.s32 0, %v4382
    %v4384 = vadd.s32 %v4379, 1
    %vm4385 = vcmp.gt.s32.totalorder %v4384, 0
    %v4386 = vsel %vm4385, %v4384, 0
    %v4387 = vshrl.u32 %v4386, 5
    %v4388 = vand.u32 %v4386, 31
    %v4389 = vsub.s32 32, %v4388
    %v4390 = vshrl.u32 683565275, %v4389
    %v4391 = vshll.u32 683565275, %v4388
    %v4392 = vshrl.u32 2475754826, %v4389
    %v4393 = vor.u32 %v4391, %v4392
    %v4394 = vshll.u32 2475754826, %v4388
    %v4395 = vshrl.u32 2131351028, %v4389
    %v4396 = vor.u32 %v4394, %v4395
    %v4397 = vshll.u32 2131351028, %v4388
    %v4398 = vshrl.u32 2102212464, %v4389
    %v4399 = vor.u32 %v4397, %v4398
    %v4400 = vshll.u32 2102212464, %v4388
    %v4401 = vshrl.u32 920167782, %v4389
    %v4402 = vor.u32 %v4400, %v4401
    %v4403 = vshll.u32 920167782, %v4388
    %v4404 = vshrl.u32 1326507024, %v4389
    %v4405 = vor.u32 %v4403, %v4404
    %vm4406 = vcmp.lt.s32.totalorder %v4387, 1
    %vm4407 = vcmp.lt.s32.totalorder %v4387, 2
    %vm4408 = vcmp.lt.s32.totalorder %v4387, 3
    %vm4409 = vcmp.lt.s32.totalorder %v4387, 4
    %v4410 = vsel %vm4406, %v4390, %v4393
    %v4411 = vsel %vm4409, %v4399, 2102212464
    %v4412 = vsel %vm4408, %v4396, %v4411
    %v4413 = vsel %vm4407, %v4410, %v4412
    %v4414 = vsel %vm4406, %v4393, %v4396
    %v4415 = vsel %vm4409, %v4402, 920167782
    %v4416 = vsel %vm4408, %v4399, %v4415
    %v4417 = vsel %vm4407, %v4414, %v4416
    %v4418 = vsel %vm4406, %v4396, %v4399
    %v4419 = vsel %vm4409, %v4405, 1326507024
    %v4420 = vsel %vm4408, %v4402, %v4419
    %v4421 = vsel %vm4407, %v4418, %v4420
    %v4422 = vshll.u32 %v4382, 8
    %v4423 = vand.u32 %v4422, 65535
    %v4424 = vshrl.u32 %v4422, 16
    %v4425 = vand.u32 %v4421, 65535
    %v4426 = vshrl.u32 %v4421, 16
    %v4427 = vmul.u32 %v4423, %v4425
    %v4428 = vmul.u32 %v4423, %v4426
    %v4429 = vmul.u32 %v4424, %v4425
    %v4430 = vmul.u32 %v4424, %v4426
    %v4431 = vshll.u32 %v4428, 16
    %v4432 = vshrl.u32 %v4428, 16
    %v4433 = vshll.u32 %v4429, 16
    %v4434 = vshrl.u32 %v4429, 16
    %vm4435 = vc.u32 %v4427, %v4431
    %v4436 = vsel %vm4435, 1, 0
    %v4437 = vadd.s32 %v4427, %v4431
    %v4438 = vadd.s32 %v4430, %v4436
    %vm4439 = vc.u32 %v4437, %v4433
    %v4440 = vsel %vm4439, 1, 0
    %v4441 = vadd.s32 %v4437, %v4433
    %v4442 = vadd.s32 %v4438, %v4440
    %v4443 = vadd.s32 %v4442, %v4432
    %v4444 = vadd.s32 %v4443, %v4434
    %v4445 = vand.u32 %v4422, 65535
    %v4446 = vshrl.u32 %v4422, 16
    %v4447 = vand.u32 %v4417, 65535
    %v4448 = vshrl.u32 %v4417, 16
    %v4449 = vmul.u32 %v4445, %v4447
    %v4450 = vmul.u32 %v4445, %v4448
    %v4451 = vmul.u32 %v4446, %v4447
    %v4452 = vmul.u32 %v4446, %v4448
    %v4453 = vshll.u32 %v4450, 16
    %v4454 = vshrl.u32 %v4450, 16
    %v4455 = vshll.u32 %v4451, 16
    %v4456 = vshrl.u32 %v4451, 16
    %vm4457 = vc.u32 %v4449, %v4453
    %v4458 = vsel %vm4457, 1, 0
    %v4459 = vadd.s32 %v4449, %v4453
    %v4460 = vadd.s32 %v4452, %v4458
    %vm4461 = vc.u32 %v4459, %v4455
    %v4462 = vsel %vm4461, 1, 0
    %v4463 = vadd.s32 %v4459, %v4455
    %v4464 = vadd.s32 %v4460, %v4462
    %v4465 = vadd.s32 %v4464, %v4454
    %v4466 = vadd.s32 %v4465, %v4456
    %v4467 = vmul.u32 %v4422, %v4413
    %v4468 = vadd.s32 %v4444, %v4463
    %vm4469 = vc.u32 %v4444, %v4463
    %v4470 = vadd.s32 %v4466, 1
    %v4471 = vsel %vm4469, %v4470, %v4466
    %v4472 = vadd.s32 %v4467, %v4471
    %v4473 = vadd.s32 %v4472, 536870912
    %v4474 = vshrl.u32 %v4473, 30
    %v4475 = vshll.u32 %v4474, 30
    %v4476 = vsub.s32 %v4472, %v4475
    %vm4477 = vcmp.lt.s32.totalorder %v4476, 0
    %v4478 = vsub.s32 0, %v4476
    %v4479 = vsel %vm4477, %v4478, %v4476
    %v4480 = vclz %v4479
    %v4481 = vsub.s32 %v4480, 2
    %vm4482 = vcmp.gt.s32.totalorder 0, %v4481
    %v4483 = vsel %vm4482, 0, %v4481
    %v4484 = vsub.s32 32, %v4483
    %v4485 = vshll.u32 %v4476, %v4483
    %v4486 = vshrl.u32 %v4468, %v4484
    %v4487 = vor.u32 %v4485, %v4486
    %v4488 = vsub.s32 4294967266, %v4483
    %v4489 = vadd.s32 %v4488, 127
    %v4490 = vshll.u32 %v4489, 23
    %v4491 = vor.u32 4788187, %v4490
    %v4492 = vand.u32 2147483647, %v4491
    %v4494 = vcvt.s32.f32 %v4487
    %v4495 = vmul.f32 %v4494, %v4492
    %v4496 = vxor.u32 %v4495, 2147483648
    %v4497 = vsel %vm4376, %v4496, %v4495
    %v4498 = vsub.s32 4, %v4474
    %v4499 = vsel %vm4376, %v4498, %v4474
    %v4500 = vsel %vm4375, %v1228, %v4497
    %v4501 = vsel %vm4375, 0, %v4499
    %v4502 = vmul.f32 %v4500, %v4500
    %v4503 = vmul.f32 %v4502, -0.001358992
    %v4504 = vadd.f32 %v4503, 0.041655596
    %v4505 = vmul.f32 %v4502, %v4504
    %v4506 = vadd.f32 %v4505, -0.4999988
    %v4507 = vmul.f32 %v4502, %v4506
    %v4508 = vadd.f32 1.0, %v4507
    %v4509 = vmul.f32 %v4500, %v4500
    %v4510 = vmul.f32 %v4509, -0.00019511016
    %v4511 = vadd.f32 %v4510, 0.008332121
    %v4512 = vmul.f32 %v4509, %v4511
    %v4513 = vadd.f32 %v4512, -0.16666654
    %v4514 = vmul.f32 %v4509, %v4513
    %v4515 = vadd.f32 %v4514, 1.0
    %v4516 = vmul.f32 %v4515, %v4500
    %vm4517 = vweird.f32 %v1228
    %v4518 = vadd.s32 %v4501, 3
    %v4519 = vand.u32 %v4518, 3
    %vm4520 = vcmp.lt.s32.totalorder %v4519, 2
    %vm4521 = vcmp.eq.s32.totalorder %v4519, 0
    %v4522 = vxor.u32 %v4516, 2147483648
    %v4523 = vsel %vm4521, %v4508, %v4522
    %vm4524 = vcmp.eq.s32.totalorder %v4519, 2
    %v4525 = vxor.u32 %v4508, 2147483648
    %v4526 = vsel %vm4524, %v4525, %v4516
    %v4527 = vsel %vm4520, %v4523, %v4526
    %v4528 = vsel %vm4517, nan, %v4527
    %v4529 = vand.u32 2147483647, %v1232
    %vm4530 = vcmp.le.f32.partialorder %v4529, 0.7853982
    %vm4531 = vcmp.lt.s32.totalorder %v1232, 0
    %v4532 = vand.u32 %v1232, 2139095040
    %v4533 = vshrl.u32 %v4532, 23
    %v4534 = vsub.s32 %v4533, 127
    %v4535 = vand.u32 2147483647, %v1232
    %v4536 = vand.u32 %v4535, 8388607
    %v4537 = vor.u32 %v4536, 8388608
    %v4538 = vsub.s32 0, %v4537
    %v4539 = vadd.s32 %v4534, 1
    %vm4540 = vcmp.gt.s32.totalorder %v4539, 0
    %v4541 = vsel %vm4540, %v4539, 0
    %v4542 = vshrl.u32 %v4541, 5
    %v4543 = vand.u32 %v4541, 31
    %v4544 = vsub.s32 32, %v4543
    %v4545 = vshrl.u32 683565275, %v4544
    %v4546 = vshll.u32 683565275, %v4543
    %v4547 = vshrl.u32 2475754826, %v4544
    %v4548 = vor.u32 %v4546, %v4547
    %v4549 = vshll.u32 2475754826, %v4543
    %v4550 = vshrl.u32 2131351028, %v4544
    %v4551 = vor.u32 %v4549, %v4550
    %v4552 = vshll.u32 2131351028, %v4543
    %v4553 = vshrl.u32 2102212464, %v4544
    %v4554 = vor.u32 %v4552, %v4553
    %v4555 = vshll.u32 2102212464, %v4543
    %v4556 = vshrl.u32 920167782, %v4544
    %v4557 = vor.u32 %v4555, %v4556
    %v4558 = vshll.u32 920167782, %v4543
    %v4559 = vshrl.u32 1326507024, %v4544
    %v4560 = vor.u32 %v4558, %v4559
    %vm4561 = vcmp.lt.s32.totalorder %v4542, 1
    %vm4562 = vcmp.lt.s32.totalorder %v4542, 2
    %vm4563 = vcmp.lt.s32.totalorder %v4542, 3
    %vm4564 = vcmp.lt.s32.totalorder %v4542, 4
    %v4565 = vsel %vm4561, %v4545, %v4548
    %v4566 = vsel %vm4564, %v4554, 2102212464
    %v4567 = vsel %vm4563, %v4551, %v4566
    %v4568 = vsel %vm4562, %v4565, %v4567
    %v4569 = vsel %vm4561, %v4548, %v4551
    %v4570 = vsel %vm4564, %v4557, 920167782
    %v4571 = vsel %vm4563, %v4554, %v4570
    %v4572 = vsel %vm4562, %v4569, %v4571
    %v4573 = vsel %vm4561, %v4551, %v4554
    %v4574 = vsel %vm4564, %v4560, 1326507024
    %v4575 = vsel %vm4563, %v4557, %v4574
    %v4576 = vsel %vm4562, %v4573, %v4575
    %v4577 = vshll.u32 %v4537, 8
    %v4578 = vand.u32 %v4577, 65535
    %v4579 = vshrl.u32 %v4577, 16
    %v4580 = vand.u32 %v4576, 65535
    %v4581 = vshrl.u32 %v4576, 16
    %v4582 = vmul.u32 %v4578, %v4580
    %v4583 = vmul.u32 %v4578, %v4581
    %v4584 = vmul.u32 %v4579, %v4580
    %v4585 = vmul.u32 %v4579, %v4581
    %v4586 = vshll.u32 %v4583, 16
    %v4587 = vshrl.u32 %v4583, 16
    %v4588 = vshll.u32 %v4584, 16
    %v4589 = vshrl.u32 %v4584, 16
    %vm4590 = vc.u32 %v4582, %v4586
    %v4591 = vsel %vm4590, 1, 0
    %v4592 = vadd.s32 %v4582, %v4586
    %v4593 = vadd.s32 %v4585, %v4591
    %vm4594 = vc.u32 %v4592, %v4588
    %v4595 = vsel %vm4594, 1, 0
    %v4596 = vadd.s32 %v4592, %v4588
    %v4597 = vadd.s32 %v4593, %v4595
    %v4598 = vadd.s32 %v4597, %v4587
    %v4599 = vadd.s32 %v4598, %v4589
    %v4600 = vand.u32 %v4577, 65535
    %v4601 = vshrl.u32 %v4577, 16
    %v4602 = vand.u32 %v4572, 65535
    %v4603 = vshrl.u32 %v4572, 16
    %v4604 = vmul.u32 %v4600, %v4602
    %v4605 = vmul.u32 %v4600, %v4603
    %v4606 = vmul.u32 %v4601, %v4602
    %v4607 = vmul.u32 %v4601, %v4603
    %v4608 = vshll.u32 %v4605, 16
    %v4609 = vshrl.u32 %v4605, 16
    %v4610 = vshll.u32 %v4606, 16
    %v4611 = vshrl.u32 %v4606, 16
    %vm4612 = vc.u32 %v4604, %v4608
    %v4613 = vsel %vm4612, 1, 0
    %v4614 = vadd.s32 %v4604, %v4608
    %v4615 = vadd.s32 %v4607, %v4613
    %vm4616 = vc.u32 %v4614, %v4610
    %v4617 = vsel %vm4616, 1, 0
    %v4618 = vadd.s32 %v4614, %v4610
    %v4619 = vadd.s32 %v4615, %v4617
    %v4620 = vadd.s32 %v4619, %v4609
    %v4621 = vadd.s32 %v4620, %v4611
    %v4622 = vmul.u32 %v4577, %v4568
    %v4623 = vadd.s32 %v4599, %v4618
    %vm4624 = vc.u32 %v4599, %v4618
    %v4625 = vadd.s32 %v4621, 1
    %v4626 = vsel %vm4624, %v4625, %v4621
    %v4627 = vadd.s32 %v4622, %v4626
    %v4628 = vadd.s32 %v4627, 536870912
    %v4629 = vshrl.u32 %v4628, 30
    %v4630 = vshll.u32 %v4629, 30
    %v4631 = vsub.s32 %v4627, %v4630
    %vm4632 = vcmp.lt.s32.totalorder %v4631, 0
    %v4633 = vsub.s32 0, %v4631
    %v4634 = vsel %vm4632, %v4633, %v4631
    %v4635 = vclz %v4634
    %v4636 = vsub.s32 %v4635, 2
    %vm4637 = vcmp.gt.s32.totalorder 0, %v4636
    %v4638 = vsel %vm4637, 0, %v4636
    %v4639 = vsub.s32 32, %v4638
    %v4640 = vshll.u32 %v4631, %v4638
    %v4641 = vshrl.u32 %v4623, %v4639
    %v4642 = vor.u32 %v4640, %v4641
    %v4643 = vsub.s32 4294967266, %v4638
    %v4644 = vadd.s32 %v4643, 127
    %v4645 = vshll.u32 %v4644, 23
    %v4646 = vor.u32 4788187, %v4645
    %v4647 = vand.u32 2147483647, %v4646
    %v4649 = vcvt.s32.f32 %v4642
    %v4650 = vmul.f32 %v4649, %v4647
    %v4651 = vxor.u32 %v4650, 2147483648
    %v4652 = vsel %vm4531, %v4651, %v4650
    %v4653 = vsub.s32 4, %v4629
    %v4654 = vsel %vm4531, %v4653, %v4629
    %v4655 = vsel %vm4530, %v1232, %v4652
    %v4656 = vsel %vm4530, 0, %v4654
    %v4657 = vmul.f32 %v4655, %v4655
    %v4658 = vmul.f32 %v4657, -0.001358992
    %v4659 = vadd.f32 %v4658, 0.041655596
    %v4660 = vmul.f32 %v4657, %v4659
    %v4661 = vadd.f32 %v4660, -0.4999988
    %v4662 = vmul.f32 %v4657, %v4661
    %v4663 = vadd.f32 1.0, %v4662
    %v4664 = vmul.f32 %v4655, %v4655
    %v4665 = vmul.f32 %v4664, -0.00019511016
    %v4666 = vadd.f32 %v4665, 0.008332121
    %v4667 = vmul.f32 %v4664, %v4666
    %v4668 = vadd.f32 %v4667, -0.16666654
    %v4669 = vmul.f32 %v4664, %v4668
    %v4670 = vadd.f32 %v4669, 1.0
    %v4671 = vmul.f32 %v4670, %v4655
    %vm4672 = vweird.f32 %v1232
    %v4673 = vadd.s32 %v4656, 3
    %v4674 = vand.u32 %v4673, 3
    %vm4675 = vcmp.lt.s32.totalorder %v4674, 2
    %vm4676 = vcmp.eq.s32.totalorder %v4674, 0
    %v4677 = vxor.u32 %v4671, 2147483648
    %v4678 = vsel %vm4676, %v4663, %v4677
    %vm4679 = vcmp.eq.s32.totalorder %v4674, 2
    %v4680 = vxor.u32 %v4663, 2147483648
    %v4681 = vsel %vm4679, %v4680, %v4671
    %v4682 = vsel %vm4675, %v4678, %v4681
    %v4683 = vsel %vm4672, nan, %v4682
    %v4684 = vand.u32 2147483647, %v1236
    %vm4685 = vcmp.le.f32.partialorder %v4684, 0.7853982
    %vm4686 = vcmp.lt.s32.totalorder %v1236, 0
    %v4687 = vand.u32 %v1236, 2139095040
    %v4688 = vshrl.u32 %v4687, 23
    %v4689 = vsub.s32 %v4688, 127
    %v4690 = vand.u32 2147483647, %v1236
    %v4691 = vand.u32 %v4690, 8388607
    %v4692 = vor.u32 %v4691, 8388608
    %v4693 = vsub.s32 0, %v4692
    %v4694 = vadd.s32 %v4689, 1
    %vm4695 = vcmp.gt.s32.totalorder %v4694, 0
    %v4696 = vsel %vm4695, %v4694, 0
    %v4697 = vshrl.u32 %v4696, 5
    %v4698 = vand.u32 %v4696, 31
    %v4699 = vsub.s32 32, %v4698
    %v4700 = vshrl.u32 683565275, %v4699
    %v4701 = vshll.u32 683565275, %v4698
    %v4702 = vshrl.u32 2475754826, %v4699
    %v4703 = vor.u32 %v4701, %v4702
    %v4704 = vshll.u32 2475754826, %v4698
    %v4705 = vshrl.u32 2131351028, %v4699
    %v4706 = vor.u32 %v4704, %v4705
    %v4707 = vshll.u32 2131351028, %v4698
    %v4708 = vshrl.u32 2102212464, %v4699
    %v4709 = vor.u32 %v4707, %v4708
    %v4710 = vshll.u32 2102212464, %v4698
    %v4711 = vshrl.u32 920167782, %v4699
    %v4712 = vor.u32 %v4710, %v4711
    %v4713 = vshll.u32 920167782, %v4698
    %v4714 = vshrl.u32 1326507024, %v4699
    %v4715 = vor.u32 %v4713, %v4714
    %vm4716 = vcmp.lt.s32.totalorder %v4697, 1
    %vm4717 = vcmp.lt.s32.totalorder %v4697, 2
    %vm4718 = vcmp.lt.s32.totalorder %v4697, 3
    %vm4719 = vcmp.lt.s32.totalorder %v4697, 4
    %v4720 = vsel %vm4716, %v4700, %v4703
    %v4721 = vsel %vm4719, %v4709, 2102212464
    %v4722 = vsel %vm4718, %v4706, %v4721
    %v4723 = vsel %vm4717, %v4720, %v4722
    %v4724 = vsel %vm4716, %v4703, %v4706
    %v4725 = vsel %vm4719, %v4712, 920167782
    %v4726 = vsel %vm4718, %v4709, %v4725
    %v4727 = vsel %vm4717, %v4724, %v4726
    %v4728 = vsel %vm4716, %v4706, %v4709
    %v4729 = vsel %vm4719, %v4715, 1326507024
    %v4730 = vsel %vm4718, %v4712, %v4729
    %v4731 = vsel %vm4717, %v4728, %v4730
    %v4732 = vshll.u32 %v4692, 8
    %v4733 = vand.u32 %v4732, 65535
    %v4734 = vshrl.u32 %v4732, 16
    %v4735 = vand.u32 %v4731, 65535
    %v4736 = vshrl.u32 %v4731, 16
    %v4737 = vmul.u32 %v4733, %v4735
    %v4738 = vmul.u32 %v4733, %v4736
    %v4739 = vmul.u32 %v4734, %v4735
    %v4740 = vmul.u32 %v4734, %v4736
    %v4741 = vshll.u32 %v4738, 16
    %v4742 = vshrl.u32 %v4738, 16
    %v4743 = vshll.u32 %v4739, 16
    %v4744 = vshrl.u32 %v4739, 16
    %vm4745 = vc.u32 %v4737, %v4741
    %v4746 = vsel %vm4745, 1, 0
    %v4747 = vadd.s32 %v4737, %v4741
    %v4748 = vadd.s32 %v4740, %v4746
    %vm4749 = vc.u32 %v4747, %v4743
    %v4750 = vsel %vm4749, 1, 0
    %v4751 = vadd.s32 %v4747, %v4743
    %v4752 = vadd.s32 %v4748, %v4750
    %v4753 = vadd.s32 %v4752, %v4742
    %v4754 = vadd.s32 %v4753, %v4744
    %v4755 = vand.u32 %v4732, 65535
    %v4756 = vshrl.u32 %v4732, 16
    %v4757 = vand.u32 %v4727, 65535
    %v4758 = vshrl.u32 %v4727, 16
    %v4759 = vmul.u32 %v4755, %v4757
    %v4760 = vmul.u32 %v4755, %v4758
    %v4761 = vmul.u32 %v4756, %v4757
    %v4762 = vmul.u32 %v4756, %v4758
    %v4763 = vshll.u32 %v4760, 16
    %v4764 = vshrl.u32 %v4760, 16
    %v4765 = vshll.u32 %v4761, 16
    %v4766 = vshrl.u32 %v4761, 16
    %vm4767 = vc.u32 %v4759, %v4763
    %v4768 = vsel %vm4767, 1, 0
    %v4769 = vadd.s32 %v4759, %v4763
    %v4770 = vadd.s32 %v4762, %v4768
    %vm4771 = vc.u32 %v4769, %v4765
    %v4772 = vsel %vm4771, 1, 0
    %v4773 = vadd.s32 %v4769, %v4765
    %v4774 = vadd.s32 %v4770, %v4772
    %v4775 = vadd.s32 %v4774, %v4764
    %v4776 = vadd.s32 %v4775, %v4766
    %v4777 = vmul.u32 %v4732, %v4723
    %v4778 = vadd.s32 %v4754, %v4773
    %vm4779 = vc.u32 %v4754, %v4773
    %v4780 = vadd.s32 %v4776, 1
    %v4781 = vsel %vm4779, %v4780, %v4776
    %v4782 = vadd.s32 %v4777, %v4781
    %v4783 = vadd.s32 %v4782, 536870912
    %v4784 = vshrl.u32 %v4783, 30
    %v4785 = vshll.u32 %v4784, 30
    %v4786 = vsub.s32 %v4782, %v4785
    %vm4787 = vcmp.lt.s32.totalorder %v4786, 0
    %v4788 = vsub.s32 0, %v4786
    %v4789 = vsel %vm4787, %v4788, %v4786
    %v4790 = vclz %v4789
    %v4791 = vsub.s32 %v4790, 2
    %vm4792 = vcmp.gt.s32.totalorder 0, %v4791
    %v4793 = vsel %vm4792, 0, %v4791
    %v4794 = vsub.s32 32, %v4793
    %v4795 = vshll.u32 %v4786, %v4793
    %v4796 = vshrl.u32 %v4778, %v4794
    %v4797 = vor.u32 %v4795, %v4796
    %v4798 = vsub.s32 4294967266, %v4793
    %v4799 = vadd.s32 %v4798, 127
    %v4800 = vshll.u32 %v4799, 23
    %v4801 = vor.u32 4788187, %v4800
    %v4802 = vand.u32 2147483647, %v4801
    %v4804 = vcvt.s32.f32 %v4797
    %v4805 = vmul.f32 %v4804, %v4802
    %v4806 = vxor.u32 %v4805, 2147483648
    %v4807 = vsel %vm4686, %v4806, %v4805
    %v4808 = vsub.s32 4, %v4784
    %v4809 = vsel %vm4686, %v4808, %v4784
    %v4810 = vsel %vm4685, %v1236, %v4807
    %v4811 = vsel %vm4685, 0, %v4809
    %v4812 = vmul.f32 %v4810, %v4810
    %v4813 = vmul.f32 %v4812, -0.001358992
    %v4814 = vadd.f32 %v4813, 0.041655596
    %v4815 = vmul.f32 %v4812, %v4814
    %v4816 = vadd.f32 %v4815, -0.4999988
    %v4817 = vmul.f32 %v4812, %v4816
    %v4818 = vadd.f32 1.0, %v4817
    %v4819 = vmul.f32 %v4810, %v4810
    %v4820 = vmul.f32 %v4819, -0.00019511016
    %v4821 = vadd.f32 %v4820, 0.008332121
    %v4822 = vmul.f32 %v4819, %v4821
    %v4823 = vadd.f32 %v4822, -0.16666654
    %v4824 = vmul.f32 %v4819, %v4823
    %v4825 = vadd.f32 %v4824, 1.0
    %v4826 = vmul.f32 %v4825, %v4810
    %vm4827 = vweird.f32 %v1236
    %v4828 = vadd.s32 %v4811, 3
    %v4829 = vand.u32 %v4828, 3
    %vm4830 = vcmp.lt.s32.totalorder %v4829, 2
    %vm4831 = vcmp.eq.s32.totalorder %v4829, 0
    %v4832 = vxor.u32 %v4826, 2147483648
    %v4833 = vsel %vm4831, %v4818, %v4832
    %vm4834 = vcmp.eq.s32.totalorder %v4829, 2
    %v4835 = vxor.u32 %v4818, 2147483648
    %v4836 = vsel %vm4834, %v4835, %v4826
    %v4837 = vsel %vm4830, %v4833, %v4836
    %v4838 = vsel %vm4827, nan, %v4837
    %v4839 = vand.u32 2147483647, %v1240
    %vm4840 = vcmp.le.f32.partialorder %v4839, 0.7853982
    %vm4841 = vcmp.lt.s32.totalorder %v1240, 0
    %v4842 = vand.u32 %v1240, 2139095040
    %v4843 = vshrl.u32 %v4842, 23
    %v4844 = vsub.s32 %v4843, 127
    %v4845 = vand.u32 2147483647, %v1240
    %v4846 = vand.u32 %v4845, 8388607
    %v4847 = vor.u32 %v4846, 8388608
    %v4848 = vsub.s32 0, %v4847
    %v4849 = vadd.s32 %v4844, 1
    %vm4850 = vcmp.gt.s32.totalorder %v4849, 0
    %v4851 = vsel %vm4850, %v4849, 0
    %v4852 = vshrl.u32 %v4851, 5
    %v4853 = vand.u32 %v4851, 31
    %v4854 = vsub.s32 32, %v4853
    %v4855 = vshrl.u32 683565275, %v4854
    %v4856 = vshll.u32 683565275, %v4853
    %v4857 = vshrl.u32 2475754826, %v4854
    %v4858 = vor.u32 %v4856, %v4857
    %v4859 = vshll.u32 2475754826, %v4853
    %v4860 = vshrl.u32 2131351028, %v4854
    %v4861 = vor.u32 %v4859, %v4860
    %v4862 = vshll.u32 2131351028, %v4853
    %v4863 = vshrl.u32 2102212464, %v4854
    %v4864 = vor.u32 %v4862, %v4863
    %v4865 = vshll.u32 2102212464, %v4853
    %v4866 = vshrl.u32 920167782, %v4854
    %v4867 = vor.u32 %v4865, %v4866
    %v4868 = vshll.u32 920167782, %v4853
    %v4869 = vshrl.u32 1326507024, %v4854
    %v4870 = vor.u32 %v4868, %v4869
    %vm4871 = vcmp.lt.s32.totalorder %v4852, 1
    %vm4872 = vcmp.lt.s32.totalorder %v4852, 2
    %vm4873 = vcmp.lt.s32.totalorder %v4852, 3
    %vm4874 = vcmp.lt.s32.totalorder %v4852, 4
    %v4875 = vsel %vm4871, %v4855, %v4858
    %v4876 = vsel %vm4874, %v4864, 2102212464
    %v4877 = vsel %vm4873, %v4861, %v4876
    %v4878 = vsel %vm4872, %v4875, %v4877
    %v4879 = vsel %vm4871, %v4858, %v4861
    %v4880 = vsel %vm4874, %v4867, 920167782
    %v4881 = vsel %vm4873, %v4864, %v4880
    %v4882 = vsel %vm4872, %v4879, %v4881
    %v4883 = vsel %vm4871, %v4861, %v4864
    %v4884 = vsel %vm4874, %v4870, 1326507024
    %v4885 = vsel %vm4873, %v4867, %v4884
    %v4886 = vsel %vm4872, %v4883, %v4885
    %v4887 = vshll.u32 %v4847, 8
    %v4888 = vand.u32 %v4887, 65535
    %v4889 = vshrl.u32 %v4887, 16
    %v4890 = vand.u32 %v4886, 65535
    %v4891 = vshrl.u32 %v4886, 16
    %v4892 = vmul.u32 %v4888, %v4890
    %v4893 = vmul.u32 %v4888, %v4891
    %v4894 = vmul.u32 %v4889, %v4890
    %v4895 = vmul.u32 %v4889, %v4891
    %v4896 = vshll.u32 %v4893, 16
    %v4897 = vshrl.u32 %v4893, 16
    %v4898 = vshll.u32 %v4894, 16
    %v4899 = vshrl.u32 %v4894, 16
    %vm4900 = vc.u32 %v4892, %v4896
    %v4901 = vsel %vm4900, 1, 0
    %v4902 = vadd.s32 %v4892, %v4896
    %v4903 = vadd.s32 %v4895, %v4901
    %vm4904 = vc.u32 %v4902, %v4898
    %v4905 = vsel %vm4904, 1, 0
    %v4906 = vadd.s32 %v4902, %v4898
    %v4907 = vadd.s32 %v4903, %v4905
    %v4908 = vadd.s32 %v4907, %v4897
    %v4909 = vadd.s32 %v4908, %v4899
    %v4910 = vand.u32 %v4887, 65535
    %v4911 = vshrl.u32 %v4887, 16
    %v4912 = vand.u32 %v4882, 65535
    %v4913 = vshrl.u32 %v4882, 16
    %v4914 = vmul.u32 %v4910, %v4912
    %v4915 = vmul.u32 %v4910, %v4913
    %v4916 = vmul.u32 %v4911, %v4912
    %v4917 = vmul.u32 %v4911, %v4913
    %v4918 = vshll.u32 %v4915, 16
    %v4919 = vshrl.u32 %v4915, 16
    %v4920 = vshll.u32 %v4916, 16
    %v4921 = vshrl.u32 %v4916, 16
    %vm4922 = vc.u32 %v4914, %v4918
    %v4923 = vsel %vm4922, 1, 0
    %v4924 = vadd.s32 %v4914, %v4918
    %v4925 = vadd.s32 %v4917, %v4923
    %vm4926 = vc.u32 %v4924, %v4920
    %v4927 = vsel %vm4926, 1, 0
    %v4928 = vadd.s32 %v4924, %v4920
    %v4929 = vadd.s32 %v4925, %v4927
    %v4930 = vadd.s32 %v4929, %v4919
    %v4931 = vadd.s32 %v4930, %v4921
    %v4932 = vmul.u32 %v4887, %v4878
    %v4933 = vadd.s32 %v4909, %v4928
    %vm4934 = vc.u32 %v4909, %v4928
    %v4935 = vadd.s32 %v4931, 1
    %v4936 = vsel %vm4934, %v4935, %v4931
    %v4937 = vadd.s32 %v4932, %v4936
    %v4938 = vadd.s32 %v4937, 536870912
    %v4939 = vshrl.u32 %v4938, 30
    %v4940 = vshll.u32 %v4939, 30
    %v4941 = vsub.s32 %v4937, %v4940
    %vm4942 = vcmp.lt.s32.totalorder %v4941, 0
    %v4943 = vsub.s32 0, %v4941
    %v4944 = vsel %vm4942, %v4943, %v4941
    %v4945 = vclz %v4944
    %v4946 = vsub.s32 %v4945, 2
    %vm4947 = vcmp.gt.s32.totalorder 0, %v4946
    %v4948 = vsel %vm4947, 0, %v4946
    %v4949 = vsub.s32 32, %v4948
    %v4950 = vshll.u32 %v4941, %v4948
    %v4951 = vshrl.u32 %v4933, %v4949
    %v4952 = vor.u32 %v4950, %v4951
    %v4953 = vsub.s32 4294967266, %v4948
    %v4954 = vadd.s32 %v4953, 127
    %v4955 = vshll.u32 %v4954, 23
    %v4956 = vor.u32 4788187, %v4955
    %v4957 = vand.u32 2147483647, %v4956
    %v4959 = vcvt.s32.f32 %v4952
    %v4960 = vmul.f32 %v4959, %v4957
    %v4961 = vxor.u32 %v4960, 2147483648
    %v4962 = vsel %vm4841, %v4961, %v4960
    %v4963 = vsub.s32 4, %v4939
    %v4964 = vsel %vm4841, %v4963, %v4939
    %v4965 = vsel %vm4840, %v1240, %v4962
    %v4966 = vsel %vm4840, 0, %v4964
    %v4967 = vmul.f32 %v4965, %v4965
    %v4968 = vmul.f32 %v4967, -0.001358992
    %v4969 = vadd.f32 %v4968, 0.041655596
    %v4970 = vmul.f32 %v4967, %v4969
    %v4971 = vadd.f32 %v4970, -0.4999988
    %v4972 = vmul.f32 %v4967, %v4971
    %v4973 = vadd.f32 1.0, %v4972
    %v4974 = vmul.f32 %v4965, %v4965
    %v4975 = vmul.f32 %v4974, -0.00019511016
    %v4976 = vadd.f32 %v4975, 0.008332121
    %v4977 = vmul.f32 %v4974, %v4976
    %v4978 = vadd.f32 %v4977, -0.16666654
    %v4979 = vmul.f32 %v4974, %v4978
    %v4980 = vadd.f32 %v4979, 1.0
    %v4981 = vmul.f32 %v4980, %v4965
    %vm4982 = vweird.f32 %v1240
    %v4983 = vadd.s32 %v4966, 3
    %v4984 = vand.u32 %v4983, 3
    %vm4985 = vcmp.lt.s32.totalorder %v4984, 2
    %vm4986 = vcmp.eq.s32.totalorder %v4984, 0
    %v4987 = vxor.u32 %v4981, 2147483648
    %v4988 = vsel %vm4986, %v4973, %v4987
    %vm4989 = vcmp.eq.s32.totalorder %v4984, 2
    %v4990 = vxor.u32 %v4973, 2147483648
    %v4991 = vsel %vm4989, %v4990, %v4981
    %v4992 = vsel %vm4985, %v4988, %v4991
    %v4993 = vsel %vm4982, nan, %v4992
    %v4994 = vand.u32 2147483647, %v1244
    %vm4995 = vcmp.le.f32.partialorder %v4994, 0.7853982
    %vm4996 = vcmp.lt.s32.totalorder %v1244, 0
    %v4997 = vand.u32 %v1244, 2139095040
    %v4998 = vshrl.u32 %v4997, 23
    %v4999 = vsub.s32 %v4998, 127
    %v5000 = vand.u32 2147483647, %v1244
    %v5001 = vand.u32 %v5000, 8388607
    %v5002 = vor.u32 %v5001, 8388608
    %v5003 = vsub.s32 0, %v5002
    %v5004 = vadd.s32 %v4999, 1
    %vm5005 = vcmp.gt.s32.totalorder %v5004, 0
    %v5006 = vsel %vm5005, %v5004, 0
    %v5007 = vshrl.u32 %v5006, 5
    %v5008 = vand.u32 %v5006, 31
    %v5009 = vsub.s32 32, %v5008
    %v5010 = vshrl.u32 683565275, %v5009
    %v5011 = vshll.u32 683565275, %v5008
    %v5012 = vshrl.u32 2475754826, %v5009
    %v5013 = vor.u32 %v5011, %v5012
    %v5014 = vshll.u32 2475754826, %v5008
    %v5015 = vshrl.u32 2131351028, %v5009
    %v5016 = vor.u32 %v5014, %v5015
    %v5017 = vshll.u32 2131351028, %v5008
    %v5018 = vshrl.u32 2102212464, %v5009
    %v5019 = vor.u32 %v5017, %v5018
    %v5020 = vshll.u32 2102212464, %v5008
    %v5021 = vshrl.u32 920167782, %v5009
    %v5022 = vor.u32 %v5020, %v5021
    %v5023 = vshll.u32 920167782, %v5008
    %v5024 = vshrl.u32 1326507024, %v5009
    %v5025 = vor.u32 %v5023, %v5024
    %vm5026 = vcmp.lt.s32.totalorder %v5007, 1
    %vm5027 = vcmp.lt.s32.totalorder %v5007, 2
    %vm5028 = vcmp.lt.s32.totalorder %v5007, 3
    %vm5029 = vcmp.lt.s32.totalorder %v5007, 4
    %v5030 = vsel %vm5026, %v5010, %v5013
    %v5031 = vsel %vm5029, %v5019, 2102212464
    %v5032 = vsel %vm5028, %v5016, %v5031
    %v5033 = vsel %vm5027, %v5030, %v5032
    %v5034 = vsel %vm5026, %v5013, %v5016
    %v5035 = vsel %vm5029, %v5022, 920167782
    %v5036 = vsel %vm5028, %v5019, %v5035
    %v5037 = vsel %vm5027, %v5034, %v5036
    %v5038 = vsel %vm5026, %v5016, %v5019
    %v5039 = vsel %vm5029, %v5025, 1326507024
    %v5040 = vsel %vm5028, %v5022, %v5039
    %v5041 = vsel %vm5027, %v5038, %v5040
    %v5042 = vshll.u32 %v5002, 8
    %v5043 = vand.u32 %v5042, 65535
    %v5044 = vshrl.u32 %v5042, 16
    %v5045 = vand.u32 %v5041, 65535
    %v5046 = vshrl.u32 %v5041, 16
    %v5047 = vmul.u32 %v5043, %v5045
    %v5048 = vmul.u32 %v5043, %v5046
    %v5049 = vmul.u32 %v5044, %v5045
    %v5050 = vmul.u32 %v5044, %v5046
    %v5051 = vshll.u32 %v5048, 16
    %v5052 = vshrl.u32 %v5048, 16
    %v5053 = vshll.u32 %v5049, 16
    %v5054 = vshrl.u32 %v5049, 16
    %vm5055 = vc.u32 %v5047, %v5051
    %v5056 = vsel %vm5055, 1, 0
    %v5057 = vadd.s32 %v5047, %v5051
    %v5058 = vadd.s32 %v5050, %v5056
    %vm5059 = vc.u32 %v5057, %v5053
    %v5060 = vsel %vm5059, 1, 0
    %v5061 = vadd.s32 %v5057, %v5053
    %v5062 = vadd.s32 %v5058, %v5060
    %v5063 = vadd.s32 %v5062, %v5052
    %v5064 = vadd.s32 %v5063, %v5054
    %v5065 = vand.u32 %v5042, 65535
    %v5066 = vshrl.u32 %v5042, 16
    %v5067 = vand.u32 %v5037, 65535
    %v5068 = vshrl.u32 %v5037, 16
    %v5069 = vmul.u32 %v5065, %v5067
    %v5070 = vmul.u32 %v5065, %v5068
    %v5071 = vmul.u32 %v5066, %v5067
    %v5072 = vmul.u32 %v5066, %v5068
    %v5073 = vshll.u32 %v5070, 16
    %v5074 = vshrl.u32 %v5070, 16
    %v5075 = vshll.u32 %v5071, 16
    %v5076 = vshrl.u32 %v5071, 16
    %vm5077 = vc.u32 %v5069, %v5073
    %v5078 = vsel %vm5077, 1, 0
    %v5079 = vadd.s32 %v5069, %v5073
    %v5080 = vadd.s32 %v5072, %v5078
    %vm5081 = vc.u32 %v5079, %v5075
    %v5082 = vsel %vm5081, 1, 0
    %v5083 = vadd.s32 %v5079, %v5075
    %v5084 = vadd.s32 %v5080, %v5082
    %v5085 = vadd.s32 %v5084, %v5074
    %v5086 = vadd.s32 %v5085, %v5076
    %v5087 = vmul.u32 %v5042, %v5033
    %v5088 = vadd.s32 %v5064, %v5083
    %vm5089 = vc.u32 %v5064, %v5083
    %v5090 = vadd.s32 %v5086, 1
    %v5091 = vsel %vm5089, %v5090, %v5086
    %v5092 = vadd.s32 %v5087, %v5091
    %v5093 = vadd.s32 %v5092, 536870912
    %v5094 = vshrl.u32 %v5093, 30
    %v5095 = vshll.u32 %v5094, 30
    %v5096 = vsub.s32 %v5092, %v5095
    %vm5097 = vcmp.lt.s32.totalorder %v5096, 0
    %v5098 = vsub.s32 0, %v5096
    %v5099 = vsel %vm5097, %v5098, %v5096
    %v5100 = vclz %v5099
    %v5101 = vsub.s32 %v5100, 2
    %vm5102 = vcmp.gt.s32.totalorder 0, %v5101
    %v5103 = vsel %vm5102, 0, %v5101
    %v5104 = vsub.s32 32, %v5103
    %v5105 = vshll.u32 %v5096, %v5103
    %v5106 = vshrl.u32 %v5088, %v5104
    %v5107 = vor.u32 %v5105, %v5106
    %v5108 = vsub.s32 4294967266, %v5103
    %v5109 = vadd.s32 %v5108, 127
    %v5110 = vshll.u32 %v5109, 23
    %v5111 = vor.u32 4788187, %v5110
    %v5112 = vand.u32 2147483647, %v5111
    %v5114 = vcvt.s32.f32 %v5107
    %v5115 = vmul.f32 %v5114, %v5112
    %v5116 = vxor.u32 %v5115, 2147483648
    %v5117 = vsel %vm4996, %v5116, %v5115
    %v5118 = vsub.s32 4, %v5094
    %v5119 = vsel %vm4996, %v5118, %v5094
    %v5120 = vsel %vm4995, %v1244, %v5117
    %v5121 = vsel %vm4995, 0, %v5119
    %v5122 = vmul.f32 %v5120, %v5120
    %v5123 = vmul.f32 %v5122, -0.001358992
    %v5124 = vadd.f32 %v5123, 0.041655596
    %v5125 = vmul.f32 %v5122, %v5124
    %v5126 = vadd.f32 %v5125, -0.4999988
    %v5127 = vmul.f32 %v5122, %v5126
    %v5128 = vadd.f32 1.0, %v5127
    %v5129 = vmul.f32 %v5120, %v5120
    %v5130 = vmul.f32 %v5129, -0.00019511016
    %v5131 = vadd.f32 %v5130, 0.008332121
    %v5132 = vmul.f32 %v5129, %v5131
    %v5133 = vadd.f32 %v5132, -0.16666654
    %v5134 = vmul.f32 %v5129, %v5133
    %v5135 = vadd.f32 %v5134, 1.0
    %v5136 = vmul.f32 %v5135, %v5120
    %vm5137 = vweird.f32 %v1244
    %v5138 = vadd.s32 %v5121, 3
    %v5139 = vand.u32 %v5138, 3
    %vm5140 = vcmp.lt.s32.totalorder %v5139, 2
    %vm5141 = vcmp.eq.s32.totalorder %v5139, 0
    %v5142 = vxor.u32 %v5136, 2147483648
    %v5143 = vsel %vm5141, %v5128, %v5142
    %vm5144 = vcmp.eq.s32.totalorder %v5139, 2
    %v5145 = vxor.u32 %v5128, 2147483648
    %v5146 = vsel %vm5144, %v5145, %v5136
    %v5147 = vsel %vm5140, %v5143, %v5146
    %v5148 = vsel %vm5137, nan, %v5147
    %v5149 = vand.u32 2147483647, %v1248
    %vm5150 = vcmp.le.f32.partialorder %v5149, 0.7853982
    %vm5151 = vcmp.lt.s32.totalorder %v1248, 0
    %v5152 = vand.u32 %v1248, 2139095040
    %v5153 = vshrl.u32 %v5152, 23
    %v5154 = vsub.s32 %v5153, 127
    %v5155 = vand.u32 2147483647, %v1248
    %v5156 = vand.u32 %v5155, 8388607
    %v5157 = vor.u32 %v5156, 8388608
    %v5158 = vsub.s32 0, %v5157
    %v5159 = vadd.s32 %v5154, 1
    %vm5160 = vcmp.gt.s32.totalorder %v5159, 0
    %v5161 = vsel %vm5160, %v5159, 0
    %v5162 = vshrl.u32 %v5161, 5
    %v5163 = vand.u32 %v5161, 31
    %v5164 = vsub.s32 32, %v5163
    %v5165 = vshrl.u32 683565275, %v5164
    %v5166 = vshll.u32 683565275, %v5163
    %v5167 = vshrl.u32 2475754826, %v5164
    %v5168 = vor.u32 %v5166, %v5167
    %v5169 = vshll.u32 2475754826, %v5163
    %v5170 = vshrl.u32 2131351028, %v5164
    %v5171 = vor.u32 %v5169, %v5170
    %v5172 = vshll.u32 2131351028, %v5163
    %v5173 = vshrl.u32 2102212464, %v5164
    %v5174 = vor.u32 %v5172, %v5173
    %v5175 = vshll.u32 2102212464, %v5163
    %v5176 = vshrl.u32 920167782, %v5164
    %v5177 = vor.u32 %v5175, %v5176
    %v5178 = vshll.u32 920167782, %v5163
    %v5179 = vshrl.u32 1326507024, %v5164
    %v5180 = vor.u32 %v5178, %v5179
    %vm5181 = vcmp.lt.s32.totalorder %v5162, 1
    %vm5182 = vcmp.lt.s32.totalorder %v5162, 2
    %vm5183 = vcmp.lt.s32.totalorder %v5162, 3
    %vm5184 = vcmp.lt.s32.totalorder %v5162, 4
    %v5185 = vsel %vm5181, %v5165, %v5168
    %v5186 = vsel %vm5184, %v5174, 2102212464
    %v5187 = vsel %vm5183, %v5171, %v5186
    %v5188 = vsel %vm5182, %v5185, %v5187
    %v5189 = vsel %vm5181, %v5168, %v5171
    %v5190 = vsel %vm5184, %v5177, 920167782
    %v5191 = vsel %vm5183, %v5174, %v5190
    %v5192 = vsel %vm5182, %v5189, %v5191
    %v5193 = vsel %vm5181, %v5171, %v5174
    %v5194 = vsel %vm5184, %v5180, 1326507024
    %v5195 = vsel %vm5183, %v5177, %v5194
    %v5196 = vsel %vm5182, %v5193, %v5195
    %v5197 = vshll.u32 %v5157, 8
    %v5198 = vand.u32 %v5197, 65535
    %v5199 = vshrl.u32 %v5197, 16
    %v5200 = vand.u32 %v5196, 65535
    %v5201 = vshrl.u32 %v5196, 16
    %v5202 = vmul.u32 %v5198, %v5200
    %v5203 = vmul.u32 %v5198, %v5201
    %v5204 = vmul.u32 %v5199, %v5200
    %v5205 = vmul.u32 %v5199, %v5201
    %v5206 = vshll.u32 %v5203, 16
    %v5207 = vshrl.u32 %v5203, 16
    %v5208 = vshll.u32 %v5204, 16
    %v5209 = vshrl.u32 %v5204, 16
    %vm5210 = vc.u32 %v5202, %v5206
    %v5211 = vsel %vm5210, 1, 0
    %v5212 = vadd.s32 %v5202, %v5206
    %v5213 = vadd.s32 %v5205, %v5211
    %vm5214 = vc.u32 %v5212, %v5208
    %v5215 = vsel %vm5214, 1, 0
    %v5216 = vadd.s32 %v5212, %v5208
    %v5217 = vadd.s32 %v5213, %v5215
    %v5218 = vadd.s32 %v5217, %v5207
    %v5219 = vadd.s32 %v5218, %v5209
    %v5220 = vand.u32 %v5197, 65535
    %v5221 = vshrl.u32 %v5197, 16
    %v5222 = vand.u32 %v5192, 65535
    %v5223 = vshrl.u32 %v5192, 16
    %v5224 = vmul.u32 %v5220, %v5222
    %v5225 = vmul.u32 %v5220, %v5223
    %v5226 = vmul.u32 %v5221, %v5222
    %v5227 = vmul.u32 %v5221, %v5223
    %v5228 = vshll.u32 %v5225, 16
    %v5229 = vshrl.u32 %v5225, 16
    %v5230 = vshll.u32 %v5226, 16
    %v5231 = vshrl.u32 %v5226, 16
    %vm5232 = vc.u32 %v5224, %v5228
    %v5233 = vsel %vm5232, 1, 0
    %v5234 = vadd.s32 %v5224, %v5228
    %v5235 = vadd.s32 %v5227, %v5233
    %vm5236 = vc.u32 %v5234, %v5230
    %v5237 = vsel %vm5236, 1, 0
    %v5238 = vadd.s32 %v5234, %v5230
    %v5239 = vadd.s32 %v5235, %v5237
    %v5240 = vadd.s32 %v5239, %v5229
    %v5241 = vadd.s32 %v5240, %v5231
    %v5242 = vmul.u32 %v5197, %v5188
    %v5243 = vadd.s32 %v5219, %v5238
    %vm5244 = vc.u32 %v5219, %v5238
    %v5245 = vadd.s32 %v5241, 1
    %v5246 = vsel %vm5244, %v5245, %v5241
    %v5247 = vadd.s32 %v5242, %v5246
    %v5248 = vadd.s32 %v5247, 536870912
    %v5249 = vshrl.u32 %v5248, 30
    %v5250 = vshll.u32 %v5249, 30
    %v5251 = vsub.s32 %v5247, %v5250
    %vm5252 = vcmp.lt.s32.totalorder %v5251, 0
    %v5253 = vsub.s32 0, %v5251
    %v5254 = vsel %vm5252, %v5253, %v5251
    %v5255 = vclz %v5254
    %v5256 = vsub.s32 %v5255, 2
    %vm5257 = vcmp.gt.s32.totalorder 0, %v5256
    %v5258 = vsel %vm5257, 0, %v5256
    %v5259 = vsub.s32 32, %v5258
    %v5260 = vshll.u32 %v5251, %v5258
    %v5261 = vshrl.u32 %v5243, %v5259
    %v5262 = vor.u32 %v5260, %v5261
    %v5263 = vsub.s32 4294967266, %v5258
    %v5264 = vadd.s32 %v5263, 127
    %v5265 = vshll.u32 %v5264, 23
    %v5266 = vor.u32 4788187, %v5265
    %v5267 = vand.u32 2147483647, %v5266
    %v5269 = vcvt.s32.f32 %v5262
    %v5270 = vmul.f32 %v5269, %v5267
    %v5271 = vxor.u32 %v5270, 2147483648
    %v5272 = vsel %vm5151, %v5271, %v5270
    %v5273 = vsub.s32 4, %v5249
    %v5274 = vsel %vm5151, %v5273, %v5249
    %v5275 = vsel %vm5150, %v1248, %v5272
    %v5276 = vsel %vm5150, 0, %v5274
    %v5277 = vmul.f32 %v5275, %v5275
    %v5278 = vmul.f32 %v5277, -0.001358992
    %v5279 = vadd.f32 %v5278, 0.041655596
    %v5280 = vmul.f32 %v5277, %v5279
    %v5281 = vadd.f32 %v5280, -0.4999988
    %v5282 = vmul.f32 %v5277, %v5281
    %v5283 = vadd.f32 1.0, %v5282
    %v5284 = vmul.f32 %v5275, %v5275
    %v5285 = vmul.f32 %v5284, -0.00019511016
    %v5286 = vadd.f32 %v5285, 0.008332121
    %v5287 = vmul.f32 %v5284, %v5286
    %v5288 = vadd.f32 %v5287, -0.16666654
    %v5289 = vmul.f32 %v5284, %v5288
    %v5290 = vadd.f32 %v5289, 1.0
    %v5291 = vmul.f32 %v5290, %v5275
    %vm5292 = vweird.f32 %v1248
    %v5293 = vadd.s32 %v5276, 3
    %v5294 = vand.u32 %v5293, 3
    %vm5295 = vcmp.lt.s32.totalorder %v5294, 2
    %vm5296 = vcmp.eq.s32.totalorder %v5294, 0
    %v5297 = vxor.u32 %v5291, 2147483648
    %v5298 = vsel %vm5296, %v5283, %v5297
    %vm5299 = vcmp.eq.s32.totalorder %v5294, 2
    %v5300 = vxor.u32 %v5283, 2147483648
    %v5301 = vsel %vm5299, %v5300, %v5291
    %v5302 = vsel %vm5295, %v5298, %v5301
    %v5303 = vsel %vm5292, nan, %v5302
    %v5304 = vand.u32 2147483647, %v1252
    %vm5305 = vcmp.le.f32.partialorder %v5304, 0.7853982
    %vm5306 = vcmp.lt.s32.totalorder %v1252, 0
    %v5307 = vand.u32 %v1252, 2139095040
    %v5308 = vshrl.u32 %v5307, 23
    %v5309 = vsub.s32 %v5308, 127
    %v5310 = vand.u32 2147483647, %v1252
    %v5311 = vand.u32 %v5310, 8388607
    %v5312 = vor.u32 %v5311, 8388608
    %v5313 = vsub.s32 0, %v5312
    %v5314 = vadd.s32 %v5309, 1
    %vm5315 = vcmp.gt.s32.totalorder %v5314, 0
    %v5316 = vsel %vm5315, %v5314, 0
    %v5317 = vshrl.u32 %v5316, 5
    %v5318 = vand.u32 %v5316, 31
    %v5319 = vsub.s32 32, %v5318
    %v5320 = vshrl.u32 683565275, %v5319
    %v5321 = vshll.u32 683565275, %v5318
    %v5322 = vshrl.u32 2475754826, %v5319
    %v5323 = vor.u32 %v5321, %v5322
    %v5324 = vshll.u32 2475754826, %v5318
    %v5325 = vshrl.u32 2131351028, %v5319
    %v5326 = vor.u32 %v5324, %v5325
    %v5327 = vshll.u32 2131351028, %v5318
    %v5328 = vshrl.u32 2102212464, %v5319
    %v5329 = vor.u32 %v5327, %v5328
    %v5330 = vshll.u32 2102212464, %v5318
    %v5331 = vshrl.u32 920167782, %v5319
    %v5332 = vor.u32 %v5330, %v5331
    %v5333 = vshll.u32 920167782, %v5318
    %v5334 = vshrl.u32 1326507024, %v5319
    %v5335 = vor.u32 %v5333, %v5334
    %vm5336 = vcmp.lt.s32.totalorder %v5317, 1
    %vm5337 = vcmp.lt.s32.totalorder %v5317, 2
    %vm5338 = vcmp.lt.s32.totalorder %v5317, 3
    %vm5339 = vcmp.lt.s32.totalorder %v5317, 4
    %v5340 = vsel %vm5336, %v5320, %v5323
    %v5341 = vsel %vm5339, %v5329, 2102212464
    %v5342 = vsel %vm5338, %v5326, %v5341
    %v5343 = vsel %vm5337, %v5340, %v5342
    %v5344 = vsel %vm5336, %v5323, %v5326
    %v5345 = vsel %vm5339, %v5332, 920167782
    %v5346 = vsel %vm5338, %v5329, %v5345
    %v5347 = vsel %vm5337, %v5344, %v5346
    %v5348 = vsel %vm5336, %v5326, %v5329
    %v5349 = vsel %vm5339, %v5335, 1326507024
    %v5350 = vsel %vm5338, %v5332, %v5349
    %v5351 = vsel %vm5337, %v5348, %v5350
    %v5352 = vshll.u32 %v5312, 8
    %v5353 = vand.u32 %v5352, 65535
    %v5354 = vshrl.u32 %v5352, 16
    %v5355 = vand.u32 %v5351, 65535
    %v5356 = vshrl.u32 %v5351, 16
    %v5357 = vmul.u32 %v5353, %v5355
    %v5358 = vmul.u32 %v5353, %v5356
    %v5359 = vmul.u32 %v5354, %v5355
    %v5360 = vmul.u32 %v5354, %v5356
    %v5361 = vshll.u32 %v5358, 16
    %v5362 = vshrl.u32 %v5358, 16
    %v5363 = vshll.u32 %v5359, 16
    %v5364 = vshrl.u32 %v5359, 16
    %vm5365 = vc.u32 %v5357, %v5361
    %v5366 = vsel %vm5365, 1, 0
    %v5367 = vadd.s32 %v5357, %v5361
    %v5368 = vadd.s32 %v5360, %v5366
    %vm5369 = vc.u32 %v5367, %v5363
    %v5370 = vsel %vm5369, 1, 0
    %v5371 = vadd.s32 %v5367, %v5363
    %v5372 = vadd.s32 %v5368, %v5370
    %v5373 = vadd.s32 %v5372, %v5362
    %v5374 = vadd.s32 %v5373, %v5364
    %v5375 = vand.u32 %v5352, 65535
    %v5376 = vshrl.u32 %v5352, 16
    %v5377 = vand.u32 %v5347, 65535
    %v5378 = vshrl.u32 %v5347, 16
    %v5379 = vmul.u32 %v5375, %v5377
    %v5380 = vmul.u32 %v5375, %v5378
    %v5381 = vmul.u32 %v5376, %v5377
    %v5382 = vmul.u32 %v5376, %v5378
    %v5383 = vshll.u32 %v5380, 16
    %v5384 = vshrl.u32 %v5380, 16
    %v5385 = vshll.u32 %v5381, 16
    %v5386 = vshrl.u32 %v5381, 16
    %vm5387 = vc.u32 %v5379, %v5383
    %v5388 = vsel %vm5387, 1, 0
    %v5389 = vadd.s32 %v5379, %v5383
    %v5390 = vadd.s32 %v5382, %v5388
    %vm5391 = vc.u32 %v5389, %v5385
    %v5392 = vsel %vm5391, 1, 0
    %v5393 = vadd.s32 %v5389, %v5385
    %v5394 = vadd.s32 %v5390, %v5392
    %v5395 = vadd.s32 %v5394, %v5384
    %v5396 = vadd.s32 %v5395, %v5386
    %v5397 = vmul.u32 %v5352, %v5343
    %v5398 = vadd.s32 %v5374, %v5393
    %vm5399 = vc.u32 %v5374, %v5393
    %v5400 = vadd.s32 %v5396, 1
    %v5401 = vsel %vm5399, %v5400, %v5396
    %v5402 = vadd.s32 %v5397, %v5401
    %v5403 = vadd.s32 %v5402, 536870912
    %v5404 = vshrl.u32 %v5403, 30
    %v5405 = vshll.u32 %v5404, 30
    %v5406 = vsub.s32 %v5402, %v5405
    %vm5407 = vcmp.lt.s32.totalorder %v5406, 0
    %v5408 = vsub.s32 0, %v5406
    %v5409 = vsel %vm5407, %v5408, %v5406
    %v5410 = vclz %v5409
    %v5411 = vsub.s32 %v5410, 2
    %vm5412 = vcmp.gt.s32.totalorder 0, %v5411
    %v5413 = vsel %vm5412, 0, %v5411
    %v5414 = vsub.s32 32, %v5413
    %v5415 = vshll.u32 %v5406, %v5413
    %v5416 = vshrl.u32 %v5398, %v5414
    %v5417 = vor.u32 %v5415, %v5416
    %v5418 = vsub.s32 4294967266, %v5413
    %v5419 = vadd.s32 %v5418, 127
    %v5420 = vshll.u32 %v5419, 23
    %v5421 = vor.u32 4788187, %v5420
    %v5422 = vand.u32 2147483647, %v5421
    %v5424 = vcvt.s32.f32 %v5417
    %v5425 = vmul.f32 %v5424, %v5422
    %v5426 = vxor.u32 %v5425, 2147483648
    %v5427 = vsel %vm5306, %v5426, %v5425
    %v5428 = vsub.s32 4, %v5404
    %v5429 = vsel %vm5306, %v5428, %v5404
    %v5430 = vsel %vm5305, %v1252, %v5427
    %v5431 = vsel %vm5305, 0, %v5429
    %v5432 = vmul.f32 %v5430, %v5430
    %v5433 = vmul.f32 %v5432, -0.001358992
    %v5434 = vadd.f32 %v5433, 0.041655596
    %v5435 = vmul.f32 %v5432, %v5434
    %v5436 = vadd.f32 %v5435, -0.4999988
    %v5437 = vmul.f32 %v5432, %v5436
    %v5438 = vadd.f32 1.0, %v5437
    %v5439 = vmul.f32 %v5430, %v5430
    %v5440 = vmul.f32 %v5439, -0.00019511016
    %v5441 = vadd.f32 %v5440, 0.008332121
    %v5442 = vmul.f32 %v5439, %v5441
    %v5443 = vadd.f32 %v5442, -0.16666654
    %v5444 = vmul.f32 %v5439, %v5443
    %v5445 = vadd.f32 %v5444, 1.0
    %v5446 = vmul.f32 %v5445, %v5430
    %vm5447 = vweird.f32 %v1252
    %v5448 = vadd.s32 %v5431, 3
    %v5449 = vand.u32 %v5448, 3
    %vm5450 = vcmp.lt.s32.totalorder %v5449, 2
    %vm5451 = vcmp.eq.s32.totalorder %v5449, 0
    %v5452 = vxor.u32 %v5446, 2147483648
    %v5453 = vsel %vm5451, %v5438, %v5452
    %vm5454 = vcmp.eq.s32.totalorder %v5449, 2
    %v5455 = vxor.u32 %v5438, 2147483648
    %v5456 = vsel %vm5454, %v5455, %v5446
    %v5457 = vsel %vm5450, %v5453, %v5456
    %v5458 = vsel %vm5447, nan, %v5457
    %v5459 = vand.u32 2147483647, %v1256
    %vm5460 = vcmp.le.f32.partialorder %v5459, 0.7853982
    %vm5461 = vcmp.lt.s32.totalorder %v1256, 0
    %v5462 = vand.u32 %v1256, 2139095040
    %v5463 = vshrl.u32 %v5462, 23
    %v5464 = vsub.s32 %v5463, 127
    %v5465 = vand.u32 2147483647, %v1256
    %v5466 = vand.u32 %v5465, 8388607
    %v5467 = vor.u32 %v5466, 8388608
    %v5468 = vsub.s32 0, %v5467
    %v5469 = vadd.s32 %v5464, 1
    %vm5470 = vcmp.gt.s32.totalorder %v5469, 0
    %v5471 = vsel %vm5470, %v5469, 0
    %v5472 = vshrl.u32 %v5471, 5
    %v5473 = vand.u32 %v5471, 31
    %v5474 = vsub.s32 32, %v5473
    %v5475 = vshrl.u32 683565275, %v5474
    %v5476 = vshll.u32 683565275, %v5473
    %v5477 = vshrl.u32 2475754826, %v5474
    %v5478 = vor.u32 %v5476, %v5477
    %v5479 = vshll.u32 2475754826, %v5473
    %v5480 = vshrl.u32 2131351028, %v5474
    %v5481 = vor.u32 %v5479, %v5480
    %v5482 = vshll.u32 2131351028, %v5473
    %v5483 = vshrl.u32 2102212464, %v5474
    %v5484 = vor.u32 %v5482, %v5483
    %v5485 = vshll.u32 2102212464, %v5473
    %v5486 = vshrl.u32 920167782, %v5474
    %v5487 = vor.u32 %v5485, %v5486
    %v5488 = vshll.u32 920167782, %v5473
    %v5489 = vshrl.u32 1326507024, %v5474
    %v5490 = vor.u32 %v5488, %v5489
    %vm5491 = vcmp.lt.s32.totalorder %v5472, 1
    %vm5492 = vcmp.lt.s32.totalorder %v5472, 2
    %vm5493 = vcmp.lt.s32.totalorder %v5472, 3
    %vm5494 = vcmp.lt.s32.totalorder %v5472, 4
    %v5495 = vsel %vm5491, %v5475, %v5478
    %v5496 = vsel %vm5494, %v5484, 2102212464
    %v5497 = vsel %vm5493, %v5481, %v5496
    %v5498 = vsel %vm5492, %v5495, %v5497
    %v5499 = vsel %vm5491, %v5478, %v5481
    %v5500 = vsel %vm5494, %v5487, 920167782
    %v5501 = vsel %vm5493, %v5484, %v5500
    %v5502 = vsel %vm5492, %v5499, %v5501
    %v5503 = vsel %vm5491, %v5481, %v5484
    %v5504 = vsel %vm5494, %v5490, 1326507024
    %v5505 = vsel %vm5493, %v5487, %v5504
    %v5506 = vsel %vm5492, %v5503, %v5505
    %v5507 = vshll.u32 %v5467, 8
    %v5508 = vand.u32 %v5507, 65535
    %v5509 = vshrl.u32 %v5507, 16
    %v5510 = vand.u32 %v5506, 65535
    %v5511 = vshrl.u32 %v5506, 16
    %v5512 = vmul.u32 %v5508, %v5510
    %v5513 = vmul.u32 %v5508, %v5511
    %v5514 = vmul.u32 %v5509, %v5510
    %v5515 = vmul.u32 %v5509, %v5511
    %v5516 = vshll.u32 %v5513, 16
    %v5517 = vshrl.u32 %v5513, 16
    %v5518 = vshll.u32 %v5514, 16
    %v5519 = vshrl.u32 %v5514, 16
    %vm5520 = vc.u32 %v5512, %v5516
    %v5521 = vsel %vm5520, 1, 0
    %v5522 = vadd.s32 %v5512, %v5516
    %v5523 = vadd.s32 %v5515, %v5521
    %vm5524 = vc.u32 %v5522, %v5518
    %v5525 = vsel %vm5524, 1, 0
    %v5526 = vadd.s32 %v5522, %v5518
    %v5527 = vadd.s32 %v5523, %v5525
    %v5528 = vadd.s32 %v5527, %v5517
    %v5529 = vadd.s32 %v5528, %v5519
    %v5530 = vand.u32 %v5507, 65535
    %v5531 = vshrl.u32 %v5507, 16
    %v5532 = vand.u32 %v5502, 65535
    %v5533 = vshrl.u32 %v5502, 16
    %v5534 = vmul.u32 %v5530, %v5532
    %v5535 = vmul.u32 %v5530, %v5533
    %v5536 = vmul.u32 %v5531, %v5532
    %v5537 = vmul.u32 %v5531, %v5533
    %v5538 = vshll.u32 %v5535, 16
    %v5539 = vshrl.u32 %v5535, 16
    %v5540 = vshll.u32 %v5536, 16
    %v5541 = vshrl.u32 %v5536, 16
    %vm5542 = vc.u32 %v5534, %v5538
    %v5543 = vsel %vm5542, 1, 0
    %v5544 = vadd.s32 %v5534, %v5538
    %v5545 = vadd.s32 %v5537, %v5543
    %vm5546 = vc.u32 %v5544, %v5540
    %v5547 = vsel %vm5546, 1, 0
    %v5548 = vadd.s32 %v5544, %v5540
    %v5549 = vadd.s32 %v5545, %v5547
    %v5550 = vadd.s32 %v5549, %v5539
    %v5551 = vadd.s32 %v5550, %v5541
    %v5552 = vmul.u32 %v5507, %v5498
    %v5553 = vadd.s32 %v5529, %v5548
    %vm5554 = vc.u32 %v5529, %v5548
    %v5555 = vadd.s32 %v5551, 1
    %v5556 = vsel %vm5554, %v5555, %v5551
    %v5557 = vadd.s32 %v5552, %v5556
    %v5558 = vadd.s32 %v5557, 536870912
    %v5559 = vshrl.u32 %v5558, 30
    %v5560 = vshll.u32 %v5559, 30
    %v5561 = vsub.s32 %v5557, %v5560
    %vm5562 = vcmp.lt.s32.totalorder %v5561, 0
    %v5563 = vsub.s32 0, %v5561
    %v5564 = vsel %vm5562, %v5563, %v5561
    %v5565 = vclz %v5564
    %v5566 = vsub.s32 %v5565, 2
    %vm5567 = vcmp.gt.s32.totalorder 0, %v5566
    %v5568 = vsel %vm5567, 0, %v5566
    %v5569 = vsub.s32 32, %v5568
    %v5570 = vshll.u32 %v5561, %v5568
    %v5571 = vshrl.u32 %v5553, %v5569
    %v5572 = vor.u32 %v5570, %v5571
    %v5573 = vsub.s32 4294967266, %v5568
    %v5574 = vadd.s32 %v5573, 127
    %v5575 = vshll.u32 %v5574, 23
    %v5576 = vor.u32 4788187, %v5575
    %v5577 = vand.u32 2147483647, %v5576
    %v5579 = vcvt.s32.f32 %v5572
    %v5580 = vmul.f32 %v5579, %v5577
    %v5581 = vxor.u32 %v5580, 2147483648
    %v5582 = vsel %vm5461, %v5581, %v5580
    %v5583 = vsub.s32 4, %v5559
    %v5584 = vsel %vm5461, %v5583, %v5559
    %v5585 = vsel %vm5460, %v1256, %v5582
    %v5586 = vsel %vm5460, 0, %v5584
    %v5587 = vmul.f32 %v5585, %v5585
    %v5588 = vmul.f32 %v5587, -0.001358992
    %v5589 = vadd.f32 %v5588, 0.041655596
    %v5590 = vmul.f32 %v5587, %v5589
    %v5591 = vadd.f32 %v5590, -0.4999988
    %v5592 = vmul.f32 %v5587, %v5591
    %v5593 = vadd.f32 1.0, %v5592
    %v5594 = vmul.f32 %v5585, %v5585
    %v5595 = vmul.f32 %v5594, -0.00019511016
    %v5596 = vadd.f32 %v5595, 0.008332121
    %v5597 = vmul.f32 %v5594, %v5596
    %v5598 = vadd.f32 %v5597, -0.16666654
    %v5599 = vmul.f32 %v5594, %v5598
    %v5600 = vadd.f32 %v5599, 1.0
    %v5601 = vmul.f32 %v5600, %v5585
    %vm5602 = vweird.f32 %v1256
    %v5603 = vadd.s32 %v5586, 3
    %v5604 = vand.u32 %v5603, 3
    %vm5605 = vcmp.lt.s32.totalorder %v5604, 2
    %vm5606 = vcmp.eq.s32.totalorder %v5604, 0
    %v5607 = vxor.u32 %v5601, 2147483648
    %v5608 = vsel %vm5606, %v5593, %v5607
    %vm5609 = vcmp.eq.s32.totalorder %v5604, 2
    %v5610 = vxor.u32 %v5593, 2147483648
    %v5611 = vsel %vm5609, %v5610, %v5601
    %v5612 = vsel %vm5605, %v5608, %v5611
    %v5613 = vsel %vm5602, nan, %v5612
    %v5614 = vand.u32 2147483647, %v1260
    %vm5615 = vcmp.le.f32.partialorder %v5614, 0.7853982
    %vm5616 = vcmp.lt.s32.totalorder %v1260, 0
    %v5617 = vand.u32 %v1260, 2139095040
    %v5618 = vshrl.u32 %v5617, 23
    %v5619 = vsub.s32 %v5618, 127
    %v5620 = vand.u32 2147483647, %v1260
    %v5621 = vand.u32 %v5620, 8388607
    %v5622 = vor.u32 %v5621, 8388608
    %v5623 = vsub.s32 0, %v5622
    %v5624 = vadd.s32 %v5619, 1
    %vm5625 = vcmp.gt.s32.totalorder %v5624, 0
    %v5626 = vsel %vm5625, %v5624, 0
    %v5627 = vshrl.u32 %v5626, 5
    %v5628 = vand.u32 %v5626, 31
    %v5629 = vsub.s32 32, %v5628
    %v5630 = vshrl.u32 683565275, %v5629
    %v5631 = vshll.u32 683565275, %v5628
    %v5632 = vshrl.u32 2475754826, %v5629
    %v5633 = vor.u32 %v5631, %v5632
    %v5634 = vshll.u32 2475754826, %v5628
    %v5635 = vshrl.u32 2131351028, %v5629
    %v5636 = vor.u32 %v5634, %v5635
    %v5637 = vshll.u32 2131351028, %v5628
    %v5638 = vshrl.u32 2102212464, %v5629
    %v5639 = vor.u32 %v5637, %v5638
    %v5640 = vshll.u32 2102212464, %v5628
    %v5641 = vshrl.u32 920167782, %v5629
    %v5642 = vor.u32 %v5640, %v5641
    %v5643 = vshll.u32 920167782, %v5628
    %v5644 = vshrl.u32 1326507024, %v5629
    %v5645 = vor.u32 %v5643, %v5644
    %vm5646 = vcmp.lt.s32.totalorder %v5627, 1
    %vm5647 = vcmp.lt.s32.totalorder %v5627, 2
    %vm5648 = vcmp.lt.s32.totalorder %v5627, 3
    %vm5649 = vcmp.lt.s32.totalorder %v5627, 4
    %v5650 = vsel %vm5646, %v5630, %v5633
    %v5651 = vsel %vm5649, %v5639, 2102212464
    %v5652 = vsel %vm5648, %v5636, %v5651
    %v5653 = vsel %vm5647, %v5650, %v5652
    %v5654 = vsel %vm5646, %v5633, %v5636
    %v5655 = vsel %vm5649, %v5642, 920167782
    %v5656 = vsel %vm5648, %v5639, %v5655
    %v5657 = vsel %vm5647, %v5654, %v5656
    %v5658 = vsel %vm5646, %v5636, %v5639
    %v5659 = vsel %vm5649, %v5645, 1326507024
    %v5660 = vsel %vm5648, %v5642, %v5659
    %v5661 = vsel %vm5647, %v5658, %v5660
    %v5662 = vshll.u32 %v5622, 8
    %v5663 = vand.u32 %v5662, 65535
    %v5664 = vshrl.u32 %v5662, 16
    %v5665 = vand.u32 %v5661, 65535
    %v5666 = vshrl.u32 %v5661, 16
    %v5667 = vmul.u32 %v5663, %v5665
    %v5668 = vmul.u32 %v5663, %v5666
    %v5669 = vmul.u32 %v5664, %v5665
    %v5670 = vmul.u32 %v5664, %v5666
    %v5671 = vshll.u32 %v5668, 16
    %v5672 = vshrl.u32 %v5668, 16
    %v5673 = vshll.u32 %v5669, 16
    %v5674 = vshrl.u32 %v5669, 16
    %vm5675 = vc.u32 %v5667, %v5671
    %v5676 = vsel %vm5675, 1, 0
    %v5677 = vadd.s32 %v5667, %v5671
    %v5678 = vadd.s32 %v5670, %v5676
    %vm5679 = vc.u32 %v5677, %v5673
    %v5680 = vsel %vm5679, 1, 0
    %v5681 = vadd.s32 %v5677, %v5673
    %v5682 = vadd.s32 %v5678, %v5680
    %v5683 = vadd.s32 %v5682, %v5672
    %v5684 = vadd.s32 %v5683, %v5674
    %v5685 = vand.u32 %v5662, 65535
    %v5686 = vshrl.u32 %v5662, 16
    %v5687 = vand.u32 %v5657, 65535
    %v5688 = vshrl.u32 %v5657, 16
    %v5689 = vmul.u32 %v5685, %v5687
    %v5690 = vmul.u32 %v5685, %v5688
    %v5691 = vmul.u32 %v5686, %v5687
    %v5692 = vmul.u32 %v5686, %v5688
    %v5693 = vshll.u32 %v5690, 16
    %v5694 = vshrl.u32 %v5690, 16
    %v5695 = vshll.u32 %v5691, 16
    %v5696 = vshrl.u32 %v5691, 16
    %vm5697 = vc.u32 %v5689, %v5693
    %v5698 = vsel %vm5697, 1, 0
    %v5699 = vadd.s32 %v5689, %v5693
    %v5700 = vadd.s32 %v5692, %v5698
    %vm5701 = vc.u32 %v5699, %v5695
    %v5702 = vsel %vm5701, 1, 0
    %v5703 = vadd.s32 %v5699, %v5695
    %v5704 = vadd.s32 %v5700, %v5702
    %v5705 = vadd.s32 %v5704, %v5694
    %v5706 = vadd.s32 %v5705, %v5696
    %v5707 = vmul.u32 %v5662, %v5653
    %v5708 = vadd.s32 %v5684, %v5703
    %vm5709 = vc.u32 %v5684, %v5703
    %v5710 = vadd.s32 %v5706, 1
    %v5711 = vsel %vm5709, %v5710, %v5706
    %v5712 = vadd.s32 %v5707, %v5711
    %v5713 = vadd.s32 %v5712, 536870912
    %v5714 = vshrl.u32 %v5713, 30
    %v5715 = vshll.u32 %v5714, 30
    %v5716 = vsub.s32 %v5712, %v5715
    %vm5717 = vcmp.lt.s32.totalorder %v5716, 0
    %v5718 = vsub.s32 0, %v5716
    %v5719 = vsel %vm5717, %v5718, %v5716
    %v5720 = vclz %v5719
    %v5721 = vsub.s32 %v5720, 2
    %vm5722 = vcmp.gt.s32.totalorder 0, %v5721
    %v5723 = vsel %vm5722, 0, %v5721
    %v5724 = vsub.s32 32, %v5723
    %v5725 = vshll.u32 %v5716, %v5723
    %v5726 = vshrl.u32 %v5708, %v5724
    %v5727 = vor.u32 %v5725, %v5726
    %v5728 = vsub.s32 4294967266, %v5723
    %v5729 = vadd.s32 %v5728, 127
    %v5730 = vshll.u32 %v5729, 23
    %v5731 = vor.u32 4788187, %v5730
    %v5732 = vand.u32 2147483647, %v5731
    %v5734 = vcvt.s32.f32 %v5727
    %v5735 = vmul.f32 %v5734, %v5732
    %v5736 = vxor.u32 %v5735, 2147483648
    %v5737 = vsel %vm5616, %v5736, %v5735
    %v5738 = vsub.s32 4, %v5714
    %v5739 = vsel %vm5616, %v5738, %v5714
    %v5740 = vsel %vm5615, %v1260, %v5737
    %v5741 = vsel %vm5615, 0, %v5739
    %v5742 = vmul.f32 %v5740, %v5740
    %v5743 = vmul.f32 %v5742, -0.001358992
    %v5744 = vadd.f32 %v5743, 0.041655596
    %v5745 = vmul.f32 %v5742, %v5744
    %v5746 = vadd.f32 %v5745, -0.4999988
    %v5747 = vmul.f32 %v5742, %v5746
    %v5748 = vadd.f32 1.0, %v5747
    %v5749 = vmul.f32 %v5740, %v5740
    %v5750 = vmul.f32 %v5749, -0.00019511016
    %v5751 = vadd.f32 %v5750, 0.008332121
    %v5752 = vmul.f32 %v5749, %v5751
    %v5753 = vadd.f32 %v5752, -0.16666654
    %v5754 = vmul.f32 %v5749, %v5753
    %v5755 = vadd.f32 %v5754, 1.0
    %v5756 = vmul.f32 %v5755, %v5740
    %vm5757 = vweird.f32 %v1260
    %v5758 = vadd.s32 %v5741, 3
    %v5759 = vand.u32 %v5758, 3
    %vm5760 = vcmp.lt.s32.totalorder %v5759, 2
    %vm5761 = vcmp.eq.s32.totalorder %v5759, 0
    %v5762 = vxor.u32 %v5756, 2147483648
    %v5763 = vsel %vm5761, %v5748, %v5762
    %vm5764 = vcmp.eq.s32.totalorder %v5759, 2
    %v5765 = vxor.u32 %v5748, 2147483648
    %v5766 = vsel %vm5764, %v5765, %v5756
    %v5767 = vsel %vm5760, %v5763, %v5766
    %v5768 = vsel %vm5757, nan, %v5767
    %v5769 = vand.u32 2147483647, %v1264
    %vm5770 = vcmp.le.f32.partialorder %v5769, 0.7853982
    %vm5771 = vcmp.lt.s32.totalorder %v1264, 0
    %v5772 = vand.u32 %v1264, 2139095040
    %v5773 = vshrl.u32 %v5772, 23
    %v5774 = vsub.s32 %v5773, 127
    %v5775 = vand.u32 2147483647, %v1264
    %v5776 = vand.u32 %v5775, 8388607
    %v5777 = vor.u32 %v5776, 8388608
    %v5778 = vsub.s32 0, %v5777
    %v5779 = vadd.s32 %v5774, 1
    %vm5780 = vcmp.gt.s32.totalorder %v5779, 0
    %v5781 = vsel %vm5780, %v5779, 0
    %v5782 = vshrl.u32 %v5781, 5
    %v5783 = vand.u32 %v5781, 31
    %v5784 = vsub.s32 32, %v5783
    %v5785 = vshrl.u32 683565275, %v5784
    %v5786 = vshll.u32 683565275, %v5783
    %v5787 = vshrl.u32 2475754826, %v5784
    %v5788 = vor.u32 %v5786, %v5787
    %v5789 = vshll.u32 2475754826, %v5783
    %v5790 = vshrl.u32 2131351028, %v5784
    %v5791 = vor.u32 %v5789, %v5790
    %v5792 = vshll.u32 2131351028, %v5783
    %v5793 = vshrl.u32 2102212464, %v5784
    %v5794 = vor.u32 %v5792, %v5793
    %v5795 = vshll.u32 2102212464, %v5783
    %v5796 = vshrl.u32 920167782, %v5784
    %v5797 = vor.u32 %v5795, %v5796
    %v5798 = vshll.u32 920167782, %v5783
    %v5799 = vshrl.u32 1326507024, %v5784
    %v5800 = vor.u32 %v5798, %v5799
    %vm5801 = vcmp.lt.s32.totalorder %v5782, 1
    %vm5802 = vcmp.lt.s32.totalorder %v5782, 2
    %vm5803 = vcmp.lt.s32.totalorder %v5782, 3
    %vm5804 = vcmp.lt.s32.totalorder %v5782, 4
    %v5805 = vsel %vm5801, %v5785, %v5788
    %v5806 = vsel %vm5804, %v5794, 2102212464
    %v5807 = vsel %vm5803, %v5791, %v5806
    %v5808 = vsel %vm5802, %v5805, %v5807
    %v5809 = vsel %vm5801, %v5788, %v5791
    %v5810 = vsel %vm5804, %v5797, 920167782
    %v5811 = vsel %vm5803, %v5794, %v5810
    %v5812 = vsel %vm5802, %v5809, %v5811
    %v5813 = vsel %vm5801, %v5791, %v5794
    %v5814 = vsel %vm5804, %v5800, 1326507024
    %v5815 = vsel %vm5803, %v5797, %v5814
    %v5816 = vsel %vm5802, %v5813, %v5815
    %v5817 = vshll.u32 %v5777, 8
    %v5818 = vand.u32 %v5817, 65535
    %v5819 = vshrl.u32 %v5817, 16
    %v5820 = vand.u32 %v5816, 65535
    %v5821 = vshrl.u32 %v5816, 16
    %v5822 = vmul.u32 %v5818, %v5820
    %v5823 = vmul.u32 %v5818, %v5821
    %v5824 = vmul.u32 %v5819, %v5820
    %v5825 = vmul.u32 %v5819, %v5821
    %v5826 = vshll.u32 %v5823, 16
    %v5827 = vshrl.u32 %v5823, 16
    %v5828 = vshll.u32 %v5824, 16
    %v5829 = vshrl.u32 %v5824, 16
    %vm5830 = vc.u32 %v5822, %v5826
    %v5831 = vsel %vm5830, 1, 0
    %v5832 = vadd.s32 %v5822, %v5826
    %v5833 = vadd.s32 %v5825, %v5831
    %vm5834 = vc.u32 %v5832, %v5828
    %v5835 = vsel %vm5834, 1, 0
    %v5836 = vadd.s32 %v5832, %v5828
    %v5837 = vadd.s32 %v5833, %v5835
    %v5838 = vadd.s32 %v5837, %v5827
    %v5839 = vadd.s32 %v5838, %v5829
    %v5840 = vand.u32 %v5817, 65535
    %v5841 = vshrl.u32 %v5817, 16
    %v5842 = vand.u32 %v5812, 65535
    %v5843 = vshrl.u32 %v5812, 16
    %v5844 = vmul.u32 %v5840, %v5842
    %v5845 = vmul.u32 %v5840, %v5843
    %v5846 = vmul.u32 %v5841, %v5842
    %v5847 = vmul.u32 %v5841, %v5843
    %v5848 = vshll.u32 %v5845, 16
    %v5849 = vshrl.u32 %v5845, 16
    %v5850 = vshll.u32 %v5846, 16
    %v5851 = vshrl.u32 %v5846, 16
    %vm5852 = vc.u32 %v5844, %v5848
    %v5853 = vsel %vm5852, 1, 0
    %v5854 = vadd.s32 %v5844, %v5848
    %v5855 = vadd.s32 %v5847, %v5853
    %vm5856 = vc.u32 %v5854, %v5850
    %v5857 = vsel %vm5856, 1, 0
    %v5858 = vadd.s32 %v5854, %v5850
    %v5859 = vadd.s32 %v5855, %v5857
    %v5860 = vadd.s32 %v5859, %v5849
    %v5861 = vadd.s32 %v5860, %v5851
    %v5862 = vmul.u32 %v5817, %v5808
    %v5863 = vadd.s32 %v5839, %v5858
    %vm5864 = vc.u32 %v5839, %v5858
    %v5865 = vadd.s32 %v5861, 1
    %v5866 = vsel %vm5864, %v5865, %v5861
    %v5867 = vadd.s32 %v5862, %v5866
    %v5868 = vadd.s32 %v5867, 536870912
    %v5869 = vshrl.u32 %v5868, 30
    %v5870 = vshll.u32 %v5869, 30
    %v5871 = vsub.s32 %v5867, %v5870
    %vm5872 = vcmp.lt.s32.totalorder %v5871, 0
    %v5873 = vsub.s32 0, %v5871
    %v5874 = vsel %vm5872, %v5873, %v5871
    %v5875 = vclz %v5874
    %v5876 = vsub.s32 %v5875, 2
    %vm5877 = vcmp.gt.s32.totalorder 0, %v5876
    %v5878 = vsel %vm5877, 0, %v5876
    %v5879 = vsub.s32 32, %v5878
    %v5880 = vshll.u32 %v5871, %v5878
    %v5881 = vshrl.u32 %v5863, %v5879
    %v5882 = vor.u32 %v5880, %v5881
    %v5883 = vsub.s32 4294967266, %v5878
    %v5884 = vadd.s32 %v5883, 127
    %v5885 = vshll.u32 %v5884, 23
    %v5886 = vor.u32 4788187, %v5885
    %v5887 = vand.u32 2147483647, %v5886
    %v5889 = vcvt.s32.f32 %v5882
    %v5890 = vmul.f32 %v5889, %v5887
    %v5891 = vxor.u32 %v5890, 2147483648
    %v5892 = vsel %vm5771, %v5891, %v5890
    %v5893 = vsub.s32 4, %v5869
    %v5894 = vsel %vm5771, %v5893, %v5869
    %v5895 = vsel %vm5770, %v1264, %v5892
    %v5896 = vsel %vm5770, 0, %v5894
    %v5897 = vmul.f32 %v5895, %v5895
    %v5898 = vmul.f32 %v5897, -0.001358992
    %v5899 = vadd.f32 %v5898, 0.041655596
    %v5900 = vmul.f32 %v5897, %v5899
    %v5901 = vadd.f32 %v5900, -0.4999988
    %v5902 = vmul.f32 %v5897, %v5901
    %v5903 = vadd.f32 1.0, %v5902
    %v5904 = vmul.f32 %v5895, %v5895
    %v5905 = vmul.f32 %v5904, -0.00019511016
    %v5906 = vadd.f32 %v5905, 0.008332121
    %v5907 = vmul.f32 %v5904, %v5906
    %v5908 = vadd.f32 %v5907, -0.16666654
    %v5909 = vmul.f32 %v5904, %v5908
    %v5910 = vadd.f32 %v5909, 1.0
    %v5911 = vmul.f32 %v5910, %v5895
    %vm5912 = vweird.f32 %v1264
    %v5913 = vadd.s32 %v5896, 3
    %v5914 = vand.u32 %v5913, 3
    %vm5915 = vcmp.lt.s32.totalorder %v5914, 2
    %vm5916 = vcmp.eq.s32.totalorder %v5914, 0
    %v5917 = vxor.u32 %v5911, 2147483648
    %v5918 = vsel %vm5916, %v5903, %v5917
    %vm5919 = vcmp.eq.s32.totalorder %v5914, 2
    %v5920 = vxor.u32 %v5903, 2147483648
    %v5921 = vsel %vm5919, %v5920, %v5911
    %v5922 = vsel %vm5915, %v5918, %v5921
    %v5923 = vsel %vm5912, nan, %v5922
    %v5924 = vand.u32 2147483647, %v1268
    %vm5925 = vcmp.le.f32.partialorder %v5924, 0.7853982
    %vm5926 = vcmp.lt.s32.totalorder %v1268, 0
    %v5927 = vand.u32 %v1268, 2139095040
    %v5928 = vshrl.u32 %v5927, 23
    %v5929 = vsub.s32 %v5928, 127
    %v5930 = vand.u32 2147483647, %v1268
    %v5931 = vand.u32 %v5930, 8388607
    %v5932 = vor.u32 %v5931, 8388608
    %v5933 = vsub.s32 0, %v5932
    %v5934 = vadd.s32 %v5929, 1
    %vm5935 = vcmp.gt.s32.totalorder %v5934, 0
    %v5936 = vsel %vm5935, %v5934, 0
    %v5937 = vshrl.u32 %v5936, 5
    %v5938 = vand.u32 %v5936, 31
    %v5939 = vsub.s32 32, %v5938
    %v5940 = vshrl.u32 683565275, %v5939
    %v5941 = vshll.u32 683565275, %v5938
    %v5942 = vshrl.u32 2475754826, %v5939
    %v5943 = vor.u32 %v5941, %v5942
    %v5944 = vshll.u32 2475754826, %v5938
    %v5945 = vshrl.u32 2131351028, %v5939
    %v5946 = vor.u32 %v5944, %v5945
    %v5947 = vshll.u32 2131351028, %v5938
    %v5948 = vshrl.u32 2102212464, %v5939
    %v5949 = vor.u32 %v5947, %v5948
    %v5950 = vshll.u32 2102212464, %v5938
    %v5951 = vshrl.u32 920167782, %v5939
    %v5952 = vor.u32 %v5950, %v5951
    %v5953 = vshll.u32 920167782, %v5938
    %v5954 = vshrl.u32 1326507024, %v5939
    %v5955 = vor.u32 %v5953, %v5954
    %vm5956 = vcmp.lt.s32.totalorder %v5937, 1
    %vm5957 = vcmp.lt.s32.totalorder %v5937, 2
    %vm5958 = vcmp.lt.s32.totalorder %v5937, 3
    %vm5959 = vcmp.lt.s32.totalorder %v5937, 4
    %v5960 = vsel %vm5956, %v5940, %v5943
    %v5961 = vsel %vm5959, %v5949, 2102212464
    %v5962 = vsel %vm5958, %v5946, %v5961
    %v5963 = vsel %vm5957, %v5960, %v5962
    %v5964 = vsel %vm5956, %v5943, %v5946
    %v5965 = vsel %vm5959, %v5952, 920167782
    %v5966 = vsel %vm5958, %v5949, %v5965
    %v5967 = vsel %vm5957, %v5964, %v5966
    %v5968 = vsel %vm5956, %v5946, %v5949
    %v5969 = vsel %vm5959, %v5955, 1326507024
    %v5970 = vsel %vm5958, %v5952, %v5969
    %v5971 = vsel %vm5957, %v5968, %v5970
    %v5972 = vshll.u32 %v5932, 8
    %v5973 = vand.u32 %v5972, 65535
    %v5974 = vshrl.u32 %v5972, 16
    %v5975 = vand.u32 %v5971, 65535
    %v5976 = vshrl.u32 %v5971, 16
    %v5977 = vmul.u32 %v5973, %v5975
    %v5978 = vmul.u32 %v5973, %v5976
    %v5979 = vmul.u32 %v5974, %v5975
    %v5980 = vmul.u32 %v5974, %v5976
    %v5981 = vshll.u32 %v5978, 16
    %v5982 = vshrl.u32 %v5978, 16
    %v5983 = vshll.u32 %v5979, 16
    %v5984 = vshrl.u32 %v5979, 16
    %vm5985 = vc.u32 %v5977, %v5981
    %v5986 = vsel %vm5985, 1, 0
    %v5987 = vadd.s32 %v5977, %v5981
    %v5988 = vadd.s32 %v5980, %v5986
    %vm5989 = vc.u32 %v5987, %v5983
    %v5990 = vsel %vm5989, 1, 0
    %v5991 = vadd.s32 %v5987, %v5983
    %v5992 = vadd.s32 %v5988, %v5990
    %v5993 = vadd.s32 %v5992, %v5982
    %v5994 = vadd.s32 %v5993, %v5984
    %v5995 = vand.u32 %v5972, 65535
    %v5996 = vshrl.u32 %v5972, 16
    %v5997 = vand.u32 %v5967, 65535
    %v5998 = vshrl.u32 %v5967, 16
    %v5999 = vmul.u32 %v5995, %v5997
    %v6000 = vmul.u32 %v5995, %v5998
    %v6001 = vmul.u32 %v5996, %v5997
    %v6002 = vmul.u32 %v5996, %v5998
    %v6003 = vshll.u32 %v6000, 16
    %v6004 = vshrl.u32 %v6000, 16
    %v6005 = vshll.u32 %v6001, 16
    %v6006 = vshrl.u32 %v6001, 16
    %vm6007 = vc.u32 %v5999, %v6003
    %v6008 = vsel %vm6007, 1, 0
    %v6009 = vadd.s32 %v5999, %v6003
    %v6010 = vadd.s32 %v6002, %v6008
    %vm6011 = vc.u32 %v6009, %v6005
    %v6012 = vsel %vm6011, 1, 0
    %v6013 = vadd.s32 %v6009, %v6005
    %v6014 = vadd.s32 %v6010, %v6012
    %v6015 = vadd.s32 %v6014, %v6004
    %v6016 = vadd.s32 %v6015, %v6006
    %v6017 = vmul.u32 %v5972, %v5963
    %v6018 = vadd.s32 %v5994, %v6013
    %vm6019 = vc.u32 %v5994, %v6013
    %v6020 = vadd.s32 %v6016, 1
    %v6021 = vsel %vm6019, %v6020, %v6016
    %v6022 = vadd.s32 %v6017, %v6021
    %v6023 = vadd.s32 %v6022, 536870912
    %v6024 = vshrl.u32 %v6023, 30
    %v6025 = vshll.u32 %v6024, 30
    %v6026 = vsub.s32 %v6022, %v6025
    %vm6027 = vcmp.lt.s32.totalorder %v6026, 0
    %v6028 = vsub.s32 0, %v6026
    %v6029 = vsel %vm6027, %v6028, %v6026
    %v6030 = vclz %v6029
    %v6031 = vsub.s32 %v6030, 2
    %vm6032 = vcmp.gt.s32.totalorder 0, %v6031
    %v6033 = vsel %vm6032, 0, %v6031
    %v6034 = vsub.s32 32, %v6033
    %v6035 = vshll.u32 %v6026, %v6033
    %v6036 = vshrl.u32 %v6018, %v6034
    %v6037 = vor.u32 %v6035, %v6036
    %v6038 = vsub.s32 4294967266, %v6033
    %v6039 = vadd.s32 %v6038, 127
    %v6040 = vshll.u32 %v6039, 23
    %v6041 = vor.u32 4788187, %v6040
    %v6042 = vand.u32 2147483647, %v6041
    %v6044 = vcvt.s32.f32 %v6037
    %v6045 = vmul.f32 %v6044, %v6042
    %v6046 = vxor.u32 %v6045, 2147483648
    %v6047 = vsel %vm5926, %v6046, %v6045
    %v6048 = vsub.s32 4, %v6024
    %v6049 = vsel %vm5926, %v6048, %v6024
    %v6050 = vsel %vm5925, %v1268, %v6047
    %v6051 = vsel %vm5925, 0, %v6049
    %v6052 = vmul.f32 %v6050, %v6050
    %v6053 = vmul.f32 %v6052, -0.001358992
    %v6054 = vadd.f32 %v6053, 0.041655596
    %v6055 = vmul.f32 %v6052, %v6054
    %v6056 = vadd.f32 %v6055, -0.4999988
    %v6057 = vmul.f32 %v6052, %v6056
    %v6058 = vadd.f32 1.0, %v6057
    %v6059 = vmul.f32 %v6050, %v6050
    %v6060 = vmul.f32 %v6059, -0.00019511016
    %v6061 = vadd.f32 %v6060, 0.008332121
    %v6062 = vmul.f32 %v6059, %v6061
    %v6063 = vadd.f32 %v6062, -0.16666654
    %v6064 = vmul.f32 %v6059, %v6063
    %v6065 = vadd.f32 %v6064, 1.0
    %v6066 = vmul.f32 %v6065, %v6050
    %vm6067 = vweird.f32 %v1268
    %v6068 = vadd.s32 %v6051, 3
    %v6069 = vand.u32 %v6068, 3
    %vm6070 = vcmp.lt.s32.totalorder %v6069, 2
    %vm6071 = vcmp.eq.s32.totalorder %v6069, 0
    %v6072 = vxor.u32 %v6066, 2147483648
    %v6073 = vsel %vm6071, %v6058, %v6072
    %vm6074 = vcmp.eq.s32.totalorder %v6069, 2
    %v6075 = vxor.u32 %v6058, 2147483648
    %v6076 = vsel %vm6074, %v6075, %v6066
    %v6077 = vsel %vm6070, %v6073, %v6076
    %v6078 = vsel %vm6067, nan, %v6077
    %v6079 = vand.u32 2147483647, %v1272
    %vm6080 = vcmp.le.f32.partialorder %v6079, 0.7853982
    %vm6081 = vcmp.lt.s32.totalorder %v1272, 0
    %v6082 = vand.u32 %v1272, 2139095040
    %v6083 = vshrl.u32 %v6082, 23
    %v6084 = vsub.s32 %v6083, 127
    %v6085 = vand.u32 2147483647, %v1272
    %v6086 = vand.u32 %v6085, 8388607
    %v6087 = vor.u32 %v6086, 8388608
    %v6088 = vsub.s32 0, %v6087
    %v6089 = vadd.s32 %v6084, 1
    %vm6090 = vcmp.gt.s32.totalorder %v6089, 0
    %v6091 = vsel %vm6090, %v6089, 0
    %v6092 = vshrl.u32 %v6091, 5
    %v6093 = vand.u32 %v6091, 31
    %v6094 = vsub.s32 32, %v6093
    %v6095 = vshrl.u32 683565275, %v6094
    %v6096 = vshll.u32 683565275, %v6093
    %v6097 = vshrl.u32 2475754826, %v6094
    %v6098 = vor.u32 %v6096, %v6097
    %v6099 = vshll.u32 2475754826, %v6093
    %v6100 = vshrl.u32 2131351028, %v6094
    %v6101 = vor.u32 %v6099, %v6100
    %v6102 = vshll.u32 2131351028, %v6093
    %v6103 = vshrl.u32 2102212464, %v6094
    %v6104 = vor.u32 %v6102, %v6103
    %v6105 = vshll.u32 2102212464, %v6093
    %v6106 = vshrl.u32 920167782, %v6094
    %v6107 = vor.u32 %v6105, %v6106
    %v6108 = vshll.u32 920167782, %v6093
    %v6109 = vshrl.u32 1326507024, %v6094
    %v6110 = vor.u32 %v6108, %v6109
    %vm6111 = vcmp.lt.s32.totalorder %v6092, 1
    %vm6112 = vcmp.lt.s32.totalorder %v6092, 2
    %vm6113 = vcmp.lt.s32.totalorder %v6092, 3
    %vm6114 = vcmp.lt.s32.totalorder %v6092, 4
    %v6115 = vsel %vm6111, %v6095, %v6098
    %v6116 = vsel %vm6114, %v6104, 2102212464
    %v6117 = vsel %vm6113, %v6101, %v6116
    %v6118 = vsel %vm6112, %v6115, %v6117
    %v6119 = vsel %vm6111, %v6098, %v6101
    %v6120 = vsel %vm6114, %v6107, 920167782
    %v6121 = vsel %vm6113, %v6104, %v6120
    %v6122 = vsel %vm6112, %v6119, %v6121
    %v6123 = vsel %vm6111, %v6101, %v6104
    %v6124 = vsel %vm6114, %v6110, 1326507024
    %v6125 = vsel %vm6113, %v6107, %v6124
    %v6126 = vsel %vm6112, %v6123, %v6125
    %v6127 = vshll.u32 %v6087, 8
    %v6128 = vand.u32 %v6127, 65535
    %v6129 = vshrl.u32 %v6127, 16
    %v6130 = vand.u32 %v6126, 65535
    %v6131 = vshrl.u32 %v6126, 16
    %v6132 = vmul.u32 %v6128, %v6130
    %v6133 = vmul.u32 %v6128, %v6131
    %v6134 = vmul.u32 %v6129, %v6130
    %v6135 = vmul.u32 %v6129, %v6131
    %v6136 = vshll.u32 %v6133, 16
    %v6137 = vshrl.u32 %v6133, 16
    %v6138 = vshll.u32 %v6134, 16
    %v6139 = vshrl.u32 %v6134, 16
    %vm6140 = vc.u32 %v6132, %v6136
    %v6141 = vsel %vm6140, 1, 0
    %v6142 = vadd.s32 %v6132, %v6136
    %v6143 = vadd.s32 %v6135, %v6141
    %vm6144 = vc.u32 %v6142, %v6138
    %v6145 = vsel %vm6144, 1, 0
    %v6146 = vadd.s32 %v6142, %v6138
    %v6147 = vadd.s32 %v6143, %v6145
    %v6148 = vadd.s32 %v6147, %v6137
    %v6149 = vadd.s32 %v6148, %v6139
    %v6150 = vand.u32 %v6127, 65535
    %v6151 = vshrl.u32 %v6127, 16
    %v6152 = vand.u32 %v6122, 65535
    %v6153 = vshrl.u32 %v6122, 16
    %v6154 = vmul.u32 %v6150, %v6152
    %v6155 = vmul.u32 %v6150, %v6153
    %v6156 = vmul.u32 %v6151, %v6152
    %v6157 = vmul.u32 %v6151, %v6153
    %v6158 = vshll.u32 %v6155, 16
    %v6159 = vshrl.u32 %v6155, 16
    %v6160 = vshll.u32 %v6156, 16
    %v6161 = vshrl.u32 %v6156, 16
    %vm6162 = vc.u32 %v6154, %v6158
    %v6163 = vsel %vm6162, 1, 0
    %v6164 = vadd.s32 %v6154, %v6158
    %v6165 = vadd.s32 %v6157, %v6163
    %vm6166 = vc.u32 %v6164, %v6160
    %v6167 = vsel %vm6166, 1, 0
    %v6168 = vadd.s32 %v6164, %v6160
    %v6169 = vadd.s32 %v6165, %v6167
    %v6170 = vadd.s32 %v6169, %v6159
    %v6171 = vadd.s32 %v6170, %v6161
    %v6172 = vmul.u32 %v6127, %v6118
    %v6173 = vadd.s32 %v6149, %v6168
    %vm6174 = vc.u32 %v6149, %v6168
    %v6175 = vadd.s32 %v6171, 1
    %v6176 = vsel %vm6174, %v6175, %v6171
    %v6177 = vadd.s32 %v6172, %v6176
    %v6178 = vadd.s32 %v6177, 536870912
    %v6179 = vshrl.u32 %v6178, 30
    %v6180 = vshll.u32 %v6179, 30
    %v6181 = vsub.s32 %v6177, %v6180
    %vm6182 = vcmp.lt.s32.totalorder %v6181, 0
    %v6183 = vsub.s32 0, %v6181
    %v6184 = vsel %vm6182, %v6183, %v6181
    %v6185 = vclz %v6184
    %v6186 = vsub.s32 %v6185, 2
    %vm6187 = vcmp.gt.s32.totalorder 0, %v6186
    %v6188 = vsel %vm6187, 0, %v6186
    %v6189 = vsub.s32 32, %v6188
    %v6190 = vshll.u32 %v6181, %v6188
    %v6191 = vshrl.u32 %v6173, %v6189
    %v6192 = vor.u32 %v6190, %v6191
    %v6193 = vsub.s32 4294967266, %v6188
    %v6194 = vadd.s32 %v6193, 127
    %v6195 = vshll.u32 %v6194, 23
    %v6196 = vor.u32 4788187, %v6195
    %v6197 = vand.u32 2147483647, %v6196
    %v6199 = vcvt.s32.f32 %v6192
    %v6200 = vmul.f32 %v6199, %v6197
    %v6201 = vxor.u32 %v6200, 2147483648
    %v6202 = vsel %vm6081, %v6201, %v6200
    %v6203 = vsub.s32 4, %v6179
    %v6204 = vsel %vm6081, %v6203, %v6179
    %v6205 = vsel %vm6080, %v1272, %v6202
    %v6206 = vsel %vm6080, 0, %v6204
    %v6207 = vmul.f32 %v6205, %v6205
    %v6208 = vmul.f32 %v6207, -0.001358992
    %v6209 = vadd.f32 %v6208, 0.041655596
    %v6210 = vmul.f32 %v6207, %v6209
    %v6211 = vadd.f32 %v6210, -0.4999988
    %v6212 = vmul.f32 %v6207, %v6211
    %v6213 = vadd.f32 1.0, %v6212
    %v6214 = vmul.f32 %v6205, %v6205
    %v6215 = vmul.f32 %v6214, -0.00019511016
    %v6216 = vadd.f32 %v6215, 0.008332121
    %v6217 = vmul.f32 %v6214, %v6216
    %v6218 = vadd.f32 %v6217, -0.16666654
    %v6219 = vmul.f32 %v6214, %v6218
    %v6220 = vadd.f32 %v6219, 1.0
    %v6221 = vmul.f32 %v6220, %v6205
    %vm6222 = vweird.f32 %v1272
    %v6223 = vadd.s32 %v6206, 3
    %v6224 = vand.u32 %v6223, 3
    %vm6225 = vcmp.lt.s32.totalorder %v6224, 2
    %vm6226 = vcmp.eq.s32.totalorder %v6224, 0
    %v6227 = vxor.u32 %v6221, 2147483648
    %v6228 = vsel %vm6226, %v6213, %v6227
    %vm6229 = vcmp.eq.s32.totalorder %v6224, 2
    %v6230 = vxor.u32 %v6213, 2147483648
    %v6231 = vsel %vm6229, %v6230, %v6221
    %v6232 = vsel %vm6225, %v6228, %v6231
    %v6233 = vsel %vm6222, nan, %v6232
    %6234 = vst [vmem:[#allocation2] sm:$0xff] %v1428
    %6235 = vst [vmem:[#allocation2 + $0x8] sm:$0xff] %v1583
    %6236 = vst [vmem:[#allocation2 + $0x10] sm:$0xff] %v1738
    %6237 = vst [vmem:[#allocation2 + $0x18] sm:$0xff] %v1893
    %6238 = vst [vmem:[#allocation2 + $0x20] sm:$0xff] %v2048
    %6239 = vst [vmem:[#allocation2 + $0x28] sm:$0xff] %v2203
    %6240 = vst [vmem:[#allocation2 + $0x30] sm:$0xff] %v2358
    %6241 = vst [vmem:[#allocation2 + $0x38] sm:$0xff] %v2513
    %6242 = vst [vmem:[#allocation2 + $0x40] sm:$0xff] %v2668
    %6243 = vst [vmem:[#allocation2 + $0x48] sm:$0xff] %v2823
    %6244 = vst [vmem:[#allocation2 + $0x50] sm:$0xff] %v2978
    %6245 = vst [vmem:[#allocation2 + $0x58] sm:$0xff] %v3133
    %6246 = vst [vmem:[#allocation2 + $0x60] sm:$0xff] %v3288
    %6247 = vst [vmem:[#allocation2 + $0x68] sm:$0xff] %v3443
    %6248 = vst [vmem:[#allocation2 + $0x70] sm:$0xff] %v3598
    %6249 = vst [vmem:[#allocation2 + $0x78] sm:$0xff] %v3753
    %6250 = vst [vmem:[#allocation2 + $0x80] sm:$0xff] %v3908
    %6251 = vst [vmem:[#allocation2 + $0x88] sm:$0xff] %v4063
    %6252 = vst [vmem:[#allocation2 + $0x90] sm:$0xff] %v4218
    %6253 = vst [vmem:[#allocation2 + $0x98] sm:$0xff] %v4373
    %6254 = vst [vmem:[#allocation2 + $0xa0] sm:$0xff] %v4528
    %6255 = vst [vmem:[#allocation2 + $0xa8] sm:$0xff] %v4683
    %6256 = vst [vmem:[#allocation2 + $0xb0] sm:$0xff] %v4838
    %6257 = vst [vmem:[#allocation2 + $0xb8] sm:$0xff] %v4993
    %6258 = vst [vmem:[#allocation2 + $0xc0] sm:$0xff] %v5148
    %6259 = vst [vmem:[#allocation2 + $0xc8] sm:$0xff] %v5303
    %6260 = vst [vmem:[#allocation2 + $0xd0] sm:$0xff] %v5458
    %6261 = vst [vmem:[#allocation2 + $0xd8] sm:$0xff] %v5613
    %6262 = vst [vmem:[#allocation2 + $0xe0] sm:$0xff] %v5768
    %6263 = vst [vmem:[#allocation2 + $0xe8] sm:$0xff] %v5923
    %6264 = vst [vmem:[#allocation2 + $0xf0] sm:$0xff] %v6078
    %6265 = vst [vmem:[#allocation2 + $0xf8] sm:$0xff] %v6233
    // Predicated region
    $region14: #{tpu_custom_call.1} parent=1 // pred_check
      _
    $region15: #{tpu_custom_call.1} parent=1 // pred_check_branch
      %6267 = sbr.rel (0) target = $region17
    $region16: #{tpu_custom_call.1} parent=1 // pred_region
      %6269 = vsyncadd [#allocation3], 0
      %s6270 = sshll.u32 [#allocation2], 4
      %s6271 = int_to_ptr.vmem [resolvable:$true] %s6270
      %s6272 = sshll.u32 %s3, 4
      %s6273 = int_to_ptr.hbm [resolvable:$true] %s6272
      %6278 = dma.vmem_to_hbm [thread:$0]  %s6271, 4096, %s6273, [#allocation3], 128, 128, 8
    $region17: #{tpu_custom_call.1} parent=1 // pred_fallthru
      _
    // Predicated region
    $region18: #{tpu_custom_call.1} parent=1 // pred_check
      _
    $region19: #{tpu_custom_call.1} parent=1 // pred_check_branch
      %6280 = sbr.rel (0) target = $region21
    $region20: #{tpu_custom_call.1} parent=1 // pred_region
      %6282 = dma.done [#allocation3], 4096
    $region21: #{tpu_custom_call.1} parent=1 // pred_fallthru
      _
    %6283 = vsyncpa [#allocation3], 1

</llo_original>
